<compile_context>
chip_gen: v5e
topology: v5e:2x2
jax: 0.10.0
libtpu: 0.0.40
codegen_flags: <defaults>
</compile_context>

<pallas_src>
import jax
import jax.numpy as jnp
from jax.experimental import pallas as pl
from jax.experimental.pallas import tpu as pltpu

BN_EPS = 1e-5
LANES = 128
VMEM_LIMIT = 32 * 1024 * 1024   # safe scoped-VMEM budget on v5e/v6e/v7x


# ----------------------------- Pallas kernels ------------------------------

def _conv3x3_accumulate(load_win, w_ref, hw, cout):
    """3x3 conv as nine shifted bf16 MXU matmuls with f32 accumulation."""
    acc = jnp.zeros((hw, cout), jnp.float32)
    for k in range(9):
        ky, kx = divmod(k, 3)
        acc = acc + jnp.dot(load_win(ky, kx), w_ref[k],
                            preferred_element_type=jnp.float32)
    return acc


def _accumulate_bn_stats(acc, stats_ref):
    """Accumulate per-channel [sum; sum of squares] across the grid axis."""
    @pl.when(pl.program_id(0) == 0)
    def _():
        stats_ref[...] = jnp.zeros_like(stats_ref)
    stats_ref[...] += jnp.concatenate(
        [jnp.sum(acc, axis=0, keepdims=True),
         jnp.sum(acc * acc, axis=0, keepdims=True)], axis=0)


def _conv1_stats_kernel(xp_ref, w_ref, y_ref, stats_ref):
    # xp_ref: (1, H+2, W+2, Cp) f32 spatially padded input image
    # w_ref : (9, Cp, Cp) bf16 conv1 weights, (ky, kx) major
    # y_ref : (H*W, Cp) f32 conv1 output rows for this image
    # stats_ref: (2, Cp) f32 accumulator (resident across grid)
    _, hp, wp, cp = xp_ref.shape
    h, w = hp - 2, wp - 2
    cout = w_ref.shape[2]
    xp = xp_ref[0]                                   # (H+2, W+2, Cp)

    def load_win(ky, kx):
        win = xp[ky:ky + h, kx:kx + w, :]
        return win.reshape(h * w, cp).astype(jnp.bfloat16)

    acc = _conv3x3_accumulate(load_win, w_ref, h * w, cout)
    y_ref[...] = acc
    _accumulate_bn_stats(acc, stats_ref)


def _bn_relu_conv2_stats_kernel(y1_ref, scale_ref, shift_ref, w_ref,
                                y2_ref, stats_ref, xpad_ref):
    # y1_ref : (H*W, Cp) f32 conv1 output for this image
    # scale_ref/shift_ref: (1, Cp) f32 folded bn1 affine
    # w_ref  : (9, Cp, Cp) bf16 conv2 weights
    # y2_ref : (H*W, Cp) f32 conv2 output rows
    # stats_ref: (2, Cp) f32 accumulator
    # xpad_ref : (H+2, W+2, Cp) f32 VMEM scratch (zero halo, persists over grid)
    hp, wp, cp = xpad_ref.shape
    h, w = hp - 2, wp - 2
    cout = w_ref.shape[2]

    # bn1 apply + ReLU (f32 epilogue, works on all TPU generations)
    h1 = jnp.maximum(y1_ref[...] * scale_ref[...] + shift_ref[...], 0.0)

    # build the zero-padded activation tile in VMEM (border only zeroed once)
    @pl.when(pl.program_id(0) == 0)
    def _():
        xpad_ref[...] = jnp.zeros_like(xpad_ref)
    xpad_ref[1:h + 1, 1:w + 1, :] = h1.reshape(h, w, cp)
    xp = xpad_ref[...]

    def load_win(ky, kx):
        win = xp[ky:ky + h, kx:kx + w, :]
        return win.reshape(h * w, cp).astype(jnp.bfloat16)

    acc = _conv3x3_accumulate(load_win, w_ref, h * w, cout)
    y2_ref[...] = acc
    _accumulate_bn_stats(acc, stats_ref)


def _bn_add_relu_kernel(y2_ref, res_ref, scale_ref, shift_ref, o_ref):
    out = y2_ref[...] * scale_ref[...] + shift_ref[...] + res_ref[...]
    o_ref[...] = jnp.maximum(out, 0.0).astype(o_ref.dtype)


# --------------------------- pallas_call wrappers ---------------------------

def _conv1_stats(xp, w1):
    n, hp, wp, cp = xp.shape
    h, w = hp - 2, wp - 2
    hw = h * w
    cout = w1.shape[2]
    flops = 2 * n * hw * 9 * cp * cout
    bytes_accessed = xp.size * 4 + w1.size * 2 + n * hw * cout * 4 + 2 * cout * 4
    return pl.pallas_call(
        _conv1_stats_kernel,
        out_shape=(jax.ShapeDtypeStruct((n * hw, cout), jnp.float32),
                   jax.ShapeDtypeStruct((2, cout), jnp.float32)),
        grid_spec=pltpu.PrefetchScalarGridSpec(
            num_scalar_prefetch=0,
            grid=(n,),
            in_specs=[
                pl.BlockSpec((1, hp, wp, cp), lambda i: (i, 0, 0, 0)),
                pl.BlockSpec((9, cp, cout), lambda i: (0, 0, 0)),
            ],
            out_specs=[
                pl.BlockSpec((hw, cout), lambda i: (i, 0)),
                pl.BlockSpec((2, cout), lambda i: (0, 0)),
            ],
        ),
        compiler_params=pltpu.CompilerParams(
            dimension_semantics=("arbitrary",),   # stats accumulate across grid
            vmem_limit_bytes=VMEM_LIMIT),
        cost_estimate=pl.CostEstimate(flops=flops, transcendentals=0,
                                      bytes_accessed=bytes_accessed),
    )(xp, w1)


def _bn_relu_conv2_stats(y1, scale, shift, w2, n, h, w):
    hw = h * w
    cp = y1.shape[1]
    cout = w2.shape[2]
    flops = 2 * n * hw * 9 * cp * cout + 3 * n * hw * cp
    bytes_accessed = (y1.size * 4 + w2.size * 2 + n * hw * cout * 4
                      + 2 * cout * 4 + 2 * cp * 4)
    return pl.pallas_call(
        _bn_relu_conv2_stats_kernel,
        out_shape=(jax.ShapeDtypeStruct((n * hw, cout), jnp.float32),
                   jax.ShapeDtypeStruct((2, cout), jnp.float32)),
        grid_spec=pltpu.PrefetchScalarGridSpec(
            num_scalar_prefetch=0,
            grid=(n,),
            in_specs=[
                pl.BlockSpec((hw, cp), lambda i: (i, 0)),
                pl.BlockSpec((1, cp), lambda i: (0, 0)),
                pl.BlockSpec((1, cp), lambda i: (0, 0)),
                pl.BlockSpec((9, cp, cout), lambda i: (0, 0, 0)),
            ],
            out_specs=[
                pl.BlockSpec((hw, cout), lambda i: (i, 0)),
                pl.BlockSpec((2, cout), lambda i: (0, 0)),
            ],
            scratch_shapes=[pltpu.VMEM((h + 2, w + 2, cp), jnp.float32)],
        ),
        compiler_params=pltpu.CompilerParams(
            dimension_semantics=("arbitrary",),
            vmem_limit_bytes=VMEM_LIMIT),
        cost_estimate=pl.CostEstimate(flops=flops, transcendentals=0,
                                      bytes_accessed=bytes_accessed),
    )(y1, scale, shift, w2)


def _pick_row_tile(m):
    for tm in (1024, 512, 256, 128, 64, 32, 16, 8):
        if m % tm == 0:
            return tm
    return m


def _bn_add_relu(y2, res, scale, shift):
    m, cp = y2.shape
    tm = _pick_row_tile(m)
    flops = 4 * m * cp
    bytes_accessed = (3 * m * cp + 2 * cp) * 4
    return pl.pallas_call(
        _bn_add_relu_kernel,
        out_shape=jax.ShapeDtypeStruct((m, cp), jnp.float32),
        grid_spec=pltpu.PrefetchScalarGridSpec(
            num_scalar_prefetch=0,
            grid=(m // tm,),
            in_specs=[
                pl.BlockSpec((tm, cp), lambda i: (i, 0)),
                pl.BlockSpec((tm, cp), lambda i: (i, 0)),
                pl.BlockSpec((1, cp), lambda i: (0, 0)),
                pl.BlockSpec((1, cp), lambda i: (0, 0)),
            ],
            out_specs=pl.BlockSpec((tm, cp), lambda i: (i, 0)),
        ),
        compiler_params=pltpu.CompilerParams(
            dimension_semantics=("parallel",),    # independent row tiles (v7x 2 TCs)
            vmem_limit_bytes=VMEM_LIMIT),
        cost_estimate=pl.CostEstimate(flops=flops, transcendentals=0,
                                      bytes_accessed=bytes_accessed),
    )(y2, res, scale, shift)


# ------------------------------ JAX glue -----------------------------------

def _round_up(x, mult):
    return (x + mult - 1) // mult * mult


def _pack_conv_weight(w_oihw, cp_in, cp_out):
    """(Cout, Cin, 3, 3) -> (9, cp_in, cp_out) bf16, (ky, kx, cin, cout) order."""
    cout, cin = w_oihw.shape[0], w_oihw.shape[1]
    w = jnp.transpose(w_oihw.astype(jnp.float32), (2, 3, 1, 0))   # (3,3,Cin,Cout)
    w = jnp.pad(w, ((0, 0), (0, 0), (0, cp_in - cin), (0, cp_out - cout)))
    return w.reshape(9, cp_in, cp_out).astype(jnp.bfloat16)


def _bn_fold(stats, gamma, beta, m, cp):
    """Fold batch statistics + affine params into per-channel scale/shift."""
    mean = stats[0] / m
    var = jnp.maximum(stats[1] / m - mean * mean, 0.0)   # biased batch variance
    g = jnp.pad(gamma.astype(jnp.float32), (0, cp - gamma.shape[0]))
    b = jnp.pad(beta.astype(jnp.float32), (0, cp - beta.shape[0]))
    scale = g * jax.lax.rsqrt(var + BN_EPS)
    shift = b - mean * scale
    return scale.reshape(1, cp), shift.reshape(1, cp)


def basic_block_forward(x_nchw, params, stride=1):
    """Forward pass of BasicBlock (training-mode BN, stride=1, downsample=None)."""
    assert stride == 1, "identity residual only valid for stride=1"
    planes = params["w1"].shape[0]
    n, cin, h, w = x_nchw.shape
    assert cin == params["w1"].shape[1]
    assert cin == planes, "identity residual requires inplanes == planes"

    cp = _round_up(max(cin, planes), LANES)
    m = n * h * w

    x = jnp.transpose(x_nchw, (0, 2, 3, 1)).astype(jnp.float32)   # NCHW -> NHWC
    xc = jnp.pad(x, ((0, 0), (0, 0), (0, 0), (0, cp - cin)))      # lane padding
    xp = jnp.pad(xc, ((0, 0), (1, 1), (1, 1), (0, 0)))            # spatial halo

    w1 = _pack_conv_weight(params["w1"], cp, cp)
    w2 = _pack_conv_weight(params["w2"], cp, cp)

    # K1: conv1 + bn1 batch statistics
    y1, stats1 = _conv1_stats(xp, w1)
    scale1, shift1 = _bn_fold(stats1, params["g1"], params["b1"], m, cp)

    # K2: bn1 apply + relu + conv2 + bn2 batch statistics (fused pass)
    y2, stats2 = _bn_relu_conv2_stats(y1, scale1, shift1, w2, n, h, w)
    scale2, shift2 = _bn_fold(stats2, params["g2"], params["b2"], m, cp)

    # K3: bn2 apply + residual add + relu
    residual = xc.reshape(m, cp)
    out = _bn_add_relu(y2, residual, scale2, shift2)

    out = out[:, :planes].reshape(n, h, w, planes)
    return jnp.transpose(out, (0, 3, 1, 2))                       # NHWC -> NCHW


# --------------------------- pure-JAX reference -----------------------------

def _reference_forward(x_nchw, params):
    x = jnp.transpose(x_nchw, (0, 2, 3, 1)).astype(jnp.float32)

    def conv3x3(inp, w_oihw):
        w_hwio = jnp.transpose(w_oihw.astype(jnp.float32), (2, 3, 1, 0))
        return jax.lax.conv_general_dilated(
            inp, w_hwio, window_strides=(1, 1), padding=((1, 1), (1, 1)),
            dimension_numbers=("NHWC", "HWIO", "NHWC"),
            precision=jax.lax.Precision.HIGHEST)

    def bn(inp, g, b):
        mean = jnp.mean(inp, axis=(0, 1, 2), keepdims=True)
        var = jnp.mean((inp - mean) ** 2, axis=(0, 1, 2), keepdims=True)
        return (inp - mean) * jax.lax.rsqrt(var + BN_EPS) * g + b

    h1 = jnp.maximum(bn(conv3x3(x, params["w1"]), params["g1"], params["b1"]), 0.0)
    h2 = bn(conv3x3(h1, params["w2"]), params["g2"], params["b2"]) + x
    out = jnp.maximum(h2, 0.0)
    return jnp.transpose(out, (0, 3, 1, 2))


# ------------------------------- demo --------------------------------------

if __name__ == "__main__":
    N, C, H, W = 2, 4, 16, 16     # inplanes = planes = 4, stride = 1
    planes = 4

    keys = jax.random.split(jax.random.PRNGKey(0), 8)
    x = jax.random.normal(keys[0], (N, C, H, W), jnp.float32)
    params = {
        "w1": 0.1 * jax.random.normal(keys[1], (planes, C, 3, 3), jnp.float32),
        "g1": 1.0 + 0.1 * jax.random.normal(keys[2], (planes,), jnp.float32),
        "b1": 0.1 * jax.random.normal(keys[3], (planes,), jnp.float32),
        "w2": 0.1 * jax.random.normal(keys[4], (planes, planes, 3, 3), jnp.float32),
        "g2": 1.0 + 0.1 * jax.random.normal(keys[5], (planes,), jnp.float32),
        "b2": 0.1 * jax.random.normal(keys[6], (planes,), jnp.float32),
    }

    fwd = jax.jit(basic_block_forward)
    out = jax.block_until_ready(fwd(x, params))

    assert out.shape == (N, planes, H, W)
    assert bool(jnp.all(jnp.isfinite(out)))

    # loose tolerance: bf16 MXU operands vs f32 reference
    ref = _reference_forward(x, params)
    assert bool(jnp.allclose(out, ref, atol=5e-2, rtol=5e-2))

    print("KERNEL_OK")
</pallas_src>

<mosaic_0001>
module attributes {stable_mosaic.version = 11 : i64} {
  func.func @_conv1_stats_kernel(%arg0: i32, %arg1: memref<1x18x18x128xf32, #tpu.memory_space<vmem>>, %arg2: memref<9x128x128xbf16, #tpu.memory_space<vmem>>, %arg3: memref<256x128xf32, #tpu.memory_space<vmem>>, %arg4: memref<2x128xf32, #tpu.memory_space<vmem>>) attributes {dimension_semantics = [#tpu.dimension_semantics<arbitrary>], iteration_bounds = array<i64: 2>, scalar_prefetch = 0 : i64, scratch_operands = 0 : i64, tpu.core_type = #tpu.core_type<tc>, window_params = [{transform_indices = @transform_0, window_bounds = array<i64: 1, 18, 18, 128>}, {pipeline_mode = #tpu.pipeline_mode<synchronous>, transform_indices = @transform_1, window_bounds = array<i64: 9, 128, 128>}, {transform_indices = @transform_2, window_bounds = array<i64: 256, 128>}, {pipeline_mode = #tpu.pipeline_mode<synchronous>, transform_indices = @transform_3, window_bounds = array<i64: 2, 128>}]} {
    %c0 = arith.constant 0 : index
    %c0_0 = arith.constant 0 : index
    %c0_1 = arith.constant 0 : index
    %c0_2 = arith.constant 0 : index
    %0 = vector.load %arg1[%c0, %c0_0, %c0_1, %c0_2] : memref<1x18x18x128xf32, #tpu.memory_space<vmem>>, vector<1x18x18x128xf32>
    %1 = vector.shape_cast %0 : vector<1x18x18x128xf32> to vector<18x18x128xf32>
    %cst = arith.constant 0.000000e+00 : f32
    %2 = vector.broadcast %cst : f32 to vector<256x128xf32>
    %3 = vector.extract_strided_slice %1 {offsets = [0, 0, 0], sizes = [16, 16, 128], strides = [1, 1, 1]} : vector<18x18x128xf32> to vector<16x16x128xf32>
    %4 = vector.shape_cast %3 : vector<16x16x128xf32> to vector<256x128xf32>
    %5 = arith.truncf %4 : vector<256x128xf32> to vector<256x128xbf16>
    %c0_3 = arith.constant 0 : index
    %c0_4 = arith.constant 0 : index
    %c0_5 = arith.constant 0 : index
    %6 = vector.load %arg2[%c0_3, %c0_4, %c0_5] : memref<9x128x128xbf16, #tpu.memory_space<vmem>>, vector<1x128x128xbf16>
    %7 = vector.shape_cast %6 : vector<1x128x128xbf16> to vector<128x128xbf16>
    %cst_6 = arith.constant dense<0.000000e+00> : vector<256x128xf32>
    %8 = tpu.matmul %5, %7, %cst_6 {dimension_numbers = #tpu.dot_dimension_numbers<[1], [0], [0], [1], [0, 0, 1, 1], [], []>} : vector<256x128xbf16>, vector<128x128xbf16>, vector<256x128xf32> -> vector<256x128xf32>
    %9 = arith.addf %2, %8 : vector<256x128xf32>
    %10 = vector.extract_strided_slice %1 {offsets = [0, 1, 0], sizes = [16, 16, 128], strides = [1, 1, 1]} : vector<18x18x128xf32> to vector<16x16x128xf32>
    %11 = vector.shape_cast %10 : vector<16x16x128xf32> to vector<256x128xf32>
    %12 = arith.truncf %11 : vector<256x128xf32> to vector<256x128xbf16>
    %c1 = arith.constant 1 : index
    %c0_7 = arith.constant 0 : index
    %c0_8 = arith.constant 0 : index
    %13 = vector.load %arg2[%c1, %c0_7, %c0_8] : memref<9x128x128xbf16, #tpu.memory_space<vmem>>, vector<1x128x128xbf16>
    %14 = vector.shape_cast %13 : vector<1x128x128xbf16> to vector<128x128xbf16>
    %cst_9 = arith.constant dense<0.000000e+00> : vector<256x128xf32>
    %15 = tpu.matmul %12, %14, %cst_9 {dimension_numbers = #tpu.dot_dimension_numbers<[1], [0], [0], [1], [0, 0, 1, 1], [], []>} : vector<256x128xbf16>, vector<128x128xbf16>, vector<256x128xf32> -> vector<256x128xf32>
    %16 = arith.addf %9, %15 : vector<256x128xf32>
    %17 = vector.extract_strided_slice %1 {offsets = [0, 2, 0], sizes = [16, 16, 128], strides = [1, 1, 1]} : vector<18x18x128xf32> to vector<16x16x128xf32>
    %18 = vector.shape_cast %17 : vector<16x16x128xf32> to vector<256x128xf32>
    %19 = arith.truncf %18 : vector<256x128xf32> to vector<256x128xbf16>
    %c2 = arith.constant 2 : index
    %c0_10 = arith.constant 0 : index
    %c0_11 = arith.constant 0 : index
    %20 = vector.load %arg2[%c2, %c0_10, %c0_11] : memref<9x128x128xbf16, #tpu.memory_space<vmem>>, vector<1x128x128xbf16>
    %21 = vector.shape_cast %20 : vector<1x128x128xbf16> to vector<128x128xbf16>
    %cst_12 = arith.constant dense<0.000000e+00> : vector<256x128xf32>
    %22 = tpu.matmul %19, %21, %cst_12 {dimension_numbers = #tpu.dot_dimension_numbers<[1], [0], [0], [1], [0, 0, 1, 1], [], []>} : vector<256x128xbf16>, vector<128x128xbf16>, vector<256x128xf32> -> vector<256x128xf32>
    %23 = arith.addf %16, %22 : vector<256x128xf32>
    %24 = vector.extract_strided_slice %1 {offsets = [1, 0, 0], sizes = [16, 16, 128], strides = [1, 1, 1]} : vector<18x18x128xf32> to vector<16x16x128xf32>
    %25 = vector.shape_cast %24 : vector<16x16x128xf32> to vector<256x128xf32>
    %26 = arith.truncf %25 : vector<256x128xf32> to vector<256x128xbf16>
    %c3 = arith.constant 3 : index
    %c0_13 = arith.constant 0 : index
    %c0_14 = arith.constant 0 : index
    %27 = vector.load %arg2[%c3, %c0_13, %c0_14] : memref<9x128x128xbf16, #tpu.memory_space<vmem>>, vector<1x128x128xbf16>
    %28 = vector.shape_cast %27 : vector<1x128x128xbf16> to vector<128x128xbf16>
    %cst_15 = arith.constant dense<0.000000e+00> : vector<256x128xf32>
    %29 = tpu.matmul %26, %28, %cst_15 {dimension_numbers = #tpu.dot_dimension_numbers<[1], [0], [0], [1], [0, 0, 1, 1], [], []>} : vector<256x128xbf16>, vector<128x128xbf16>, vector<256x128xf32> -> vector<256x128xf32>
    %30 = arith.addf %23, %29 : vector<256x128xf32>
    %31 = vector.extract_strided_slice %1 {offsets = [1, 1, 0], sizes = [16, 16, 128], strides = [1, 1, 1]} : vector<18x18x128xf32> to vector<16x16x128xf32>
    %32 = vector.shape_cast %31 : vector<16x16x128xf32> to vector<256x128xf32>
    %33 = arith.truncf %32 : vector<256x128xf32> to vector<256x128xbf16>
    %c4 = arith.constant 4 : index
    %c0_16 = arith.constant 0 : index
    %c0_17 = arith.constant 0 : index
    %34 = vector.load %arg2[%c4, %c0_16, %c0_17] : memref<9x128x128xbf16, #tpu.memory_space<vmem>>, vector<1x128x128xbf16>
    %35 = vector.shape_cast %34 : vector<1x128x128xbf16> to vector<128x128xbf16>
    %cst_18 = arith.constant dense<0.000000e+00> : vector<256x128xf32>
    %36 = tpu.matmul %33, %35, %cst_18 {dimension_numbers = #tpu.dot_dimension_numbers<[1], [0], [0], [1], [0, 0, 1, 1], [], []>} : vector<256x128xbf16>, vector<128x128xbf16>, vector<256x128xf32> -> vector<256x128xf32>
    %37 = arith.addf %30, %36 : vector<256x128xf32>
    %38 = vector.extract_strided_slice %1 {offsets = [1, 2, 0], sizes = [16, 16, 128], strides = [1, 1, 1]} : vector<18x18x128xf32> to vector<16x16x128xf32>
    %39 = vector.shape_cast %38 : vector<16x16x128xf32> to vector<256x128xf32>
    %40 = arith.truncf %39 : vector<256x128xf32> to vector<256x128xbf16>
    %c5 = arith.constant 5 : index
    %c0_19 = arith.constant 0 : index
    %c0_20 = arith.constant 0 : index
    %41 = vector.load %arg2[%c5, %c0_19, %c0_20] : memref<9x128x128xbf16, #tpu.memory_space<vmem>>, vector<1x128x128xbf16>
    %42 = vector.shape_cast %41 : vector<1x128x128xbf16> to vector<128x128xbf16>
    %cst_21 = arith.constant dense<0.000000e+00> : vector<256x128xf32>
    %43 = tpu.matmul %40, %42, %cst_21 {dimension_numbers = #tpu.dot_dimension_numbers<[1], [0], [0], [1], [0, 0, 1, 1], [], []>} : vector<256x128xbf16>, vector<128x128xbf16>, vector<256x128xf32> -> vector<256x128xf32>
    %44 = arith.addf %37, %43 : vector<256x128xf32>
    %45 = vector.extract_strided_slice %1 {offsets = [2, 0, 0], sizes = [16, 16, 128], strides = [1, 1, 1]} : vector<18x18x128xf32> to vector<16x16x128xf32>
    %46 = vector.shape_cast %45 : vector<16x16x128xf32> to vector<256x128xf32>
    %47 = arith.truncf %46 : vector<256x128xf32> to vector<256x128xbf16>
    %c6 = arith.constant 6 : index
    %c0_22 = arith.constant 0 : index
    %c0_23 = arith.constant 0 : index
    %48 = vector.load %arg2[%c6, %c0_22, %c0_23] : memref<9x128x128xbf16, #tpu.memory_space<vmem>>, vector<1x128x128xbf16>
    %49 = vector.shape_cast %48 : vector<1x128x128xbf16> to vector<128x128xbf16>
    %cst_24 = arith.constant dense<0.000000e+00> : vector<256x128xf32>
    %50 = tpu.matmul %47, %49, %cst_24 {dimension_numbers = #tpu.dot_dimension_numbers<[1], [0], [0], [1], [0, 0, 1, 1], [], []>} : vector<256x128xbf16>, vector<128x128xbf16>, vector<256x128xf32> -> vector<256x128xf32>
    %51 = arith.addf %44, %50 : vector<256x128xf32>
    %52 = vector.extract_strided_slice %1 {offsets = [2, 1, 0], sizes = [16, 16, 128], strides = [1, 1, 1]} : vector<18x18x128xf32> to vector<16x16x128xf32>
    %53 = vector.shape_cast %52 : vector<16x16x128xf32> to vector<256x128xf32>
    %54 = arith.truncf %53 : vector<256x128xf32> to vector<256x128xbf16>
    %c7 = arith.constant 7 : index
    %c0_25 = arith.constant 0 : index
    %c0_26 = arith.constant 0 : index
    %55 = vector.load %arg2[%c7, %c0_25, %c0_26] : memref<9x128x128xbf16, #tpu.memory_space<vmem>>, vector<1x128x128xbf16>
    %56 = vector.shape_cast %55 : vector<1x128x128xbf16> to vector<128x128xbf16>
    %cst_27 = arith.constant dense<0.000000e+00> : vector<256x128xf32>
    %57 = tpu.matmul %54, %56, %cst_27 {dimension_numbers = #tpu.dot_dimension_numbers<[1], [0], [0], [1], [0, 0, 1, 1], [], []>} : vector<256x128xbf16>, vector<128x128xbf16>, vector<256x128xf32> -> vector<256x128xf32>
    %58 = arith.addf %51, %57 : vector<256x128xf32>
    %59 = vector.extract_strided_slice %1 {offsets = [2, 2, 0], sizes = [16, 16, 128], strides = [1, 1, 1]} : vector<18x18x128xf32> to vector<16x16x128xf32>
    %60 = vector.shape_cast %59 : vector<16x16x128xf32> to vector<256x128xf32>
    %61 = arith.truncf %60 : vector<256x128xf32> to vector<256x128xbf16>
    %c8 = arith.constant 8 : index
    %c0_28 = arith.constant 0 : index
    %c0_29 = arith.constant 0 : index
    %62 = vector.load %arg2[%c8, %c0_28, %c0_29] : memref<9x128x128xbf16, #tpu.memory_space<vmem>>, vector<1x128x128xbf16>
    %63 = vector.shape_cast %62 : vector<1x128x128xbf16> to vector<128x128xbf16>
    %cst_30 = arith.constant dense<0.000000e+00> : vector<256x128xf32>
    %64 = tpu.matmul %61, %63, %cst_30 {dimension_numbers = #tpu.dot_dimension_numbers<[1], [0], [0], [1], [0, 0, 1, 1], [], []>} : vector<256x128xbf16>, vector<128x128xbf16>, vector<256x128xf32> -> vector<256x128xf32>
    %65 = arith.addf %58, %64 : vector<256x128xf32>
    %c0_31 = arith.constant 0 : index
    %c0_32 = arith.constant 0 : index
    %66 = vector.load %arg3[%c0_31, %c0_32] : memref<256x128xf32, #tpu.memory_space<vmem>>, vector<256x128xf32>
    tpu.vector_store %arg3[%c0_31, %c0_32], %65 {strides = array<i32>} : memref<256x128xf32, #tpu.memory_space<vmem>>, vector<256x128xf32>,
    %c0_i32 = arith.constant 0 : i32
    %67 = arith.cmpi eq, %arg0, %c0_i32 : i32
    %68 = arith.extui %67 : i1 to i32
    %c0_i32_33 = arith.constant 0 : i32
    %69 = arith.cmpi ne, %68, %c0_i32_33 : i32
    scf.if %69 {
      %cst_40 = arith.constant 0.000000e+00 : f32
      %79 = vector.broadcast %cst_40 : f32 to vector<2x128xf32>
      %c0_41 = arith.constant 0 : index
      %c0_42 = arith.constant 0 : index
      %80 = vector.load %arg4[%c0_41, %c0_42] : memref<2x128xf32, #tpu.memory_space<vmem>>, vector<2x128xf32>
      tpu.vector_store %arg4[%c0_41, %c0_42], %79 {strides = array<i32>} : memref<2x128xf32, #tpu.memory_space<vmem>>, vector<2x128xf32>,
    } else {
    }
    %c0_34 = arith.constant 0 : index
    %c0_35 = arith.constant 0 : index
    %70 = vector.load %arg4[%c0_34, %c0_35] : memref<2x128xf32, #tpu.memory_space<vmem>>, vector<2x128xf32>
    %cst_36 = arith.constant dense<0.000000e+00> : vector<128xf32>
    %71 = vector.multi_reduction <add>, %65, %cst_36 [0] : vector<256x128xf32> to vector<128xf32>
    %72 = vector.shape_cast %71 : vector<128xf32> to vector<1x128xf32>
    %73 = arith.mulf %65, %65 : vector<256x128xf32>
    %cst_37 = arith.constant dense<0.000000e+00> : vector<128xf32>
    %74 = vector.multi_reduction <add>, %73, %cst_37 [0] : vector<256x128xf32> to vector<128xf32>
    %75 = vector.shape_cast %74 : vector<128xf32> to vector<1x128xf32>
    %76 = tpu.concatenate %72, %75 in 0 : vector<1x128xf32>, vector<1x128xf32> -> vector<2x128xf32>
    %77 = arith.addf %70, %76 : vector<2x128xf32>
    %c0_38 = arith.constant 0 : index
    %c0_39 = arith.constant 0 : index
    %78 = vector.load %arg4[%c0_38, %c0_39] : memref<2x128xf32, #tpu.memory_space<vmem>>, vector<2x128xf32>
    tpu.vector_store %arg4[%c0_38, %c0_39], %77 {strides = array<i32>} : memref<2x128xf32, #tpu.memory_space<vmem>>, vector<2x128xf32>,
    return
  }
  func.func @transform_0(%arg0: i32) -> (i32, i32, i32, i32) {
    %c0_i32 = arith.constant 0 : i32
    %c0_i32_0 = arith.constant 0 : i32
    %c0_i32_1 = arith.constant 0 : i32
    %c0_i32_2 = arith.constant 0 : i32
    return %arg0, %c0_i32, %c0_i32_0, %c0_i32_1 : i32, i32, i32, i32
  }
  func.func @transform_1(%arg0: i32) -> (i32, i32, i32) {
    %c0_i32 = arith.constant 0 : i32
    %c0_i32_0 = arith.constant 0 : i32
    %c0_i32_1 = arith.constant 0 : i32
    %c0_i32_2 = arith.constant 0 : i32
    return %c0_i32, %c0_i32_0, %c0_i32_1 : i32, i32, i32
  }
  func.func @transform_2(%arg0: i32) -> (i32, i32) {
    %c0_i32 = arith.constant 0 : i32
    %c0_i32_0 = arith.constant 0 : i32
    return %arg0, %c0_i32 : i32, i32
  }
  func.func @transform_3(%arg0: i32) -> (i32, i32) {
    %c0_i32 = arith.constant 0 : i32
    %c0_i32_0 = arith.constant 0 : i32
    %c0_i32_1 = arith.constant 0 : i32
    return %c0_i32, %c0_i32_0 : i32, i32
  }
}

module attributes {stable_mosaic.version = 11 : i64} {
  func.func @_bn_add_relu_kernel(%arg0: i32, %arg1: memref<512x128xf32, #tpu.memory_space<vmem>>, %arg2: memref<512x128xf32, #tpu.memory_space<vmem>>, %arg3: memref<1x128xf32, #tpu.memory_space<vmem>>, %arg4: memref<1x128xf32, #tpu.memory_space<vmem>>, %arg5: memref<512x128xf32, #tpu.memory_space<vmem>>) attributes {dimension_semantics = [#tpu.dimension_semantics<parallel>], iteration_bounds = array<i64: 1>, scalar_prefetch = 0 : i64, scratch_operands = 0 : i64, tpu.core_type = #tpu.core_type<tc>, window_params = [{transform_indices = @transform_0, window_bounds = array<i64: 512, 128>}, {transform_indices = @transform_1, window_bounds = array<i64: 512, 128>}, {pipeline_mode = #tpu.pipeline_mode<synchronous>, transform_indices = @transform_2, window_bounds = array<i64: 1, 128>}, {pipeline_mode = #tpu.pipeline_mode<synchronous>, transform_indices = @transform_3, window_bounds = array<i64: 1, 128>}, {transform_indices = @transform_4, window_bounds = array<i64: 512, 128>}]} {
    %c0 = arith.constant 0 : index
    %c0_0 = arith.constant 0 : index
    %0 = vector.load %arg1[%c0, %c0_0] : memref<512x128xf32, #tpu.memory_space<vmem>>, vector<512x128xf32>
    %c0_1 = arith.constant 0 : index
    %c0_2 = arith.constant 0 : index
    %1 = vector.load %arg3[%c0_1, %c0_2] : memref<1x128xf32, #tpu.memory_space<vmem>>, vector<1x128xf32>
    %2 = vector.broadcast %1 : vector<1x128xf32> to vector<512x128xf32>
    %3 = arith.mulf %0, %2 : vector<512x128xf32>
    %c0_3 = arith.constant 0 : index
    %c0_4 = arith.constant 0 : index
    %4 = vector.load %arg4[%c0_3, %c0_4] : memref<1x128xf32, #tpu.memory_space<vmem>>, vector<1x128xf32>
    %5 = vector.broadcast %4 : vector<1x128xf32> to vector<512x128xf32>
    %6 = arith.addf %3, %5 : vector<512x128xf32>
    %c0_5 = arith.constant 0 : index
    %c0_6 = arith.constant 0 : index
    %7 = vector.load %arg2[%c0_5, %c0_6] : memref<512x128xf32, #tpu.memory_space<vmem>>, vector<512x128xf32>
    %8 = arith.addf %6, %7 : vector<512x128xf32>
    %cst = arith.constant 0.000000e+00 : f32
    %9 = vector.broadcast %cst : f32 to vector<512x128xf32>
    %10 = arith.maximumf %8, %9 : vector<512x128xf32>
    %c0_7 = arith.constant 0 : index
    %c0_8 = arith.constant 0 : index
    %11 = vector.load %arg5[%c0_7, %c0_8] : memref<512x128xf32, #tpu.memory_space<vmem>>, vector<512x128xf32>
    tpu.vector_store %arg5[%c0_7, %c0_8], %10 {strides = array<i32>} : memref<512x128xf32, #tpu.memory_space<vmem>>, vector<512x128xf32>,
    return
  }
  func.func @transform_0(%arg0: i32) -> (i32, i32) {
    %c0_i32 = arith.constant 0 : i32
    %c0_i32_0 = arith.constant 0 : i32
    return %arg0, %c0_i32 : i32, i32
  }
  func.func @transform_1(%arg0: i32) -> (i32, i32) {
    %c0_i32 = arith.constant 0 : i32
    %c0_i32_0 = arith.constant 0 : i32
    return %arg0, %c0_i32 : i32, i32
  }
  func.func @transform_2(%arg0: i32) -> (i32, i32) {
    %c0_i32 = arith.constant 0 : i32
    %c0_i32_0 = arith.constant 0 : i32
    %c0_i32_1 = arith.constant 0 : i32
    return %c0_i32, %c0_i32_0 : i32, i32
  }
  func.func @transform_3(%arg0: i32) -> (i32, i32) {
    %c0_i32 = arith.constant 0 : i32
    %c0_i32_0 = arith.constant 0 : i32
    %c0_i32_1 = arith.constant 0 : i32
    return %c0_i32, %c0_i32_0 : i32, i32
  }
  func.func @transform_4(%arg0: i32) -> (i32, i32) {
    %c0_i32 = arith.constant 0 : i32
    %c0_i32_0 = arith.constant 0 : i32
    return %arg0, %c0_i32 : i32, i32
  }
}

module attributes {stable_mosaic.version = 11 : i64} {
  func.func @_bn_relu_conv2_stats_kernel(%arg0: i32, %arg1: memref<256x128xf32, #tpu.memory_space<vmem>>, %arg2: memref<1x128xf32, #tpu.memory_space<vmem>>, %arg3: memref<1x128xf32, #tpu.memory_space<vmem>>, %arg4: memref<9x128x128xbf16, #tpu.memory_space<vmem>>, %arg5: memref<256x128xf32, #tpu.memory_space<vmem>>, %arg6: memref<2x128xf32, #tpu.memory_space<vmem>>, %arg7: memref<18x18x128xf32, #tpu.memory_space<vmem>>) attributes {dimension_semantics = [#tpu.dimension_semantics<arbitrary>], iteration_bounds = array<i64: 2>, scalar_prefetch = 0 : i64, scratch_operands = 1 : i64, tpu.core_type = #tpu.core_type<tc>, window_params = [{transform_indices = @transform_0, window_bounds = array<i64: 256, 128>}, {pipeline_mode = #tpu.pipeline_mode<synchronous>, transform_indices = @transform_1, window_bounds = array<i64: 1, 128>}, {pipeline_mode = #tpu.pipeline_mode<synchronous>, transform_indices = @transform_2, window_bounds = array<i64: 1, 128>}, {pipeline_mode = #tpu.pipeline_mode<synchronous>, transform_indices = @transform_3, window_bounds = array<i64: 9, 128, 128>}, {transform_indices = @transform_4, window_bounds = array<i64: 256, 128>}, {pipeline_mode = #tpu.pipeline_mode<synchronous>, transform_indices = @transform_5, window_bounds = array<i64: 2, 128>}]} {
    %c0 = arith.constant 0 : index
    %c0_0 = arith.constant 0 : index
    %0 = vector.load %arg1[%c0, %c0_0] : memref<256x128xf32, #tpu.memory_space<vmem>>, vector<256x128xf32>
    %c0_1 = arith.constant 0 : index
    %c0_2 = arith.constant 0 : index
    %1 = vector.load %arg2[%c0_1, %c0_2] : memref<1x128xf32, #tpu.memory_space<vmem>>, vector<1x128xf32>
    %2 = vector.broadcast %1 : vector<1x128xf32> to vector<256x128xf32>
    %3 = arith.mulf %0, %2 : vector<256x128xf32>
    %c0_3 = arith.constant 0 : index
    %c0_4 = arith.constant 0 : index
    %4 = vector.load %arg3[%c0_3, %c0_4] : memref<1x128xf32, #tpu.memory_space<vmem>>, vector<1x128xf32>
    %5 = vector.broadcast %4 : vector<1x128xf32> to vector<256x128xf32>
    %6 = arith.addf %3, %5 : vector<256x128xf32>
    %cst = arith.constant 0.000000e+00 : f32
    %7 = vector.broadcast %cst : f32 to vector<256x128xf32>
    %8 = arith.maximumf %6, %7 : vector<256x128xf32>
    %c0_i32 = arith.constant 0 : i32
    %9 = arith.cmpi eq, %arg0, %c0_i32 : i32
    %10 = arith.extui %9 : i1 to i32
    %c0_i32_5 = arith.constant 0 : i32
    %11 = arith.cmpi ne, %10, %c0_i32_5 : i32
    scf.if %11 {
      %cst_51 = arith.constant 0.000000e+00 : f32
      %92 = vector.broadcast %cst_51 : f32 to vector<18x18x128xf32>
      %c0_52 = arith.constant 0 : index
      %c0_53 = arith.constant 0 : index
      %c0_54 = arith.constant 0 : index
      %93 = vector.load %arg7[%c0_52, %c0_53, %c0_54] : memref<18x18x128xf32, #tpu.memory_space<vmem>>, vector<18x18x128xf32>
      tpu.vector_store %arg7[%c0_52, %c0_53, %c0_54], %92 {strides = array<i32>} : memref<18x18x128xf32, #tpu.memory_space<vmem>>, vector<18x18x128xf32>,
    } else {
    }
    %12 = vector.shape_cast %8 : vector<256x128xf32> to vector<16x16x128xf32>
    %c1 = arith.constant 1 : index
    %c1_6 = arith.constant 1 : index
    %c0_7 = arith.constant 0 : index
    %13 = vector.load %arg7[%c1, %c1_6, %c0_7] : memref<18x18x128xf32, #tpu.memory_space<vmem>>, vector<16x16x128xf32>
    tpu.vector_store %arg7[%c1, %c1_6, %c0_7], %12 {strides = array<i32>} : memref<18x18x128xf32, #tpu.memory_space<vmem>>, vector<16x16x128xf32>,
    %c0_8 = arith.constant 0 : index
    %c0_9 = arith.constant 0 : index
    %c0_10 = arith.constant 0 : index
    %14 = vector.load %arg7[%c0_8, %c0_9, %c0_10] : memref<18x18x128xf32, #tpu.memory_space<vmem>>, vector<18x18x128xf32>
    %cst_11 = arith.constant 0.000000e+00 : f32
    %15 = vector.broadcast %cst_11 : f32 to vector<256x128xf32>
    %16 = vector.extract_strided_slice %14 {offsets = [0, 0, 0], sizes = [16, 16, 128], strides = [1, 1, 1]} : vector<18x18x128xf32> to vector<16x16x128xf32>
    %17 = vector.shape_cast %16 : vector<16x16x128xf32> to vector<256x128xf32>
    %18 = arith.truncf %17 : vector<256x128xf32> to vector<256x128xbf16>
    %c0_12 = arith.constant 0 : index
    %c0_13 = arith.constant 0 : index
    %c0_14 = arith.constant 0 : index
    %19 = vector.load %arg4[%c0_12, %c0_13, %c0_14] : memref<9x128x128xbf16, #tpu.memory_space<vmem>>, vector<1x128x128xbf16>
    %20 = vector.shape_cast %19 : vector<1x128x128xbf16> to vector<128x128xbf16>
    %cst_15 = arith.constant dense<0.000000e+00> : vector<256x128xf32>
    %21 = tpu.matmul %18, %20, %cst_15 {dimension_numbers = #tpu.dot_dimension_numbers<[1], [0], [0], [1], [0, 0, 1, 1], [], []>} : vector<256x128xbf16>, vector<128x128xbf16>, vector<256x128xf32> -> vector<256x128xf32>
    %22 = arith.addf %15, %21 : vector<256x128xf32>
    %23 = vector.extract_strided_slice %14 {offsets = [0, 1, 0], sizes = [16, 16, 128], strides = [1, 1, 1]} : vector<18x18x128xf32> to vector<16x16x128xf32>
    %24 = vector.shape_cast %23 : vector<16x16x128xf32> to vector<256x128xf32>
    %25 = arith.truncf %24 : vector<256x128xf32> to vector<256x128xbf16>
    %c1_16 = arith.constant 1 : index
    %c0_17 = arith.constant 0 : index
    %c0_18 = arith.constant 0 : index
    %26 = vector.load %arg4[%c1_16, %c0_17, %c0_18] : memref<9x128x128xbf16, #tpu.memory_space<vmem>>, vector<1x128x128xbf16>
    %27 = vector.shape_cast %26 : vector<1x128x128xbf16> to vector<128x128xbf16>
    %cst_19 = arith.constant dense<0.000000e+00> : vector<256x128xf32>
    %28 = tpu.matmul %25, %27, %cst_19 {dimension_numbers = #tpu.dot_dimension_numbers<[1], [0], [0], [1], [0, 0, 1, 1], [], []>} : vector<256x128xbf16>, vector<128x128xbf16>, vector<256x128xf32> -> vector<256x128xf32>
    %29 = arith.addf %22, %28 : vector<256x128xf32>
    %30 = vector.extract_strided_slice %14 {offsets = [0, 2, 0], sizes = [16, 16, 128], strides = [1, 1, 1]} : vector<18x18x128xf32> to vector<16x16x128xf32>
    %31 = vector.shape_cast %30 : vector<16x16x128xf32> to vector<256x128xf32>
    %32 = arith.truncf %31 : vector<256x128xf32> to vector<256x128xbf16>
    %c2 = arith.constant 2 : index
    %c0_20 = arith.constant 0 : index
    %c0_21 = arith.constant 0 : index
    %33 = vector.load %arg4[%c2, %c0_20, %c0_21] : memref<9x128x128xbf16, #tpu.memory_space<vmem>>, vector<1x128x128xbf16>
    %34 = vector.shape_cast %33 : vector<1x128x128xbf16> to vector<128x128xbf16>
    %cst_22 = arith.constant dense<0.000000e+00> : vector<256x128xf32>
    %35 = tpu.matmul %32, %34, %cst_22 {dimension_numbers = #tpu.dot_dimension_numbers<[1], [0], [0], [1], [0, 0, 1, 1], [], []>} : vector<256x128xbf16>, vector<128x128xbf16>, vector<256x128xf32> -> vector<256x128xf32>
    %36 = arith.addf %29, %35 : vector<256x128xf32>
    %37 = vector.extract_strided_slice %14 {offsets = [1, 0, 0], sizes = [16, 16, 128], strides = [1, 1, 1]} : vector<18x18x128xf32> to vector<16x16x128xf32>
    %38 = vector.shape_cast %37 : vector<16x16x128xf32> to vector<256x128xf32>
    %39 = arith.truncf %38 : vector<256x128xf32> to vector<256x128xbf16>
    %c3 = arith.constant 3 : index
    %c0_23 = arith.constant 0 : index
    %c0_24 = arith.constant 0 : index
    %40 = vector.load %arg4[%c3, %c0_23, %c0_24] : memref<9x128x128xbf16, #tpu.memory_space<vmem>>, vector<1x128x128xbf16>
    %41 = vector.shape_cast %40 : vector<1x128x128xbf16> to vector<128x128xbf16>
    %cst_25 = arith.constant dense<0.000000e+00> : vector<256x128xf32>
    %42 = tpu.matmul %39, %41, %cst_25 {dimension_numbers = #tpu.dot_dimension_numbers<[1], [0], [0], [1], [0, 0, 1, 1], [], []>} : vector<256x128xbf16>, vector<128x128xbf16>, vector<256x128xf32> -> vector<256x128xf32>
    %43 = arith.addf %36, %42 : vector<256x128xf32>
    %44 = vector.extract_strided_slice %14 {offsets = [1, 1, 0], sizes = [16, 16, 128], strides = [1, 1, 1]} : vector<18x18x128xf32> to vector<16x16x128xf32>
    %45 = vector.shape_cast %44 : vector<16x16x128xf32> to vector<256x128xf32>
    %46 = arith.truncf %45 : vector<256x128xf32> to vector<256x128xbf16>
    %c4 = arith.constant 4 : index
    %c0_26 = arith.constant 0 : index
    %c0_27 = arith.constant 0 : index
    %47 = vector.load %arg4[%c4, %c0_26, %c0_27] : memref<9x128x128xbf16, #tpu.memory_space<vmem>>, vector<1x128x128xbf16>
    %48 = vector.shape_cast %47 : vector<1x128x128xbf16> to vector<128x128xbf16>
    %cst_28 = arith.constant dense<0.000000e+00> : vector<256x128xf32>
    %49 = tpu.matmul %46, %48, %cst_28 {dimension_numbers = #tpu.dot_dimension_numbers<[1], [0], [0], [1], [0, 0, 1, 1], [], []>} : vector<256x128xbf16>, vector<128x128xbf16>, vector<256x128xf32> -> vector<256x128xf32>
    %50 = arith.addf %43, %49 : vector<256x128xf32>
    %51 = vector.extract_strided_slice %14 {offsets = [1, 2, 0], sizes = [16, 16, 128], strides = [1, 1, 1]} : vector<18x18x128xf32> to vector<16x16x128xf32>
    %52 = vector.shape_cast %51 : vector<16x16x128xf32> to vector<256x128xf32>
    %53 = arith.truncf %52 : vector<256x128xf32> to vector<256x128xbf16>
    %c5 = arith.constant 5 : index
    %c0_29 = arith.constant 0 : index
    %c0_30 = arith.constant 0 : index
    %54 = vector.load %arg4[%c5, %c0_29, %c0_30] : memref<9x128x128xbf16, #tpu.memory_space<vmem>>, vector<1x128x128xbf16>
    %55 = vector.shape_cast %54 : vector<1x128x128xbf16> to vector<128x128xbf16>
    %cst_31 = arith.constant dense<0.000000e+00> : vector<256x128xf32>
    %56 = tpu.matmul %53, %55, %cst_31 {dimension_numbers = #tpu.dot_dimension_numbers<[1], [0], [0], [1], [0, 0, 1, 1], [], []>} : vector<256x128xbf16>, vector<128x128xbf16>, vector<256x128xf32> -> vector<256x128xf32>
    %57 = arith.addf %50, %56 : vector<256x128xf32>
    %58 = vector.extract_strided_slice %14 {offsets = [2, 0, 0], sizes = [16, 16, 128], strides = [1, 1, 1]} : vector<18x18x128xf32> to vector<16x16x128xf32>
    %59 = vector.shape_cast %58 : vector<16x16x128xf32> to vector<256x128xf32>
    %60 = arith.truncf %59 : vector<256x128xf32> to vector<256x128xbf16>
    %c6 = arith.constant 6 : index
    %c0_32 = arith.constant 0 : index
    %c0_33 = arith.constant 0 : index
    %61 = vector.load %arg4[%c6, %c0_32, %c0_33] : memref<9x128x128xbf16, #tpu.memory_space<vmem>>, vector<1x128x128xbf16>
    %62 = vector.shape_cast %61 : vector<1x128x128xbf16> to vector<128x128xbf16>
    %cst_34 = arith.constant dense<0.000000e+00> : vector<256x128xf32>
    %63 = tpu.matmul %60, %62, %cst_34 {dimension_numbers = #tpu.dot_dimension_numbers<[1], [0], [0], [1], [0, 0, 1, 1], [], []>} : vector<256x128xbf16>, vector<128x128xbf16>, vector<256x128xf32> -> vector<256x128xf32>
    %64 = arith.addf %57, %63 : vector<256x128xf32>
    %65 = vector.extract_strided_slice %14 {offsets = [2, 1, 0], sizes = [16, 16, 128], strides = [1, 1, 1]} : vector<18x18x128xf32> to vector<16x16x128xf32>
    %66 = vector.shape_cast %65 : vector<16x16x128xf32> to vector<256x128xf32>
    %67 = arith.truncf %66 : vector<256x128xf32> to vector<256x128xbf16>
    %c7 = arith.constant 7 : index
    %c0_35 = arith.constant 0 : index
    %c0_36 = arith.constant 0 : index
    %68 = vector.load %arg4[%c7, %c0_35, %c0_36] : memref<9x128x128xbf16, #tpu.memory_space<vmem>>, vector<1x128x128xbf16>
    %69 = vector.shape_cast %68 : vector<1x128x128xbf16> to vector<128x128xbf16>
    %cst_37 = arith.constant dense<0.000000e+00> : vector<256x128xf32>
    %70 = tpu.matmul %67, %69, %cst_37 {dimension_numbers = #tpu.dot_dimension_numbers<[1], [0], [0], [1], [0, 0, 1, 1], [], []>} : vector<256x128xbf16>, vector<128x128xbf16>, vector<256x128xf32> -> vector<256x128xf32>
    %71 = arith.addf %64, %70 : vector<256x128xf32>
    %72 = vector.extract_strided_slice %14 {offsets = [2, 2, 0], sizes = [16, 16, 128], strides = [1, 1, 1]} : vector<18x18x128xf32> to vector<16x16x128xf32>
    %73 = vector.shape_cast %72 : vector<16x16x128xf32> to vector<256x128xf32>
    %74 = arith.truncf %73 : vector<256x128xf32> to vector<256x128xbf16>
    %c8 = arith.constant 8 : index
    %c0_38 = arith.constant 0 : index
    %c0_39 = arith.constant 0 : index
    %75 = vector.load %arg4[%c8, %c0_38, %c0_39] : memref<9x128x128xbf16, #tpu.memory_space<vmem>>, vector<1x128x128xbf16>
    %76 = vector.shape_cast %75 : vector<1x128x128xbf16> to vector<128x128xbf16>
    %cst_40 = arith.constant dense<0.000000e+00> : vector<256x128xf32>
    %77 = tpu.matmul %74, %76, %cst_40 {dimension_numbers = #tpu.dot_dimension_numbers<[1], [0], [0], [1], [0, 0, 1, 1], [], []>} : vector<256x128xbf16>, vector<128x128xbf16>, vector<256x128xf32> -> vector<256x128xf32>
    %78 = arith.addf %71, %77 : vector<256x128xf32>
    %c0_41 = arith.constant 0 : index
    %c0_42 = arith.constant 0 : index
    %79 = vector.load %arg5[%c0_41, %c0_42] : memref<256x128xf32, #tpu.memory_space<vmem>>, vector<256x128xf32>
    tpu.vector_store %arg5[%c0_41, %c0_42], %78 {strides = array<i32>} : memref<256x128xf32, #tpu.memory_space<vmem>>, vector<256x128xf32>,
    %c0_i32_43 = arith.constant 0 : i32
    %80 = arith.cmpi eq, %arg0, %c0_i32_43 : i32
    %81 = arith.extui %80 : i1 to i32
    %c0_i32_44 = arith.constant 0 : i32
    %82 = arith.cmpi ne, %81, %c0_i32_44 : i32
    scf.if %82 {
      %cst_51 = arith.constant 0.000000e+00 : f32
      %92 = vector.broadcast %cst_51 : f32 to vector<2x128xf32>
      %c0_52 = arith.constant 0 : index
      %c0_53 = arith.constant 0 : index
      %93 = vector.load %arg6[%c0_52, %c0_53] : memref<2x128xf32, #tpu.memory_space<vmem>>, vector<2x128xf32>
      tpu.vector_store %arg6[%c0_52, %c0_53], %92 {strides = array<i32>} : memref<2x128xf32, #tpu.memory_space<vmem>>, vector<2x128xf32>,
    } else {
    }
    %c0_45 = arith.constant 0 : index
    %c0_46 = arith.constant 0 : index
    %83 = vector.load %arg6[%c0_45, %c0_46] : memref<2x128xf32, #tpu.memory_space<vmem>>, vector<2x128xf32>
    %cst_47 = arith.constant dense<0.000000e+00> : vector<128xf32>
    %84 = vector.multi_reduction <add>, %78, %cst_47 [0] : vector<256x128xf32> to vector<128xf32>
    %85 = vector.shape_cast %84 : vector<128xf32> to vector<1x128xf32>
    %86 = arith.mulf %78, %78 : vector<256x128xf32>
    %cst_48 = arith.constant dense<0.000000e+00> : vector<128xf32>
    %87 = vector.multi_reduction <add>, %86, %cst_48 [0] : vector<256x128xf32> to vector<128xf32>
    %88 = vector.shape_cast %87 : vector<128xf32> to vector<1x128xf32>
    %89 = tpu.concatenate %85, %88 in 0 : vector<1x128xf32>, vector<1x128xf32> -> vector<2x128xf32>
    %90 = arith.addf %83, %89 : vector<2x128xf32>
    %c0_49 = arith.constant 0 : index
    %c0_50 = arith.constant 0 : index
    %91 = vector.load %arg6[%c0_49, %c0_50] : memref<2x128xf32, #tpu.memory_space<vmem>>, vector<2x128xf32>
    tpu.vector_store %arg6[%c0_49, %c0_50], %90 {strides = array<i32>} : memref<2x128xf32, #tpu.memory_space<vmem>>, vector<2x128xf32>,
    return
  }
  func.func @transform_0(%arg0: i32) -> (i32, i32) {
    %c0_i32 = arith.constant 0 : i32
    %c0_i32_0 = arith.constant 0 : i32
    return %arg0, %c0_i32 : i32, i32
  }
  func.func @transform_1(%arg0: i32) -> (i32, i32) {
    %c0_i32 = arith.constant 0 : i32
    %c0_i32_0 = arith.constant 0 : i32
    %c0_i32_1 = arith.constant 0 : i32
    return %c0_i32, %c0_i32_0 : i32, i32
  }
  func.func @transform_2(%arg0: i32) -> (i32, i32) {
    %c0_i32 = arith.constant 0 : i32
    %c0_i32_0 = arith.constant 0 : i32
    %c0_i32_1 = arith.constant 0 : i32
    return %c0_i32, %c0_i32_0 : i32, i32
  }
  func.func @transform_3(%arg0: i32) -> (i32, i32, i32) {
    %c0_i32 = arith.constant 0 : i32
    %c0_i32_0 = arith.constant 0 : i32
    %c0_i32_1 = arith.constant 0 : i32
    %c0_i32_2 = arith.constant 0 : i32
    return %c0_i32, %c0_i32_0, %c0_i32_1 : i32, i32, i32
  }
  func.func @transform_4(%arg0: i32) -> (i32, i32) {
    %c0_i32 = arith.constant 0 : i32
    %c0_i32_0 = arith.constant 0 : i32
    return %arg0, %c0_i32 : i32, i32
  }
  func.func @transform_5(%arg0: i32) -> (i32, i32) {
    %c0_i32 = arith.constant 0 : i32
    %c0_i32_0 = arith.constant 0 : i32
    %c0_i32_1 = arith.constant 0 : i32
    return %c0_i32, %c0_i32_0 : i32, i32
  }
}

</mosaic_0001>

<llo_original>
// kernel: basic_block_forward.5
$region0: #{basic_block_forward.5}
  #allocation0 [shape = 'u32[]', space=smem, size = 0x4, offset = 0x4, fixed_abs, tag = 'smem constant byte address 0x4 - core index']
  #allocation1 [shape = 'u32[72,128]{1,0:T(1,128)}', space=vmem, size = 0x9000, scoped, tag = 'internal scratch']
  %s0 = inlined_call_operand.vmem [shape: f32[512,128], index: 0, kind: input, shape index: {}]
  %s1 = inlined_call_operand.vmem [shape: f32[512,128], index: 1, kind: input, shape index: {}]
  %s2 = inlined_call_operand.vmem [shape: f32[1,128], index: 2, kind: input, shape index: {}]
  %s3 = inlined_call_operand.vmem [shape: f32[1,128], index: 3, kind: input, shape index: {}]
  %s4 = inlined_call_operand.vmem [shape: f32[512,128], index: 4, kind: output, shape index: {}]
  %s5 = sld [smem:[#allocation0]]
  $region26: #{basic_block_forward.5} parent=0
    _
  %s7 = ssub.s32 1, %s5
  %s8 = scalar_select 0, %s7, %s5
  // Predicated region
  $region2: #{basic_block_forward.5} parent=0 // pred_check
    _
  $region3: #{basic_block_forward.5} parent=0 // pred_check_branch
    %10 = sbr.rel (0) target = $region5
  $region4: #{basic_block_forward.5} parent=0 // pred_region
    _
  $region5: #{basic_block_forward.5} parent=0 // pred_fallthru
    _
  // Predicated region
  $region6: #{basic_block_forward.5} parent=0 // pred_check
    _
  $region7: #{basic_block_forward.5} parent=0 // pred_check_branch
    %12 = sbr.rel (0) target = $region9
  $region8: #{basic_block_forward.5} parent=0 // pred_region
    _
  $region9: #{basic_block_forward.5} parent=0 // pred_fallthru
    _
  // Predicated region
  $region10: #{basic_block_forward.5} parent=0 // pred_check
    _
  $region11: #{basic_block_forward.5} parent=0 // pred_check_branch
    %14 = sbr.rel (0) target = $region13
  $region12: #{basic_block_forward.5} parent=0 // pred_region
    _
  $region13: #{basic_block_forward.5} parent=0 // pred_fallthru
    _
  // Predicated region
  $region14: #{basic_block_forward.5} parent=0 // pred_check
    _
  $region15: #{basic_block_forward.5} parent=0 // pred_check_branch
    %16 = sbr.rel (0) target = $region17
  $region16: #{basic_block_forward.5} parent=0 // pred_region
    _
  $region17: #{basic_block_forward.5} parent=0 // pred_fallthru
    _
  %v17 = vld [vmem:[%s0] sm:$0xff]
  %v18 = vld [vmem:[%s0 + $0x8] sm:$0xff]
  %v19 = vld [vmem:[%s0 + $0x10] sm:$0xff]
  %v20 = vld [vmem:[%s0 + $0x18] sm:$0xff]
  %v21 = vld [vmem:[%s0 + $0x20] sm:$0xff]
  %v22 = vld [vmem:[%s0 + $0x28] sm:$0xff]
  %v23 = vld [vmem:[%s0 + $0x30] sm:$0xff]
  %v24 = vld [vmem:[%s0 + $0x38] sm:$0xff]
  %v25 = vld [vmem:[%s0 + $0x40] sm:$0xff]
  %v26 = vld [vmem:[%s0 + $0x48] sm:$0xff]
  %v27 = vld [vmem:[%s0 + $0x50] sm:$0xff]
  %v28 = vld [vmem:[%s0 + $0x58] sm:$0xff]
  %v29 = vld [vmem:[%s0 + $0x60] sm:$0xff]
  %v30 = vld [vmem:[%s0 + $0x68] sm:$0xff]
  %v31 = vld [vmem:[%s0 + $0x70] sm:$0xff]
  %v32 = vld [vmem:[%s0 + $0x78] sm:$0xff]
  %v33 = vld [vmem:[%s0 + $0x80] sm:$0xff]
  %v34 = vld [vmem:[%s0 + $0x88] sm:$0xff]
  %v35 = vld [vmem:[%s0 + $0x90] sm:$0xff]
  %v36 = vld [vmem:[%s0 + $0x98] sm:$0xff]
  %v37 = vld [vmem:[%s0 + $0xa0] sm:$0xff]
  %v38 = vld [vmem:[%s0 + $0xa8] sm:$0xff]
  %v39 = vld [vmem:[%s0 + $0xb0] sm:$0xff]
  %v40 = vld [vmem:[%s0 + $0xb8] sm:$0xff]
  %v41 = vld [vmem:[%s0 + $0xc0] sm:$0xff]
  %v42 = vld [vmem:[%s0 + $0xc8] sm:$0xff]
  %v43 = vld [vmem:[%s0 + $0xd0] sm:$0xff]
  %v44 = vld [vmem:[%s0 + $0xd8] sm:$0xff]
  %v45 = vld [vmem:[%s0 + $0xe0] sm:$0xff]
  %v46 = vld [vmem:[%s0 + $0xe8] sm:$0xff]
  %v47 = vld [vmem:[%s0 + $0xf0] sm:$0xff]
  %v48 = vld [vmem:[%s0 + $0xf8] sm:$0xff]
  %v49 = vld [vmem:[%s0 + $0x100] sm:$0xff]
  %v50 = vld [vmem:[%s0 + $0x108] sm:$0xff]
  %v51 = vld [vmem:[%s0 + $0x110] sm:$0xff]
  %v52 = vld [vmem:[%s0 + $0x118] sm:$0xff]
  %v53 = vld [vmem:[%s0 + $0x120] sm:$0xff]
  %v54 = vld [vmem:[%s0 + $0x128] sm:$0xff]
  %v55 = vld [vmem:[%s0 + $0x130] sm:$0xff]
  %v56 = vld [vmem:[%s0 + $0x138] sm:$0xff]
  %v57 = vld [vmem:[%s0 + $0x140] sm:$0xff]
  %v58 = vld [vmem:[%s0 + $0x148] sm:$0xff]
  %v59 = vld [vmem:[%s0 + $0x150] sm:$0xff]
  %v60 = vld [vmem:[%s0 + $0x158] sm:$0xff]
  %v61 = vld [vmem:[%s0 + $0x160] sm:$0xff]
  %v62 = vld [vmem:[%s0 + $0x168] sm:$0xff]
  %v63 = vld [vmem:[%s0 + $0x170] sm:$0xff]
  %v64 = vld [vmem:[%s0 + $0x178] sm:$0xff]
  %v65 = vld [vmem:[%s0 + $0x180] sm:$0xff]
  %v66 = vld [vmem:[%s0 + $0x188] sm:$0xff]
  %v67 = vld [vmem:[%s0 + $0x190] sm:$0xff]
  %v68 = vld [vmem:[%s0 + $0x198] sm:$0xff]
  %v69 = vld [vmem:[%s0 + $0x1a0] sm:$0xff]
  %v70 = vld [vmem:[%s0 + $0x1a8] sm:$0xff]
  %v71 = vld [vmem:[%s0 + $0x1b0] sm:$0xff]
  %v72 = vld [vmem:[%s0 + $0x1b8] sm:$0xff]
  %v73 = vld [vmem:[%s0 + $0x1c0] sm:$0xff]
  %v74 = vld [vmem:[%s0 + $0x1c8] sm:$0xff]
  %v75 = vld [vmem:[%s0 + $0x1d0] sm:$0xff]
  %v76 = vld [vmem:[%s0 + $0x1d8] sm:$0xff]
  %v77 = vld [vmem:[%s0 + $0x1e0] sm:$0xff]
  %v78 = vld [vmem:[%s0 + $0x1e8] sm:$0xff]
  %v79 = vld [vmem:[%s0 + $0x1f0] sm:$0xff]
  %v80 = vld [vmem:[%s0 + $0x1f8] sm:$0xff]
  %v81 = vld [vmem:[%s2] sm:$0x1]
  %v83 = vperm.slane %v81, 0
  %v85 = vmul.f32 %v17, %v83
  %v86 = vmul.f32 %v18, %v83
  %v87 = vmul.f32 %v19, %v83
  %v88 = vmul.f32 %v20, %v83
  %v89 = vmul.f32 %v21, %v83
  %v90 = vmul.f32 %v22, %v83
  %v91 = vmul.f32 %v23, %v83
  %v92 = vmul.f32 %v24, %v83
  %v93 = vmul.f32 %v25, %v83
  %v94 = vmul.f32 %v26, %v83
  %v95 = vmul.f32 %v27, %v83
  %v96 = vmul.f32 %v28, %v83
  %v97 = vmul.f32 %v29, %v83
  %v98 = vmul.f32 %v30, %v83
  %v99 = vmul.f32 %v31, %v83
  %v100 = vmul.f32 %v32, %v83
  %v101 = vmul.f32 %v33, %v83
  %v102 = vmul.f32 %v34, %v83
  %v103 = vmul.f32 %v35, %v83
  %v104 = vmul.f32 %v36, %v83
  %v105 = vmul.f32 %v37, %v83
  %v106 = vmul.f32 %v38, %v83
  %v107 = vmul.f32 %v39, %v83
  %v108 = vmul.f32 %v40, %v83
  %v109 = vmul.f32 %v41, %v83
  %v110 = vmul.f32 %v42, %v83
  %v111 = vmul.f32 %v43, %v83
  %v112 = vmul.f32 %v44, %v83
  %v113 = vmul.f32 %v45, %v83
  %v114 = vmul.f32 %v46, %v83
  %v115 = vmul.f32 %v47, %v83
  %v116 = vmul.f32 %v48, %v83
  %v117 = vmul.f32 %v49, %v83
  %v118 = vmul.f32 %v50, %v83
  %v119 = vmul.f32 %v51, %v83
  %v120 = vmul.f32 %v52, %v83
  %v121 = vmul.f32 %v53, %v83
  %v122 = vmul.f32 %v54, %v83
  %v123 = vmul.f32 %v55, %v83
  %v124 = vmul.f32 %v56, %v83
  %v125 = vmul.f32 %v57, %v83
  %v126 = vmul.f32 %v58, %v83
  %v127 = vmul.f32 %v59, %v83
  %v128 = vmul.f32 %v60, %v83
  %v129 = vmul.f32 %v61, %v83
  %v130 = vmul.f32 %v62, %v83
  %v131 = vmul.f32 %v63, %v83
  %v132 = vmul.f32 %v64, %v83
  %v133 = vmul.f32 %v65, %v83
  %v134 = vmul.f32 %v66, %v83
  %v135 = vmul.f32 %v67, %v83
  %v136 = vmul.f32 %v68, %v83
  %v137 = vmul.f32 %v69, %v83
  %v138 = vmul.f32 %v70, %v83
  %v139 = vmul.f32 %v71, %v83
  %v140 = vmul.f32 %v72, %v83
  %v141 = vmul.f32 %v73, %v83
  %v142 = vmul.f32 %v74, %v83
  %v143 = vmul.f32 %v75, %v83
  %v144 = vmul.f32 %v76, %v83
  %v145 = vmul.f32 %v77, %v83
  %v146 = vmul.f32 %v78, %v83
  %v147 = vmul.f32 %v79, %v83
  %v148 = vmul.f32 %v80, %v83
  %v149 = vld [vmem:[%s3] sm:$0x1]
  %v151 = vperm.slane %v149, 0
  %v153 = vadd.f32 %v85, %v151
  %v154 = vadd.f32 %v86, %v151
  %v155 = vadd.f32 %v87, %v151
  %v156 = vadd.f32 %v88, %v151
  %v157 = vadd.f32 %v89, %v151
  %v158 = vadd.f32 %v90, %v151
  %v159 = vadd.f32 %v91, %v151
  %v160 = vadd.f32 %v92, %v151
  %v161 = vadd.f32 %v93, %v151
  %v162 = vadd.f32 %v94, %v151
  %v163 = vadd.f32 %v95, %v151
  %v164 = vadd.f32 %v96, %v151
  %v165 = vadd.f32 %v97, %v151
  %v166 = vadd.f32 %v98, %v151
  %v167 = vadd.f32 %v99, %v151
  %v168 = vadd.f32 %v100, %v151
  %v169 = vadd.f32 %v101, %v151
  %v170 = vadd.f32 %v102, %v151
  %v171 = vadd.f32 %v103, %v151
  %v172 = vadd.f32 %v104, %v151
  %v173 = vadd.f32 %v105, %v151
  %v174 = vadd.f32 %v106, %v151
  %v175 = vadd.f32 %v107, %v151
  %v176 = vadd.f32 %v108, %v151
  %v177 = vadd.f32 %v109, %v151
  %v178 = vadd.f32 %v110, %v151
  %v179 = vadd.f32 %v111, %v151
  %v180 = vadd.f32 %v112, %v151
  %v181 = vadd.f32 %v113, %v151
  %v182 = vadd.f32 %v114, %v151
  %v183 = vadd.f32 %v115, %v151
  %v184 = vadd.f32 %v116, %v151
  %v185 = vadd.f32 %v117, %v151
  %v186 = vadd.f32 %v118, %v151
  %v187 = vadd.f32 %v119, %v151
  %v188 = vadd.f32 %v120, %v151
  %v189 = vadd.f32 %v121, %v151
  %v190 = vadd.f32 %v122, %v151
  %v191 = vadd.f32 %v123, %v151
  %v192 = vadd.f32 %v124, %v151
  %v193 = vadd.f32 %v125, %v151
  %v194 = vadd.f32 %v126, %v151
  %v195 = vadd.f32 %v127, %v151
  %v196 = vadd.f32 %v128, %v151
  %v197 = vadd.f32 %v129, %v151
  %v198 = vadd.f32 %v130, %v151
  %v199 = vadd.f32 %v131, %v151
  %v200 = vadd.f32 %v132, %v151
  %v201 = vadd.f32 %v133, %v151
  %v202 = vadd.f32 %v134, %v151
  %v203 = vadd.f32 %v135, %v151
  %v204 = vadd.f32 %v136, %v151
  %v205 = vadd.f32 %v137, %v151
  %v206 = vadd.f32 %v138, %v151
  %v207 = vadd.f32 %v139, %v151
  %v208 = vadd.f32 %v140, %v151
  %v209 = vadd.f32 %v141, %v151
  %v210 = vadd.f32 %v142, %v151
  %v211 = vadd.f32 %v143, %v151
  %v212 = vadd.f32 %v144, %v151
  %v213 = vadd.f32 %v145, %v151
  %v214 = vadd.f32 %v146, %v151
  %v215 = vadd.f32 %v147, %v151
  %v216 = vadd.f32 %v148, %v151
  %v217 = vld [vmem:[%s1] sm:$0xff]
  %v218 = vld [vmem:[%s1 + $0x8] sm:$0xff]
  %v219 = vld [vmem:[%s1 + $0x10] sm:$0xff]
  %v220 = vld [vmem:[%s1 + $0x18] sm:$0xff]
  %v221 = vld [vmem:[%s1 + $0x20] sm:$0xff]
  %v222 = vld [vmem:[%s1 + $0x28] sm:$0xff]
  %v223 = vld [vmem:[%s1 + $0x30] sm:$0xff]
  %v224 = vld [vmem:[%s1 + $0x38] sm:$0xff]
  %v225 = vld [vmem:[%s1 + $0x40] sm:$0xff]
  %v226 = vld [vmem:[%s1 + $0x48] sm:$0xff]
  %v227 = vld [vmem:[%s1 + $0x50] sm:$0xff]
  %v228 = vld [vmem:[%s1 + $0x58] sm:$0xff]
  %v229 = vld [vmem:[%s1 + $0x60] sm:$0xff]
  %v230 = vld [vmem:[%s1 + $0x68] sm:$0xff]
  %v231 = vld [vmem:[%s1 + $0x70] sm:$0xff]
  %v232 = vld [vmem:[%s1 + $0x78] sm:$0xff]
  %v233 = vld [vmem:[%s1 + $0x80] sm:$0xff]
  %v234 = vld [vmem:[%s1 + $0x88] sm:$0xff]
  %v235 = vld [vmem:[%s1 + $0x90] sm:$0xff]
  %v236 = vld [vmem:[%s1 + $0x98] sm:$0xff]
  %v237 = vld [vmem:[%s1 + $0xa0] sm:$0xff]
  %v238 = vld [vmem:[%s1 + $0xa8] sm:$0xff]
  %v239 = vld [vmem:[%s1 + $0xb0] sm:$0xff]
  %v240 = vld [vmem:[%s1 + $0xb8] sm:$0xff]
  %v241 = vld [vmem:[%s1 + $0xc0] sm:$0xff]
  %v242 = vld [vmem:[%s1 + $0xc8] sm:$0xff]
  %v243 = vld [vmem:[%s1 + $0xd0] sm:$0xff]
  %v244 = vld [vmem:[%s1 + $0xd8] sm:$0xff]
  %v245 = vld [vmem:[%s1 + $0xe0] sm:$0xff]
  %v246 = vld [vmem:[%s1 + $0xe8] sm:$0xff]
  %v247 = vld [vmem:[%s1 + $0xf0] sm:$0xff]
  %v248 = vld [vmem:[%s1 + $0xf8] sm:$0xff]
  %v249 = vld [vmem:[%s1 + $0x100] sm:$0xff]
  %v250 = vld [vmem:[%s1 + $0x108] sm:$0xff]
  %v251 = vld [vmem:[%s1 + $0x110] sm:$0xff]
  %v252 = vld [vmem:[%s1 + $0x118] sm:$0xff]
  %v253 = vld [vmem:[%s1 + $0x120] sm:$0xff]
  %v254 = vld [vmem:[%s1 + $0x128] sm:$0xff]
  %v255 = vld [vmem:[%s1 + $0x130] sm:$0xff]
  %v256 = vld [vmem:[%s1 + $0x138] sm:$0xff]
  %v257 = vld [vmem:[%s1 + $0x140] sm:$0xff]
  %v258 = vld [vmem:[%s1 + $0x148] sm:$0xff]
  %v259 = vld [vmem:[%s1 + $0x150] sm:$0xff]
  %v260 = vld [vmem:[%s1 + $0x158] sm:$0xff]
  %v261 = vld [vmem:[%s1 + $0x160] sm:$0xff]
  %v262 = vld [vmem:[%s1 + $0x168] sm:$0xff]
  %v263 = vld [vmem:[%s1 + $0x170] sm:$0xff]
  %v264 = vld [vmem:[%s1 + $0x178] sm:$0xff]
  %v265 = vld [vmem:[%s1 + $0x180] sm:$0xff]
  %v266 = vld [vmem:[%s1 + $0x188] sm:$0xff]
  %v267 = vld [vmem:[%s1 + $0x190] sm:$0xff]
  %v268 = vld [vmem:[%s1 + $0x198] sm:$0xff]
  %v269 = vld [vmem:[%s1 + $0x1a0] sm:$0xff]
  %v270 = vld [vmem:[%s1 + $0x1a8] sm:$0xff]
  %v271 = vld [vmem:[%s1 + $0x1b0] sm:$0xff]
  %v272 = vld [vmem:[%s1 + $0x1b8] sm:$0xff]
  %v273 = vld [vmem:[%s1 + $0x1c0] sm:$0xff]
  %v274 = vld [vmem:[%s1 + $0x1c8] sm:$0xff]
  %v275 = vld [vmem:[%s1 + $0x1d0] sm:$0xff]
  %v276 = vld [vmem:[%s1 + $0x1d8] sm:$0xff]
  %v277 = vld [vmem:[%s1 + $0x1e0] sm:$0xff]
  %v278 = vld [vmem:[%s1 + $0x1e8] sm:$0xff]
  %v279 = vld [vmem:[%s1 + $0x1f0] sm:$0xff]
  %v280 = vld [vmem:[%s1 + $0x1f8] sm:$0xff]
  %v281 = vadd.f32 %v153, %v217
  %v282 = vadd.f32 %v154, %v218
  %v283 = vadd.f32 %v155, %v219
  %v284 = vadd.f32 %v156, %v220
  %v285 = vadd.f32 %v157, %v221
  %v286 = vadd.f32 %v158, %v222
  %v287 = vadd.f32 %v159, %v223
  %v288 = vadd.f32 %v160, %v224
  %v289 = vadd.f32 %v161, %v225
  %v290 = vadd.f32 %v162, %v226
  %v291 = vadd.f32 %v163, %v227
  %v292 = vadd.f32 %v164, %v228
  %v293 = vadd.f32 %v165, %v229
  %v294 = vadd.f32 %v166, %v230
  %v295 = vadd.f32 %v167, %v231
  %v296 = vadd.f32 %v168, %v232
  %v297 = vadd.f32 %v169, %v233
  %v298 = vadd.f32 %v170, %v234
  %v299 = vadd.f32 %v171, %v235
  %v300 = vadd.f32 %v172, %v236
  %v301 = vadd.f32 %v173, %v237
  %v302 = vadd.f32 %v174, %v238
  %v303 = vadd.f32 %v175, %v239
  %v304 = vadd.f32 %v176, %v240
  %v305 = vadd.f32 %v177, %v241
  %v306 = vadd.f32 %v178, %v242
  %v307 = vadd.f32 %v179, %v243
  %v308 = vadd.f32 %v180, %v244
  %v309 = vadd.f32 %v181, %v245
  %v310 = vadd.f32 %v182, %v246
  %v311 = vadd.f32 %v183, %v247
  %v312 = vadd.f32 %v184, %v248
  %v313 = vadd.f32 %v185, %v249
  %v314 = vadd.f32 %v186, %v250
  %v315 = vadd.f32 %v187, %v251
  %v316 = vadd.f32 %v188, %v252
  %v317 = vadd.f32 %v189, %v253
  %v318 = vadd.f32 %v190, %v254
  %v319 = vadd.f32 %v191, %v255
  %v320 = vadd.f32 %v192, %v256
  %v321 = vadd.f32 %v193, %v257
  %v322 = vadd.f32 %v194, %v258
  %v323 = vadd.f32 %v195, %v259
  %v324 = vadd.f32 %v196, %v260
  %v325 = vadd.f32 %v197, %v261
  %v326 = vadd.f32 %v198, %v262
  %v327 = vadd.f32 %v199, %v263
  %v328 = vadd.f32 %v200, %v264
  %v329 = vadd.f32 %v201, %v265
  %v330 = vadd.f32 %v202, %v266
  %v331 = vadd.f32 %v203, %v267
  %v332 = vadd.f32 %v204, %v268
  %v333 = vadd.f32 %v205, %v269
  %v334 = vadd.f32 %v206, %v270
  %v335 = vadd.f32 %v207, %v271
  %v336 = vadd.f32 %v208, %v272
  %v337 = vadd.f32 %v209, %v273
  %v338 = vadd.f32 %v210, %v274
  %v339 = vadd.f32 %v211, %v275
  %v340 = vadd.f32 %v212, %v276
  %v341 = vadd.f32 %v213, %v277
  %v342 = vadd.f32 %v214, %v278
  %v343 = vadd.f32 %v215, %v279
  %v344 = vadd.f32 %v216, %v280
  %v345 = vmax.f32 %v281, 0.0
  %v346 = vmax.f32 %v282, 0.0
  %v347 = vmax.f32 %v283, 0.0
  %v348 = vmax.f32 %v284, 0.0
  %v349 = vmax.f32 %v285, 0.0
  %v350 = vmax.f32 %v286, 0.0
  %v351 = vmax.f32 %v287, 0.0
  %v352 = vmax.f32 %v288, 0.0
  %v353 = vmax.f32 %v289, 0.0
  %v354 = vmax.f32 %v290, 0.0
  %v355 = vmax.f32 %v291, 0.0
  %v356 = vmax.f32 %v292, 0.0
  %v357 = vmax.f32 %v293, 0.0
  %v358 = vmax.f32 %v294, 0.0
  %v359 = vmax.f32 %v295, 0.0
  %v360 = vmax.f32 %v296, 0.0
  %v361 = vmax.f32 %v297, 0.0
  %v362 = vmax.f32 %v298, 0.0
  %v363 = vmax.f32 %v299, 0.0
  %v364 = vmax.f32 %v300, 0.0
  %v365 = vmax.f32 %v301, 0.0
  %v366 = vmax.f32 %v302, 0.0
  %v367 = vmax.f32 %v303, 0.0
  %v368 = vmax.f32 %v304, 0.0
  %v369 = vmax.f32 %v305, 0.0
  %v370 = vmax.f32 %v306, 0.0
  %v371 = vmax.f32 %v307, 0.0
  %v372 = vmax.f32 %v308, 0.0
  %v373 = vmax.f32 %v309, 0.0
  %v374 = vmax.f32 %v310, 0.0
  %v375 = vmax.f32 %v311, 0.0
  %v376 = vmax.f32 %v312, 0.0
  %v377 = vmax.f32 %v313, 0.0
  %v378 = vmax.f32 %v314, 0.0
  %v379 = vmax.f32 %v315, 0.0
  %v380 = vmax.f32 %v316, 0.0
  %v381 = vmax.f32 %v317, 0.0
  %v382 = vmax.f32 %v318, 0.0
  %v383 = vmax.f32 %v319, 0.0
  %v384 = vmax.f32 %v320, 0.0
  %v385 = vmax.f32 %v321, 0.0
  %v386 = vmax.f32 %v322, 0.0
  %v387 = vmax.f32 %v323, 0.0
  %v388 = vmax.f32 %v324, 0.0
  %v389 = vmax.f32 %v325, 0.0
  %v390 = vmax.f32 %v326, 0.0
  %v391 = vmax.f32 %v327, 0.0
  %v392 = vmax.f32 %v328, 0.0
  %v393 = vmax.f32 %v329, 0.0
  %v394 = vmax.f32 %v330, 0.0
  %v395 = vmax.f32 %v331, 0.0
  %v396 = vmax.f32 %v332, 0.0
  %v397 = vmax.f32 %v333, 0.0
  %v398 = vmax.f32 %v334, 0.0
  %v399 = vmax.f32 %v335, 0.0
  %v400 = vmax.f32 %v336, 0.0
  %v401 = vmax.f32 %v337, 0.0
  %v402 = vmax.f32 %v338, 0.0
  %v403 = vmax.f32 %v339, 0.0
  %v404 = vmax.f32 %v340, 0.0
  %v405 = vmax.f32 %v341, 0.0
  %v406 = vmax.f32 %v342, 0.0
  %v407 = vmax.f32 %v343, 0.0
  %v408 = vmax.f32 %v344, 0.0
  %409 = vst [vmem:[%s4] sm:$0xff] %v345
  %410 = vst [vmem:[%s4 + $0x8] sm:$0xff] %v346
  %411 = vst [vmem:[%s4 + $0x10] sm:$0xff] %v347
  %412 = vst [vmem:[%s4 + $0x18] sm:$0xff] %v348
  %413 = vst [vmem:[%s4 + $0x20] sm:$0xff] %v349
  %414 = vst [vmem:[%s4 + $0x28] sm:$0xff] %v350
  %415 = vst [vmem:[%s4 + $0x30] sm:$0xff] %v351
  %416 = vst [vmem:[%s4 + $0x38] sm:$0xff] %v352
  %417 = vst [vmem:[%s4 + $0x40] sm:$0xff] %v353
  %418 = vst [vmem:[%s4 + $0x48] sm:$0xff] %v354
  %419 = vst [vmem:[%s4 + $0x50] sm:$0xff] %v355
  %420 = vst [vmem:[%s4 + $0x58] sm:$0xff] %v356
  %421 = vst [vmem:[%s4 + $0x60] sm:$0xff] %v357
  %422 = vst [vmem:[%s4 + $0x68] sm:$0xff] %v358
  %423 = vst [vmem:[%s4 + $0x70] sm:$0xff] %v359
  %424 = vst [vmem:[%s4 + $0x78] sm:$0xff] %v360
  %425 = vst [vmem:[%s4 + $0x80] sm:$0xff] %v361
  %426 = vst [vmem:[%s4 + $0x88] sm:$0xff] %v362
  %427 = vst [vmem:[%s4 + $0x90] sm:$0xff] %v363
  %428 = vst [vmem:[%s4 + $0x98] sm:$0xff] %v364
  %429 = vst [vmem:[%s4 + $0xa0] sm:$0xff] %v365
  %430 = vst [vmem:[%s4 + $0xa8] sm:$0xff] %v366
  %431 = vst [vmem:[%s4 + $0xb0] sm:$0xff] %v367
  %432 = vst [vmem:[%s4 + $0xb8] sm:$0xff] %v368
  %433 = vst [vmem:[%s4 + $0xc0] sm:$0xff] %v369
  %434 = vst [vmem:[%s4 + $0xc8] sm:$0xff] %v370
  %435 = vst [vmem:[%s4 + $0xd0] sm:$0xff] %v371
  %436 = vst [vmem:[%s4 + $0xd8] sm:$0xff] %v372
  %437 = vst [vmem:[%s4 + $0xe0] sm:$0xff] %v373
  %438 = vst [vmem:[%s4 + $0xe8] sm:$0xff] %v374
  %439 = vst [vmem:[%s4 + $0xf0] sm:$0xff] %v375
  %440 = vst [vmem:[%s4 + $0xf8] sm:$0xff] %v376
  %441 = vst [vmem:[%s4 + $0x100] sm:$0xff] %v377
  %442 = vst [vmem:[%s4 + $0x108] sm:$0xff] %v378
  %443 = vst [vmem:[%s4 + $0x110] sm:$0xff] %v379
  %444 = vst [vmem:[%s4 + $0x118] sm:$0xff] %v380
  %445 = vst [vmem:[%s4 + $0x120] sm:$0xff] %v381
  %446 = vst [vmem:[%s4 + $0x128] sm:$0xff] %v382
  %447 = vst [vmem:[%s4 + $0x130] sm:$0xff] %v383
  %448 = vst [vmem:[%s4 + $0x138] sm:$0xff] %v384
  %449 = vst [vmem:[%s4 + $0x140] sm:$0xff] %v385
  %450 = vst [vmem:[%s4 + $0x148] sm:$0xff] %v386
  %451 = vst [vmem:[%s4 + $0x150] sm:$0xff] %v387
  %452 = vst [vmem:[%s4 + $0x158] sm:$0xff] %v388
  %453 = vst [vmem:[%s4 + $0x160] sm:$0xff] %v389
  %454 = vst [vmem:[%s4 + $0x168] sm:$0xff] %v390
  %455 = vst [vmem:[%s4 + $0x170] sm:$0xff] %v391
  %456 = vst [vmem:[%s4 + $0x178] sm:$0xff] %v392
  %457 = vst [vmem:[%s4 + $0x180] sm:$0xff] %v393
  %458 = vst [vmem:[%s4 + $0x188] sm:$0xff] %v394
  %459 = vst [vmem:[%s4 + $0x190] sm:$0xff] %v395
  %460 = vst [vmem:[%s4 + $0x198] sm:$0xff] %v396
  %461 = vst [vmem:[%s4 + $0x1a0] sm:$0xff] %v397
  %462 = vst [vmem:[%s4 + $0x1a8] sm:$0xff] %v398
  %463 = vst [vmem:[%s4 + $0x1b0] sm:$0xff] %v399
  %464 = vst [vmem:[%s4 + $0x1b8] sm:$0xff] %v400
  %465 = vst [vmem:[%s4 + $0x1c0] sm:$0xff] %v401
  %466 = vst [vmem:[%s4 + $0x1c8] sm:$0xff] %v402
  %467 = vst [vmem:[%s4 + $0x1d0] sm:$0xff] %v403
  %468 = vst [vmem:[%s4 + $0x1d8] sm:$0xff] %v404
  %469 = vst [vmem:[%s4 + $0x1e0] sm:$0xff] %v405
  %470 = vst [vmem:[%s4 + $0x1e8] sm:$0xff] %v406
  %471 = vst [vmem:[%s4 + $0x1f0] sm:$0xff] %v407
  %472 = vst [vmem:[%s4 + $0x1f8] sm:$0xff] %v408
  // Predicated region
  $region18: #{basic_block_forward.5} parent=0 // pred_check
    _
  $region19: #{basic_block_forward.5} parent=0 // pred_check_branch
    %474 = sbr.rel (0) target = $region21
  $region20: #{basic_block_forward.5} parent=0 // pred_region
    _
  $region21: #{basic_block_forward.5} parent=0 // pred_fallthru
    _
  // Predicated region
  $region22: #{basic_block_forward.5} parent=0 // pred_check
    _
  $region23: #{basic_block_forward.5} parent=0 // pred_check_branch
    %476 = sbr.rel (0) target = $region25
  $region24: #{basic_block_forward.5} parent=0 // pred_region
    _
  $region25: #{basic_block_forward.5} parent=0 // pred_fallthru
    _

// kernel: basic_block_forward.3
$region0: #{basic_block_forward.3}
  #allocation0 [shape = 'u32[]', space=smem, size = 0x4, offset = 0x4, fixed_abs, tag = 'smem constant byte address 0x4 - core index']
  #allocation1 [shape = 'u32[72,128]{1,0:T(1,128)}', space=vmem, size = 0x9000, scoped, tag = 'internal scratch']
  %s0 = inlined_call_operand.vmem [shape: f32[2,18,18,128], index: 0, kind: input, shape index: {}]
  %s1 = inlined_call_operand.vmem [shape: bf16[9,128,128], index: 1, kind: input, shape index: {}]
  %s2 = inlined_call_operand.vmem [shape: f32[512,128], index: 2, kind: output, shape index: {0}]
  %s3 = inlined_call_operand.vmem [shape: f32[2,128], index: 3, kind: output, shape index: {1}]
  %4 = xla_tuple %s2, %s3
  %s5 = sld [smem:[#allocation0]]
  $region53: #{basic_block_forward.3} parent=0
    _
  %s7 = ssub.s32 1, %s5
  %s8 = scalar_select 0, %s7, %s5
  loop: start=0, step=1, limit=4
  $region2: #{basic_block_forward.3} parent=0 // loop_pre_header
    _
  $region3: #{basic_block_forward.3} parent=0 // loop_header
    %s10 = sphi 0, %s14
    %p11 = scmp.ge.s32.totalorder %s10, 4
    %s20 = sphi 0, %s22
    %s23 = sphi 0, %s20
    %s24 = sphi 0, %s23
    %s40 = sphi 0, %s24
    %s44 = sphi 0, %s44
    %s46 = sphi 0, %s44
    %s47 = sphi 0, %s46
    %s61 = sphi 0, %s47
    %s67 = sphi 0, %s69
    %s70 = sphi 0, %s67
    %s71 = sphi 0, %s70
    %s87 = sphi 0, %s71
    %s91 = sphi 0, %s91
    %s93 = sphi 0, %s91
    %s94 = sphi 0, %s93
    %s108 = sphi 0, %s94
  $region4: #{basic_block_forward.3} parent=0 // loop_header_branch
    %13 = sbr.rel (%p11) target = $region8
  $region5: #{basic_block_forward.3} parent=0 // loop_body
    %s15 = ssub.s32 %s10, 1
    %s16 = ssub.s32 %s10, 2
    %s17 = sadd.s32 %s10, 1
    %s18 = ssub.s32 %s10, %s17
    %p19 = scmp.eq.s32.totalorder %s18, 0
    %s21 = sadd.s32 %s20, 1
    %s22 = scalar_select %p19, %s20, %s21
    %p25 = pneg %p19
    %p26 = scmp.eq.s32.totalorder %s10, 1
    %p27 = por %p25, %p26
    %p28 = scmp.ne.s32.totalorder %s20, %s23
    %p29 = scmp.eq.s32.totalorder %s10, 0
    %p30 = por %p28, %p29
    %p31 = scmp.ne.s32.totalorder %s20, %s23
    %p32 = scmp.eq.s32.totalorder %s15, 1
    %p33 = por %p31, %p32
    %p34 = scmp.ne.s32.totalorder %s23, %s24
    %p35 = scmp.eq.s32.totalorder %s15, 0
    %p36 = por %p34, %p35
    %p37 = scmp.ne.s32.totalorder %s23, %s24
    %p38 = scmp.eq.s32.totalorder %s16, 1
    %p39 = por %p37, %p38
    %p41 = scmp.ne.s32.totalorder %s24, %s40
    %p42 = scmp.eq.s32.totalorder %s16, 0
    %p43 = por %p41, %p42
    %s45 = sadd.s32 %s44, 1
    %p48 = scmp.eq.s32.totalorder %s10, 1
    %p49 = scmp.ne.s32.totalorder %s44, %s46
    %p50 = scmp.eq.s32.totalorder %s10, 0
    %p51 = por %p49, %p50
    %p52 = scmp.ne.s32.totalorder %s44, %s46
    %p53 = scmp.eq.s32.totalorder %s15, 1
    %p54 = por %p52, %p53
    %p55 = scmp.ne.s32.totalorder %s46, %s47
    %p56 = scmp.eq.s32.totalorder %s15, 0
    %p57 = por %p55, %p56
    %p58 = scmp.ne.s32.totalorder %s46, %s47
    %p59 = scmp.eq.s32.totalorder %s16, 1
    %p60 = por %p58, %p59
    %p62 = scmp.ne.s32.totalorder %s47, %s61
    %p63 = scmp.eq.s32.totalorder %s16, 0
    %p64 = por %p62, %p63
    %s65 = ssub.s32 %s10, %s17
    %p66 = scmp.eq.s32.totalorder %s65, 0
    %s68 = sadd.s32 %s67, 1
    %s69 = scalar_select %p66, %s67, %s68
    %p72 = pneg %p66
    %p73 = scmp.eq.s32.totalorder %s10, 1
    %p74 = por %p72, %p73
    %p75 = scmp.ne.s32.totalorder %s67, %s70
    %p76 = scmp.eq.s32.totalorder %s10, 0
    %p77 = por %p75, %p76
    %p78 = scmp.ne.s32.totalorder %s67, %s70
    %p79 = scmp.eq.s32.totalorder %s15, 1
    %p80 = por %p78, %p79
    %p81 = scmp.ne.s32.totalorder %s70, %s71
    %p82 = scmp.eq.s32.totalorder %s15, 0
    %p83 = por %p81, %p82
    %p84 = scmp.ne.s32.totalorder %s70, %s71
    %p85 = scmp.eq.s32.totalorder %s16, 1
    %p86 = por %p84, %p85
    %p88 = scmp.ne.s32.totalorder %s71, %s87
    %p89 = scmp.eq.s32.totalorder %s16, 0
    %p90 = por %p88, %p89
    %s92 = sadd.s32 %s91, 1
    %p95 = scmp.eq.s32.totalorder %s10, 1
    %p96 = scmp.ne.s32.totalorder %s91, %s93
    %p97 = scmp.eq.s32.totalorder %s10, 0
    %p98 = por %p96, %p97
    %p99 = scmp.ne.s32.totalorder %s91, %s93
    %p100 = scmp.eq.s32.totalorder %s15, 1
    %p101 = por %p99, %p100
    %p102 = scmp.ne.s32.totalorder %s93, %s94
    %p103 = scmp.eq.s32.totalorder %s15, 0
    %p104 = por %p102, %p103
    %p105 = scmp.ne.s32.totalorder %s93, %s94
    %p106 = scmp.eq.s32.totalorder %s16, 1
    %p107 = por %p105, %p106
    %p109 = scmp.ne.s32.totalorder %s94, %s108
    %p110 = scmp.eq.s32.totalorder %s16, 0
    %p111 = por %p109, %p110
    %p112 = scmp.le.s32.totalorder 1, %s10
    %p113 = scmp.lt.s32.totalorder %s10, 3
    %p114 = pnand %p112, %p113
    %p115 = pneg %p114
    // Predicated region
    $region9: #{basic_block_forward.3} parent=5 // pred_check
      _
    $region10: #{basic_block_forward.3} parent=5 // pred_check_branch
      %117 = sbr.rel (%p114) target = $region12
    $region11: #{basic_block_forward.3} parent=5 // pred_region
      %s118 = ssub.s32 %s10, 1
      // Predicated region
      $region13: #{basic_block_forward.3} parent=11 // pred_check
        %p119 = pneg %p57
      $region14: #{basic_block_forward.3} parent=11 // pred_check_branch
        %121 = sbr.rel (%p119) target = $region16
      $region15: #{basic_block_forward.3} parent=11 // pred_region
        _
      $region16: #{basic_block_forward.3} parent=11 // pred_fallthru
        _
    $region12: #{basic_block_forward.3} parent=5 // pred_fallthru
      _
    %p122 = scmp.lt.s32.totalorder %s10, 2
    // Predicated region
    $region17: #{basic_block_forward.3} parent=5 // pred_check
      %p123 = pneg %p122
    $region18: #{basic_block_forward.3} parent=5 // pred_check_branch
      %125 = sbr.rel (%p123) target = $region20
    $region19: #{basic_block_forward.3} parent=5 // pred_region
      // Predicated region
      $region21: #{basic_block_forward.3} parent=19 // pred_check
        %p126 = pneg %p30
      $region22: #{basic_block_forward.3} parent=19 // pred_check_branch
        %128 = sbr.rel (%p126) target = $region24
      $region23: #{basic_block_forward.3} parent=19 // pred_region
        %p129 = scmp.lt.s32.totalorder %s10, 1
        %s130 = scalar_select %p129, %s10, 1
        %s131 = smul.addr %s130, 54
        %s132 = smul.addr %s131, 8
        %s133 = scalar_lea.vmem %s0, %s132
      $region24: #{basic_block_forward.3} parent=19 // pred_fallthru
        _
    $region20: #{basic_block_forward.3} parent=5 // pred_fallthru
      _
    %p134 = scmp.le.s32.totalorder 1, %s10
    %p135 = scmp.lt.s32.totalorder %s10, 3
    %p136 = pnand %p134, %p135
    %p137 = pneg %p136
    // Predicated region
    $region25: #{basic_block_forward.3} parent=5 // pred_check
      _
    $region26: #{basic_block_forward.3} parent=5 // pred_check_branch
      %139 = sbr.rel (%p136) target = $region28
    $region27: #{basic_block_forward.3} parent=5 // pred_region
      %s140 = ssub.s32 %s10, 1
      %p141 = scmp.lt.s32.totalorder %s15, 1
      %s142 = scalar_select %p141, %s15, 1
      %s143 = smul.addr %s142, 54
      %s144 = smul.addr %s143, 8
      %s145 = scalar_lea.vmem %s0, %s144
      %p146 = pneg %p36
      %p147 = pneg %p33
      %p148 = pneg %p57
      %p149 = pneg %p54
      %p150 = pneg %p83
      %p151 = pneg %p80
      %s152 = smul.u32 32, %s15
      %p153 = scmp.lt.s32.totalorder %s152, 63
      %s154 = scalar_select %p153, %s152, 63
      %s155 = smul.addr %s154, 8
      %s156 = scalar_lea.vmem %s2, %s155
      %p157 = pneg %p104
      %p158 = pneg %p101
      %p159 = scmp.lt.s32.totalorder %s15, 1
      %s160 = scalar_select %p159, %s15, 1
      %s161 = smul.addr %s160, 54
      %s162 = smul.addr %s161, 8
      %s163 = scalar_lea.vmem %s0, %s162
      %s164 = smul.u32 32, %s15
      %p165 = scmp.lt.s32.totalorder %s164, 63
      %s166 = scalar_select %p165, %s164, 63
      %s167 = smul.addr %s166, 8
      %s168 = scalar_lea.vmem %s2, %s167
      %s169 = smul.u32 32, %s15
      %v170 = vld [vmem:[%s163] sm:$0xff]
      %v171 = vld [vmem:[%s163 + $0x8] sm:$0xff]
      %v172 = vld [vmem:[%s163 + $0x10] sm:$0x3]
      %v173 = vld [vmem:[%s163 + $0x18] sm:$0xff]
      %v174 = vld [vmem:[%s163 + $0x20] sm:$0xff]
      %v175 = vld [vmem:[%s163 + $0x28] sm:$0x3]
      %v176 = vld [vmem:[%s163 + $0x30] sm:$0xff]
      %v177 = vld [vmem:[%s163 + $0x38] sm:$0xff]
      %v178 = vld [vmem:[%s163 + $0x40] sm:$0x3]
      %v179 = vld [vmem:[%s163 + $0x48] sm:$0xff]
      %v180 = vld [vmem:[%s163 + $0x50] sm:$0xff]
      %v181 = vld [vmem:[%s163 + $0x58] sm:$0x3]
      %v182 = vld [vmem:[%s163 + $0x60] sm:$0xff]
      %v183 = vld [vmem:[%s163 + $0x68] sm:$0xff]
      %v184 = vld [vmem:[%s163 + $0x70] sm:$0x3]
      %v185 = vld [vmem:[%s163 + $0x78] sm:$0xff]
      %v186 = vld [vmem:[%s163 + $0x80] sm:$0xff]
      %v187 = vld [vmem:[%s163 + $0x88] sm:$0x3]
      %v188 = vld [vmem:[%s163 + $0x90] sm:$0xff]
      %v189 = vld [vmem:[%s163 + $0x98] sm:$0xff]
      %v190 = vld [vmem:[%s163 + $0xa0] sm:$0x3]
      %v191 = vld [vmem:[%s163 + $0xa8] sm:$0xff]
      %v192 = vld [vmem:[%s163 + $0xb0] sm:$0xff]
      %v193 = vld [vmem:[%s163 + $0xb8] sm:$0x3]
      %v194 = vld [vmem:[%s163 + $0xc0] sm:$0xff]
      %v195 = vld [vmem:[%s163 + $0xc8] sm:$0xff]
      %v196 = vld [vmem:[%s163 + $0xd0] sm:$0x3]
      %v197 = vld [vmem:[%s163 + $0xd8] sm:$0xff]
      %v198 = vld [vmem:[%s163 + $0xe0] sm:$0xff]
      %v199 = vld [vmem:[%s163 + $0xe8] sm:$0x3]
      %v200 = vld [vmem:[%s163 + $0xf0] sm:$0xff]
      %v201 = vld [vmem:[%s163 + $0xf8] sm:$0xff]
      %v202 = vld [vmem:[%s163 + $0x100] sm:$0x3]
      %v203 = vld [vmem:[%s163 + $0x108] sm:$0xff]
      %v204 = vld [vmem:[%s163 + $0x110] sm:$0xff]
      %v205 = vld [vmem:[%s163 + $0x118] sm:$0x3]
      %v206 = vld [vmem:[%s163 + $0x120] sm:$0xff]
      %v207 = vld [vmem:[%s163 + $0x128] sm:$0xff]
      %v208 = vld [vmem:[%s163 + $0x130] sm:$0x3]
      %v209 = vld [vmem:[%s163 + $0x138] sm:$0xff]
      %v210 = vld [vmem:[%s163 + $0x140] sm:$0xff]
      %v211 = vld [vmem:[%s163 + $0x148] sm:$0x3]
      %v212 = vld [vmem:[%s163 + $0x150] sm:$0xff]
      %v213 = vld [vmem:[%s163 + $0x158] sm:$0xff]
      %v214 = vld [vmem:[%s163 + $0x160] sm:$0x3]
      %v215 = vld [vmem:[%s163 + $0x168] sm:$0xff]
      %v216 = vld [vmem:[%s163 + $0x170] sm:$0xff]
      %v217 = vld [vmem:[%s163 + $0x178] sm:$0x3]
      %v218 = vld [vmem:[%s163 + $0x180] sm:$0xff]
      %v219 = vld [vmem:[%s163 + $0x188] sm:$0xff]
      %v220 = vld [vmem:[%s163 + $0x190] sm:$0x3]
      %v221 = vld [vmem:[%s163 + $0x198] sm:$0xff]
      %v222 = vld [vmem:[%s163 + $0x1a0] sm:$0xff]
      %v223 = vld [vmem:[%s163 + $0x1a8] sm:$0x3]
      %v224 = vpack.c.bf16 %v171, %v170
      %v225 = vpack.c.bf16 %v174, %v173
      %v226 = vpack.c.bf16 %v177, %v176
      %v227 = vpack.c.bf16 %v180, %v179
      %v228 = vpack.c.bf16 %v183, %v182
      %v229 = vpack.c.bf16 %v186, %v185
      %v230 = vpack.c.bf16 %v189, %v188
      %v231 = vpack.c.bf16 %v192, %v191
      %v232 = vpack.c.bf16 %v195, %v194
      %v233 = vpack.c.bf16 %v198, %v197
      %v234 = vpack.c.bf16 %v201, %v200
      %v235 = vpack.c.bf16 %v204, %v203
      %v236 = vpack.c.bf16 %v207, %v206
      %v237 = vpack.c.bf16 %v210, %v209
      %v238 = vpack.c.bf16 %v213, %v212
      %v239 = vpack.c.bf16 %v216, %v215
      %v240 = vld [vmem:[%s1] sm:$0xf]
      %v241 = vld [vmem:[%s1 + $0x4] sm:$0xf]
      %v242 = vld [vmem:[%s1 + $0x8] sm:$0xf]
      %v243 = vld [vmem:[%s1 + $0xc] sm:$0xf]
      %v244 = vld [vmem:[%s1 + $0x10] sm:$0xf]
      %v245 = vld [vmem:[%s1 + $0x14] sm:$0xf]
      %v246 = vld [vmem:[%s1 + $0x18] sm:$0xf]
      %v247 = vld [vmem:[%s1 + $0x1c] sm:$0xf]
      %v248 = vld [vmem:[%s1 + $0x20] sm:$0xf]
      %v249 = vld [vmem:[%s1 + $0x24] sm:$0xf]
      %v250 = vld [vmem:[%s1 + $0x28] sm:$0xf]
      %v251 = vld [vmem:[%s1 + $0x2c] sm:$0xf]
      %v252 = vld [vmem:[%s1 + $0x30] sm:$0xf]
      %v253 = vld [vmem:[%s1 + $0x34] sm:$0xf]
      %v254 = vld [vmem:[%s1 + $0x38] sm:$0xf]
      %v255 = vld [vmem:[%s1 + $0x3c] sm:$0xf]
      %vm304 = vcmask 1046528
      %v305 = vrot.slane %v170, 1
      %v306 = vrot.slane %v171, 1
      %v307 = vsel %vm304, %v305, %v306
      %v308 = vrot.slane %v172, 1
      %v309 = vsel %vm304, %v306, %v308
      %v310 = vrot.slane %v173, 1
      %v311 = vrot.slane %v174, 1
      %v312 = vsel %vm304, %v310, %v311
      %v313 = vrot.slane %v175, 1
      %v314 = vsel %vm304, %v311, %v313
      %v315 = vrot.slane %v176, 1
      %v316 = vrot.slane %v177, 1
      %v317 = vsel %vm304, %v315, %v316
      %v318 = vrot.slane %v178, 1
      %v319 = vsel %vm304, %v316, %v318
      %v320 = vrot.slane %v179, 1
      %v321 = vrot.slane %v180, 1
      %v322 = vsel %vm304, %v320, %v321
      %v323 = vrot.slane %v181, 1
      %v324 = vsel %vm304, %v321, %v323
      %v325 = vrot.slane %v182, 1
      %v326 = vrot.slane %v183, 1
      %v327 = vsel %vm304, %v325, %v326
      %v328 = vrot.slane %v184, 1
      %v329 = vsel %vm304, %v326, %v328
      %v330 = vrot.slane %v185, 1
      %v331 = vrot.slane %v186, 1
      %v332 = vsel %vm304, %v330, %v331
      %v333 = vrot.slane %v187, 1
      %v334 = vsel %vm304, %v331, %v333
      %v335 = vrot.slane %v188, 1
      %v336 = vrot.slane %v189, 1
      %v337 = vsel %vm304, %v335, %v336
      %v338 = vrot.slane %v190, 1
      %v339 = vsel %vm304, %v336, %v338
      %v340 = vrot.slane %v191, 1
      %v341 = vrot.slane %v192, 1
      %v342 = vsel %vm304, %v340, %v341
      %v343 = vrot.slane %v193, 1
      %v344 = vsel %vm304, %v341, %v343
      %v345 = vrot.slane %v194, 1
      %v346 = vrot.slane %v195, 1
      %v347 = vsel %vm304, %v345, %v346
      %v348 = vrot.slane %v196, 1
      %v349 = vsel %vm304, %v346, %v348
      %v350 = vrot.slane %v197, 1
      %v351 = vrot.slane %v198, 1
      %v352 = vsel %vm304, %v350, %v351
      %v353 = vrot.slane %v199, 1
      %v354 = vsel %vm304, %v351, %v353
      %v355 = vrot.slane %v200, 1
      %v356 = vrot.slane %v201, 1
      %v357 = vsel %vm304, %v355, %v356
      %v358 = vrot.slane %v202, 1
      %v359 = vsel %vm304, %v356, %v358
      %v360 = vrot.slane %v203, 1
      %v361 = vrot.slane %v204, 1
      %v362 = vsel %vm304, %v360, %v361
      %v363 = vrot.slane %v205, 1
      %v364 = vsel %vm304, %v361, %v363
      %v365 = vrot.slane %v206, 1
      %v366 = vrot.slane %v207, 1
      %v367 = vsel %vm304, %v365, %v366
      %v368 = vrot.slane %v208, 1
      %v369 = vsel %vm304, %v366, %v368
      %v370 = vrot.slane %v209, 1
      %v371 = vrot.slane %v210, 1
      %v372 = vsel %vm304, %v370, %v371
      %v373 = vrot.slane %v211, 1
      %v374 = vsel %vm304, %v371, %v373
      %v375 = vrot.slane %v212, 1
      %v376 = vrot.slane %v213, 1
      %v377 = vsel %vm304, %v375, %v376
      %v378 = vrot.slane %v214, 1
      %v379 = vsel %vm304, %v376, %v378
      %v380 = vrot.slane %v215, 1
      %v381 = vrot.slane %v216, 1
      %v382 = vsel %vm304, %v380, %v381
      %v383 = vrot.slane %v217, 1
      %v384 = vsel %vm304, %v381, %v383
      %v417 = vpack.c.bf16 %v309, %v307
      %v418 = vpack.c.bf16 %v314, %v312
      %v419 = vpack.c.bf16 %v319, %v317
      %v420 = vpack.c.bf16 %v324, %v322
      %v421 = vpack.c.bf16 %v329, %v327
      %v422 = vpack.c.bf16 %v334, %v332
      %v423 = vpack.c.bf16 %v339, %v337
      %v424 = vpack.c.bf16 %v344, %v342
      %v425 = vpack.c.bf16 %v349, %v347
      %v426 = vpack.c.bf16 %v354, %v352
      %v427 = vpack.c.bf16 %v359, %v357
      %v428 = vpack.c.bf16 %v364, %v362
      %v429 = vpack.c.bf16 %v369, %v367
      %v430 = vpack.c.bf16 %v374, %v372
      %v431 = vpack.c.bf16 %v379, %v377
      %v432 = vpack.c.bf16 %v384, %v382
      %s433 = scalar_lea.vmem %s1, 64
      %v434 = vld [vmem:[%s433] sm:$0xf]
      %v435 = vld [vmem:[%s433 + $0x4] sm:$0xf]
      %v436 = vld [vmem:[%s433 + $0x8] sm:$0xf]
      %v437 = vld [vmem:[%s433 + $0xc] sm:$0xf]
      %v438 = vld [vmem:[%s433 + $0x10] sm:$0xf]
      %v439 = vld [vmem:[%s433 + $0x14] sm:$0xf]
      %v440 = vld [vmem:[%s433 + $0x18] sm:$0xf]
      %v441 = vld [vmem:[%s433 + $0x1c] sm:$0xf]
      %v442 = vld [vmem:[%s433 + $0x20] sm:$0xf]
      %v443 = vld [vmem:[%s433 + $0x24] sm:$0xf]
      %v444 = vld [vmem:[%s433 + $0x28] sm:$0xf]
      %v445 = vld [vmem:[%s433 + $0x2c] sm:$0xf]
      %v446 = vld [vmem:[%s433 + $0x30] sm:$0xf]
      %v447 = vld [vmem:[%s433 + $0x34] sm:$0xf]
      %v448 = vld [vmem:[%s433 + $0x38] sm:$0xf]
      %v449 = vld [vmem:[%s433 + $0x3c] sm:$0xf]
      %v466 = vunpack.c.l.b16 %v434
      %v467 = vunpack.c.l.b16 %v435
      %v468 = vunpack.c.l.b16 %v436
      %v469 = vunpack.c.l.b16 %v437
      %v470 = vunpack.c.l.b16 %v438
      %v471 = vunpack.c.l.b16 %v439
      %v472 = vunpack.c.l.b16 %v440
      %v473 = vunpack.c.l.b16 %v441
      %v474 = vunpack.c.l.b16 %v442
      %v475 = vunpack.c.l.b16 %v443
      %v476 = vunpack.c.l.b16 %v444
      %v477 = vunpack.c.l.b16 %v445
      %v478 = vunpack.c.l.b16 %v446
      %v479 = vunpack.c.l.b16 %v447
      %v480 = vunpack.c.l.b16 %v448
      %v481 = vunpack.c.l.b16 %v449
      %v482 = vpack.c.b16 %v467, %v466
      %v483 = vpack.c.b16 %v469, %v468
      %v484 = vpack.c.b16 %v471, %v470
      %v485 = vpack.c.b16 %v473, %v472
      %v486 = vpack.c.b16 %v475, %v474
      %v487 = vpack.c.b16 %v477, %v476
      %v488 = vpack.c.b16 %v479, %v478
      %v489 = vpack.c.b16 %v481, %v480
      %498 = vmatpush.bf16.msra.mxu0 %v489
      %499 = vmatpush.bf16.msra.mxu0 %v488
      %500 = vmatpush.bf16.msra.mxu0 %v487
      %501 = vmatpush.bf16.msra.mxu0 %v486
      %502 = vmatpush.bf16.msra.mxu0 %v485
      %503 = vmatpush.bf16.msra.mxu0 %v484
      %504 = vmatpush.bf16.msra.mxu0 %v483
      %505 = vmatpush.bf16.msra.mxu0 %v482
      %506 = vmatmul.bf16.gmra.mxu0 %v417
      %v507 = vpop.f32.mrf.mxu0
      %v508 = vadd.f32 0.0, %v507
      %v509 = vpop.f32.mrf.mxu0
      %v510 = vadd.f32 0.0, %v509
      %511 = vmatmul.bf16.gmra.mxu0 %v418
      %v512 = vpop.f32.mrf.mxu0
      %v513 = vadd.f32 0.0, %v512
      %v514 = vpop.f32.mrf.mxu0
      %v515 = vadd.f32 0.0, %v514
      %516 = vmatmul.bf16.gmra.mxu0 %v419
      %v517 = vpop.f32.mrf.mxu0
      %v518 = vadd.f32 0.0, %v517
      %v519 = vpop.f32.mrf.mxu0
      %v520 = vadd.f32 0.0, %v519
      %521 = vmatmul.bf16.gmra.mxu0 %v420
      %v522 = vpop.f32.mrf.mxu0
      %v523 = vadd.f32 0.0, %v522
      %v524 = vpop.f32.mrf.mxu0
      %v525 = vadd.f32 0.0, %v524
      %526 = vmatmul.bf16.gmra.mxu0 %v421
      %v527 = vpop.f32.mrf.mxu0
      %v528 = vadd.f32 0.0, %v527
      %v529 = vpop.f32.mrf.mxu0
      %v530 = vadd.f32 0.0, %v529
      %531 = vmatmul.bf16.gmra.mxu0 %v422
      %v532 = vpop.f32.mrf.mxu0
      %v533 = vadd.f32 0.0, %v532
      %v534 = vpop.f32.mrf.mxu0
      %v535 = vadd.f32 0.0, %v534
      %536 = vmatmul.bf16.gmra.mxu0 %v423
      %v537 = vpop.f32.mrf.mxu0
      %v538 = vadd.f32 0.0, %v537
      %v539 = vpop.f32.mrf.mxu0
      %v540 = vadd.f32 0.0, %v539
      %541 = vmatmul.bf16.gmra.mxu0 %v424
      %v542 = vpop.f32.mrf.mxu0
      %v543 = vadd.f32 0.0, %v542
      %v544 = vpop.f32.mrf.mxu0
      %v545 = vadd.f32 0.0, %v544
      %546 = vmatmul.bf16.gmra.mxu0 %v425
      %v547 = vpop.f32.mrf.mxu0
      %v548 = vadd.f32 0.0, %v547
      %v549 = vpop.f32.mrf.mxu0
      %v550 = vadd.f32 0.0, %v549
      %551 = vmatmul.bf16.gmra.mxu0 %v426
      %v552 = vpop.f32.mrf.mxu0
      %v553 = vadd.f32 0.0, %v552
      %v554 = vpop.f32.mrf.mxu0
      %v555 = vadd.f32 0.0, %v554
      %556 = vmatmul.bf16.gmra.mxu0 %v427
      %v557 = vpop.f32.mrf.mxu0
      %v558 = vadd.f32 0.0, %v557
      %v559 = vpop.f32.mrf.mxu0
      %v560 = vadd.f32 0.0, %v559
      %561 = vmatmul.bf16.gmra.mxu0 %v428
      %v562 = vpop.f32.mrf.mxu0
      %v563 = vadd.f32 0.0, %v562
      %v564 = vpop.f32.mrf.mxu0
      %v565 = vadd.f32 0.0, %v564
      %566 = vmatmul.bf16.gmra.mxu0 %v429
      %v567 = vpop.f32.mrf.mxu0
      %v568 = vadd.f32 0.0, %v567
      %v569 = vpop.f32.mrf.mxu0
      %v570 = vadd.f32 0.0, %v569
      %571 = vmatmul.bf16.gmra.mxu0 %v430
      %v572 = vpop.f32.mrf.mxu0
      %v573 = vadd.f32 0.0, %v572
      %v574 = vpop.f32.mrf.mxu0
      %v575 = vadd.f32 0.0, %v574
      %576 = vmatmul.bf16.gmra.mxu0 %v431
      %v577 = vpop.f32.mrf.mxu0
      %v578 = vadd.f32 0.0, %v577
      %v579 = vpop.f32.mrf.mxu0
      %v580 = vadd.f32 0.0, %v579
      %581 = vmatmul.bf16.gmra.mxu0 %v432
      %v582 = vpop.f32.mrf.mxu0
      %v583 = vadd.f32 0.0, %v582
      %v584 = vpop.f32.mrf.mxu0
      %v585 = vadd.f32 0.0, %v584
      %586 = vdwg.mxu0
      %v603 = vunpack.c.l.b16 %v240
      %v604 = vunpack.c.l.b16 %v241
      %v605 = vunpack.c.l.b16 %v242
      %v606 = vunpack.c.l.b16 %v243
      %v607 = vunpack.c.l.b16 %v244
      %v608 = vunpack.c.l.b16 %v245
      %v609 = vunpack.c.l.b16 %v246
      %v610 = vunpack.c.l.b16 %v247
      %v611 = vunpack.c.l.b16 %v248
      %v612 = vunpack.c.l.b16 %v249
      %v613 = vunpack.c.l.b16 %v250
      %v614 = vunpack.c.l.b16 %v251
      %v615 = vunpack.c.l.b16 %v252
      %v616 = vunpack.c.l.b16 %v253
      %v617 = vunpack.c.l.b16 %v254
      %v618 = vunpack.c.l.b16 %v255
      %v619 = vpack.c.b16 %v604, %v603
      %v620 = vpack.c.b16 %v606, %v605
      %v621 = vpack.c.b16 %v608, %v607
      %v622 = vpack.c.b16 %v610, %v609
      %v623 = vpack.c.b16 %v612, %v611
      %v624 = vpack.c.b16 %v614, %v613
      %v625 = vpack.c.b16 %v616, %v615
      %v626 = vpack.c.b16 %v618, %v617
      %635 = vmatpush.bf16.msra.mxu0 %v626
      %636 = vmatpush.bf16.msra.mxu0 %v625
      %637 = vmatpush.bf16.msra.mxu0 %v624
      %638 = vmatpush.bf16.msra.mxu0 %v623
      %639 = vmatpush.bf16.msra.mxu0 %v622
      %640 = vmatpush.bf16.msra.mxu0 %v621
      %641 = vmatpush.bf16.msra.mxu0 %v620
      %642 = vmatpush.bf16.msra.mxu0 %v619
      %643 = vmatmul.bf16.gmra.mxu0 %v224
      %v644 = vpop.f32.mrf.mxu0
      %v645 = vadd.f32 %v508, %v644
      %v646 = vpop.f32.mrf.mxu0
      %v647 = vadd.f32 %v510, %v646
      %648 = vmatmul.bf16.gmra.mxu0 %v225
      %v649 = vpop.f32.mrf.mxu0
      %v650 = vadd.f32 %v513, %v649
      %v651 = vpop.f32.mrf.mxu0
      %v652 = vadd.f32 %v515, %v651
      %653 = vmatmul.bf16.gmra.mxu0 %v226
      %v654 = vpop.f32.mrf.mxu0
      %v655 = vadd.f32 %v518, %v654
      %v656 = vpop.f32.mrf.mxu0
      %v657 = vadd.f32 %v520, %v656
      %658 = vmatmul.bf16.gmra.mxu0 %v227
      %v659 = vpop.f32.mrf.mxu0
      %v660 = vadd.f32 %v523, %v659
      %v661 = vpop.f32.mrf.mxu0
      %v662 = vadd.f32 %v525, %v661
      %663 = vmatmul.bf16.gmra.mxu0 %v228
      %v664 = vpop.f32.mrf.mxu0
      %v665 = vadd.f32 %v528, %v664
      %v666 = vpop.f32.mrf.mxu0
      %v667 = vadd.f32 %v530, %v666
      %668 = vmatmul.bf16.gmra.mxu0 %v229
      %v669 = vpop.f32.mrf.mxu0
      %v670 = vadd.f32 %v533, %v669
      %v671 = vpop.f32.mrf.mxu0
      %v672 = vadd.f32 %v535, %v671
      %673 = vmatmul.bf16.gmra.mxu0 %v230
      %v674 = vpop.f32.mrf.mxu0
      %v675 = vadd.f32 %v538, %v674
      %v676 = vpop.f32.mrf.mxu0
      %v677 = vadd.f32 %v540, %v676
      %678 = vmatmul.bf16.gmra.mxu0 %v231
      %v679 = vpop.f32.mrf.mxu0
      %v680 = vadd.f32 %v543, %v679
      %v681 = vpop.f32.mrf.mxu0
      %v682 = vadd.f32 %v545, %v681
      %683 = vmatmul.bf16.gmra.mxu0 %v232
      %v684 = vpop.f32.mrf.mxu0
      %v685 = vadd.f32 %v548, %v684
      %v686 = vpop.f32.mrf.mxu0
      %v687 = vadd.f32 %v550, %v686
      %688 = vmatmul.bf16.gmra.mxu0 %v233
      %v689 = vpop.f32.mrf.mxu0
      %v690 = vadd.f32 %v553, %v689
      %v691 = vpop.f32.mrf.mxu0
      %v692 = vadd.f32 %v555, %v691
      %693 = vmatmul.bf16.gmra.mxu0 %v234
      %v694 = vpop.f32.mrf.mxu0
      %v695 = vadd.f32 %v558, %v694
      %v696 = vpop.f32.mrf.mxu0
      %v697 = vadd.f32 %v560, %v696
      %698 = vmatmul.bf16.gmra.mxu0 %v235
      %v699 = vpop.f32.mrf.mxu0
      %v700 = vadd.f32 %v563, %v699
      %v701 = vpop.f32.mrf.mxu0
      %v702 = vadd.f32 %v565, %v701
      %703 = vmatmul.bf16.gmra.mxu0 %v236
      %v704 = vpop.f32.mrf.mxu0
      %v705 = vadd.f32 %v568, %v704
      %v706 = vpop.f32.mrf.mxu0
      %v707 = vadd.f32 %v570, %v706
      %708 = vmatmul.bf16.gmra.mxu0 %v237
      %v709 = vpop.f32.mrf.mxu0
      %v710 = vadd.f32 %v573, %v709
      %v711 = vpop.f32.mrf.mxu0
      %v712 = vadd.f32 %v575, %v711
      %713 = vmatmul.bf16.gmra.mxu0 %v238
      %v714 = vpop.f32.mrf.mxu0
      %v715 = vadd.f32 %v578, %v714
      %v716 = vpop.f32.mrf.mxu0
      %v717 = vadd.f32 %v580, %v716
      %718 = vmatmul.bf16.gmra.mxu0 %v239
      %v719 = vpop.f32.mrf.mxu0
      %v720 = vadd.f32 %v583, %v719
      %v721 = vpop.f32.mrf.mxu0
      %v722 = vadd.f32 %v585, %v721
      %723 = vdwg.mxu0
      %vm724 = vcmask 1045504
      %v725 = vrot.slane %v170, 2
      %v726 = vrot.slane %v171, 2
      %v727 = vsel %vm724, %v725, %v726
      %v728 = vrot.slane %v172, 2
      %v729 = vsel %vm724, %v726, %v728
      %v730 = vrot.slane %v173, 2
      %v731 = vrot.slane %v174, 2
      %v732 = vsel %vm724, %v730, %v731
      %v733 = vrot.slane %v175, 2
      %v734 = vsel %vm724, %v731, %v733
      %v735 = vrot.slane %v176, 2
      %v736 = vrot.slane %v177, 2
      %v737 = vsel %vm724, %v735, %v736
      %v738 = vrot.slane %v178, 2
      %v739 = vsel %vm724, %v736, %v738
      %v740 = vrot.slane %v179, 2
      %v741 = vrot.slane %v180, 2
      %v742 = vsel %vm724, %v740, %v741
      %v743 = vrot.slane %v181, 2
      %v744 = vsel %vm724, %v741, %v743
      %v745 = vrot.slane %v182, 2
      %v746 = vrot.slane %v183, 2
      %v747 = vsel %vm724, %v745, %v746
      %v748 = vrot.slane %v184, 2
      %v749 = vsel %vm724, %v746, %v748
      %v750 = vrot.slane %v185, 2
      %v751 = vrot.slane %v186, 2
      %v752 = vsel %vm724, %v750, %v751
      %v753 = vrot.slane %v187, 2
      %v754 = vsel %vm724, %v751, %v753
      %v755 = vrot.slane %v188, 2
      %v756 = vrot.slane %v189, 2
      %v757 = vsel %vm724, %v755, %v756
      %v758 = vrot.slane %v190, 2
      %v759 = vsel %vm724, %v756, %v758
      %v760 = vrot.slane %v191, 2
      %v761 = vrot.slane %v192, 2
      %v762 = vsel %vm724, %v760, %v761
      %v763 = vrot.slane %v193, 2
      %v764 = vsel %vm724, %v761, %v763
      %v765 = vrot.slane %v194, 2
      %v766 = vrot.slane %v195, 2
      %v767 = vsel %vm724, %v765, %v766
      %v768 = vrot.slane %v196, 2
      %v769 = vsel %vm724, %v766, %v768
      %v770 = vrot.slane %v197, 2
      %v771 = vrot.slane %v198, 2
      %v772 = vsel %vm724, %v770, %v771
      %v773 = vrot.slane %v199, 2
      %v774 = vsel %vm724, %v771, %v773
      %v775 = vrot.slane %v200, 2
      %v776 = vrot.slane %v201, 2
      %v777 = vsel %vm724, %v775, %v776
      %v778 = vrot.slane %v202, 2
      %v779 = vsel %vm724, %v776, %v778
      %v780 = vrot.slane %v203, 2
      %v781 = vrot.slane %v204, 2
      %v782 = vsel %vm724, %v780, %v781
      %v783 = vrot.slane %v205, 2
      %v784 = vsel %vm724, %v781, %v783
      %v785 = vrot.slane %v206, 2
      %v786 = vrot.slane %v207, 2
      %v787 = vsel %vm724, %v785, %v786
      %v788 = vrot.slane %v208, 2
      %v789 = vsel %vm724, %v786, %v788
      %v790 = vrot.slane %v209, 2
      %v791 = vrot.slane %v210, 2
      %v792 = vsel %vm724, %v790, %v791
      %v793 = vrot.slane %v211, 2
      %v794 = vsel %vm724, %v791, %v793
      %v795 = vrot.slane %v212, 2
      %v796 = vrot.slane %v213, 2
      %v797 = vsel %vm724, %v795, %v796
      %v798 = vrot.slane %v214, 2
      %v799 = vsel %vm724, %v796, %v798
      %v800 = vrot.slane %v215, 2
      %v801 = vrot.slane %v216, 2
      %v802 = vsel %vm724, %v800, %v801
      %v803 = vrot.slane %v217, 2
      %v804 = vsel %vm724, %v801, %v803
      %v837 = vpack.c.bf16 %v729, %v727
      %v838 = vpack.c.bf16 %v734, %v732
      %v839 = vpack.c.bf16 %v739, %v737
      %v840 = vpack.c.bf16 %v744, %v742
      %v841 = vpack.c.bf16 %v749, %v747
      %v842 = vpack.c.bf16 %v754, %v752
      %v843 = vpack.c.bf16 %v759, %v757
      %v844 = vpack.c.bf16 %v764, %v762
      %v845 = vpack.c.bf16 %v769, %v767
      %v846 = vpack.c.bf16 %v774, %v772
      %v847 = vpack.c.bf16 %v779, %v777
      %v848 = vpack.c.bf16 %v784, %v782
      %v849 = vpack.c.bf16 %v789, %v787
      %v850 = vpack.c.bf16 %v794, %v792
      %v851 = vpack.c.bf16 %v799, %v797
      %v852 = vpack.c.bf16 %v804, %v802
      %s853 = scalar_lea.vmem %s1, 128
      %v854 = vld [vmem:[%s853] sm:$0xf]
      %v855 = vld [vmem:[%s853 + $0x4] sm:$0xf]
      %v856 = vld [vmem:[%s853 + $0x8] sm:$0xf]
      %v857 = vld [vmem:[%s853 + $0xc] sm:$0xf]
      %v858 = vld [vmem:[%s853 + $0x10] sm:$0xf]
      %v859 = vld [vmem:[%s853 + $0x14] sm:$0xf]
      %v860 = vld [vmem:[%s853 + $0x18] sm:$0xf]
      %v861 = vld [vmem:[%s853 + $0x1c] sm:$0xf]
      %v862 = vld [vmem:[%s853 + $0x20] sm:$0xf]
      %v863 = vld [vmem:[%s853 + $0x24] sm:$0xf]
      %v864 = vld [vmem:[%s853 + $0x28] sm:$0xf]
      %v865 = vld [vmem:[%s853 + $0x2c] sm:$0xf]
      %v866 = vld [vmem:[%s853 + $0x30] sm:$0xf]
      %v867 = vld [vmem:[%s853 + $0x34] sm:$0xf]
      %v868 = vld [vmem:[%s853 + $0x38] sm:$0xf]
      %v869 = vld [vmem:[%s853 + $0x3c] sm:$0xf]
      %v886 = vunpack.c.l.b16 %v854
      %v887 = vunpack.c.l.b16 %v855
      %v888 = vunpack.c.l.b16 %v856
      %v889 = vunpack.c.l.b16 %v857
      %v890 = vunpack.c.l.b16 %v858
      %v891 = vunpack.c.l.b16 %v859
      %v892 = vunpack.c.l.b16 %v860
      %v893 = vunpack.c.l.b16 %v861
      %v894 = vunpack.c.l.b16 %v862
      %v895 = vunpack.c.l.b16 %v863
      %v896 = vunpack.c.l.b16 %v864
      %v897 = vunpack.c.l.b16 %v865
      %v898 = vunpack.c.l.b16 %v866
      %v899 = vunpack.c.l.b16 %v867
      %v900 = vunpack.c.l.b16 %v868
      %v901 = vunpack.c.l.b16 %v869
      %v902 = vpack.c.b16 %v887, %v886
      %v903 = vpack.c.b16 %v889, %v888
      %v904 = vpack.c.b16 %v891, %v890
      %v905 = vpack.c.b16 %v893, %v892
      %v906 = vpack.c.b16 %v895, %v894
      %v907 = vpack.c.b16 %v897, %v896
      %v908 = vpack.c.b16 %v899, %v898
      %v909 = vpack.c.b16 %v901, %v900
      %918 = vmatpush.bf16.msra.mxu0 %v909
      %919 = vmatpush.bf16.msra.mxu0 %v908
      %920 = vmatpush.bf16.msra.mxu0 %v907
      %921 = vmatpush.bf16.msra.mxu0 %v906
      %922 = vmatpush.bf16.msra.mxu0 %v905
      %923 = vmatpush.bf16.msra.mxu0 %v904
      %924 = vmatpush.bf16.msra.mxu0 %v903
      %925 = vmatpush.bf16.msra.mxu0 %v902
      %926 = vmatmul.bf16.gmra.mxu0 %v837
      %v927 = vpop.f32.mrf.mxu0
      %v928 = vadd.f32 0.0, %v927
      %v929 = vpop.f32.mrf.mxu0
      %v930 = vadd.f32 0.0, %v929
      %931 = vmatmul.bf16.gmra.mxu0 %v838
      %v932 = vpop.f32.mrf.mxu0
      %v933 = vadd.f32 0.0, %v932
      %v934 = vpop.f32.mrf.mxu0
      %v935 = vadd.f32 0.0, %v934
      %936 = vmatmul.bf16.gmra.mxu0 %v839
      %v937 = vpop.f32.mrf.mxu0
      %v938 = vadd.f32 0.0, %v937
      %v939 = vpop.f32.mrf.mxu0
      %v940 = vadd.f32 0.0, %v939
      %941 = vmatmul.bf16.gmra.mxu0 %v840
      %v942 = vpop.f32.mrf.mxu0
      %v943 = vadd.f32 0.0, %v942
      %v944 = vpop.f32.mrf.mxu0
      %v945 = vadd.f32 0.0, %v944
      %946 = vmatmul.bf16.gmra.mxu0 %v841
      %v947 = vpop.f32.mrf.mxu0
      %v948 = vadd.f32 0.0, %v947
      %v949 = vpop.f32.mrf.mxu0
      %v950 = vadd.f32 0.0, %v949
      %951 = vmatmul.bf16.gmra.mxu0 %v842
      %v952 = vpop.f32.mrf.mxu0
      %v953 = vadd.f32 0.0, %v952
      %v954 = vpop.f32.mrf.mxu0
      %v955 = vadd.f32 0.0, %v954
      %956 = vmatmul.bf16.gmra.mxu0 %v843
      %v957 = vpop.f32.mrf.mxu0
      %v958 = vadd.f32 0.0, %v957
      %v959 = vpop.f32.mrf.mxu0
      %v960 = vadd.f32 0.0, %v959
      %961 = vmatmul.bf16.gmra.mxu0 %v844
      %v962 = vpop.f32.mrf.mxu0
      %v963 = vadd.f32 0.0, %v962
      %v964 = vpop.f32.mrf.mxu0
      %v965 = vadd.f32 0.0, %v964
      %966 = vmatmul.bf16.gmra.mxu0 %v845
      %v967 = vpop.f32.mrf.mxu0
      %v968 = vadd.f32 0.0, %v967
      %v969 = vpop.f32.mrf.mxu0
      %v970 = vadd.f32 0.0, %v969
      %971 = vmatmul.bf16.gmra.mxu0 %v846
      %v972 = vpop.f32.mrf.mxu0
      %v973 = vadd.f32 0.0, %v972
      %v974 = vpop.f32.mrf.mxu0
      %v975 = vadd.f32 0.0, %v974
      %976 = vmatmul.bf16.gmra.mxu0 %v847
      %v977 = vpop.f32.mrf.mxu0
      %v978 = vadd.f32 0.0, %v977
      %v979 = vpop.f32.mrf.mxu0
      %v980 = vadd.f32 0.0, %v979
      %981 = vmatmul.bf16.gmra.mxu0 %v848
      %v982 = vpop.f32.mrf.mxu0
      %v983 = vadd.f32 0.0, %v982
      %v984 = vpop.f32.mrf.mxu0
      %v985 = vadd.f32 0.0, %v984
      %986 = vmatmul.bf16.gmra.mxu0 %v849
      %v987 = vpop.f32.mrf.mxu0
      %v988 = vadd.f32 0.0, %v987
      %v989 = vpop.f32.mrf.mxu0
      %v990 = vadd.f32 0.0, %v989
      %991 = vmatmul.bf16.gmra.mxu0 %v850
      %v992 = vpop.f32.mrf.mxu0
      %v993 = vadd.f32 0.0, %v992
      %v994 = vpop.f32.mrf.mxu0
      %v995 = vadd.f32 0.0, %v994
      %996 = vmatmul.bf16.gmra.mxu0 %v851
      %v997 = vpop.f32.mrf.mxu0
      %v998 = vadd.f32 0.0, %v997
      %v999 = vpop.f32.mrf.mxu0
      %v1000 = vadd.f32 0.0, %v999
      %1001 = vmatmul.bf16.gmra.mxu0 %v852
      %v1002 = vpop.f32.mrf.mxu0
      %v1003 = vadd.f32 0.0, %v1002
      %v1004 = vpop.f32.mrf.mxu0
      %v1005 = vadd.f32 0.0, %v1004
      %1006 = vdwg.mxu0
      %v1007 = vadd.f32 %v645, %v928
      %v1008 = vadd.f32 %v647, %v930
      %v1009 = vadd.f32 %v650, %v933
      %v1010 = vadd.f32 %v652, %v935
      %v1011 = vadd.f32 %v655, %v938
      %v1012 = vadd.f32 %v657, %v940
      %v1013 = vadd.f32 %v660, %v943
      %v1014 = vadd.f32 %v662, %v945
      %v1015 = vadd.f32 %v665, %v948
      %v1016 = vadd.f32 %v667, %v950
      %v1017 = vadd.f32 %v670, %v953
      %v1018 = vadd.f32 %v672, %v955
      %v1019 = vadd.f32 %v675, %v958
      %v1020 = vadd.f32 %v677, %v960
      %v1021 = vadd.f32 %v680, %v963
      %v1022 = vadd.f32 %v682, %v965
      %v1023 = vadd.f32 %v685, %v968
      %v1024 = vadd.f32 %v687, %v970
      %v1025 = vadd.f32 %v690, %v973
      %v1026 = vadd.f32 %v692, %v975
      %v1027 = vadd.f32 %v695, %v978
      %v1028 = vadd.f32 %v697, %v980
      %v1029 = vadd.f32 %v700, %v983
      %v1030 = vadd.f32 %v702, %v985
      %v1031 = vadd.f32 %v705, %v988
      %v1032 = vadd.f32 %v707, %v990
      %v1033 = vadd.f32 %v710, %v993
      %v1034 = vadd.f32 %v712, %v995
      %v1035 = vadd.f32 %v715, %v998
      %v1036 = vadd.f32 %v717, %v1000
      %v1037 = vadd.f32 %v720, %v1003
      %v1038 = vadd.f32 %v722, %v1005
      %v1039 = vpack.c.bf16 %v219, %v218
      %s1040 = scalar_lea.vmem %s1, 192
      %v1041 = vld [vmem:[%s1040] sm:$0xf]
      %v1042 = vld [vmem:[%s1040 + $0x4] sm:$0xf]
      %v1043 = vld [vmem:[%s1040 + $0x8] sm:$0xf]
      %v1044 = vld [vmem:[%s1040 + $0xc] sm:$0xf]
      %v1045 = vld [vmem:[%s1040 + $0x10] sm:$0xf]
      %v1046 = vld [vmem:[%s1040 + $0x14] sm:$0xf]
      %v1047 = vld [vmem:[%s1040 + $0x18] sm:$0xf]
      %v1048 = vld [vmem:[%s1040 + $0x1c] sm:$0xf]
      %v1049 = vld [vmem:[%s1040 + $0x20] sm:$0xf]
      %v1050 = vld [vmem:[%s1040 + $0x24] sm:$0xf]
      %v1051 = vld [vmem:[%s1040 + $0x28] sm:$0xf]
      %v1052 = vld [vmem:[%s1040 + $0x2c] sm:$0xf]
      %v1053 = vld [vmem:[%s1040 + $0x30] sm:$0xf]
      %v1054 = vld [vmem:[%s1040 + $0x34] sm:$0xf]
      %v1055 = vld [vmem:[%s1040 + $0x38] sm:$0xf]
      %v1056 = vld [vmem:[%s1040 + $0x3c] sm:$0xf]
      %v1073 = vunpack.c.l.b16 %v1041
      %v1074 = vunpack.c.l.b16 %v1042
      %v1075 = vunpack.c.l.b16 %v1043
      %v1076 = vunpack.c.l.b16 %v1044
      %v1077 = vunpack.c.l.b16 %v1045
      %v1078 = vunpack.c.l.b16 %v1046
      %v1079 = vunpack.c.l.b16 %v1047
      %v1080 = vunpack.c.l.b16 %v1048
      %v1081 = vunpack.c.l.b16 %v1049
      %v1082 = vunpack.c.l.b16 %v1050
      %v1083 = vunpack.c.l.b16 %v1051
      %v1084 = vunpack.c.l.b16 %v1052
      %v1085 = vunpack.c.l.b16 %v1053
      %v1086 = vunpack.c.l.b16 %v1054
      %v1087 = vunpack.c.l.b16 %v1055
      %v1088 = vunpack.c.l.b16 %v1056
      %v1089 = vpack.c.b16 %v1074, %v1073
      %v1090 = vpack.c.b16 %v1076, %v1075
      %v1091 = vpack.c.b16 %v1078, %v1077
      %v1092 = vpack.c.b16 %v1080, %v1079
      %v1093 = vpack.c.b16 %v1082, %v1081
      %v1094 = vpack.c.b16 %v1084, %v1083
      %v1095 = vpack.c.b16 %v1086, %v1085
      %v1096 = vpack.c.b16 %v1088, %v1087
      %1105 = vmatpush.bf16.msra.mxu0 %v1096
      %1106 = vmatpush.bf16.msra.mxu0 %v1095
      %1107 = vmatpush.bf16.msra.mxu0 %v1094
      %1108 = vmatpush.bf16.msra.mxu0 %v1093
      %1109 = vmatpush.bf16.msra.mxu0 %v1092
      %1110 = vmatpush.bf16.msra.mxu0 %v1091
      %1111 = vmatpush.bf16.msra.mxu0 %v1090
      %1112 = vmatpush.bf16.msra.mxu0 %v1089
      %1113 = vmatmul.bf16.gmra.mxu0 %v225
      %v1114 = vpop.f32.mrf.mxu0
      %v1115 = vadd.f32 0.0, %v1114
      %v1116 = vpop.f32.mrf.mxu0
      %v1117 = vadd.f32 0.0, %v1116
      %1118 = vmatmul.bf16.gmra.mxu0 %v226
      %v1119 = vpop.f32.mrf.mxu0
      %v1120 = vadd.f32 0.0, %v1119
      %v1121 = vpop.f32.mrf.mxu0
      %v1122 = vadd.f32 0.0, %v1121
      %1123 = vmatmul.bf16.gmra.mxu0 %v227
      %v1124 = vpop.f32.mrf.mxu0
      %v1125 = vadd.f32 0.0, %v1124
      %v1126 = vpop.f32.mrf.mxu0
      %v1127 = vadd.f32 0.0, %v1126
      %1128 = vmatmul.bf16.gmra.mxu0 %v228
      %v1129 = vpop.f32.mrf.mxu0
      %v1130 = vadd.f32 0.0, %v1129
      %v1131 = vpop.f32.mrf.mxu0
      %v1132 = vadd.f32 0.0, %v1131
      %1133 = vmatmul.bf16.gmra.mxu0 %v229
      %v1134 = vpop.f32.mrf.mxu0
      %v1135 = vadd.f32 0.0, %v1134
      %v1136 = vpop.f32.mrf.mxu0
      %v1137 = vadd.f32 0.0, %v1136
      %1138 = vmatmul.bf16.gmra.mxu0 %v230
      %v1139 = vpop.f32.mrf.mxu0
      %v1140 = vadd.f32 0.0, %v1139
      %v1141 = vpop.f32.mrf.mxu0
      %v1142 = vadd.f32 0.0, %v1141
      %1143 = vmatmul.bf16.gmra.mxu0 %v231
      %v1144 = vpop.f32.mrf.mxu0
      %v1145 = vadd.f32 0.0, %v1144
      %v1146 = vpop.f32.mrf.mxu0
      %v1147 = vadd.f32 0.0, %v1146
      %1148 = vmatmul.bf16.gmra.mxu0 %v232
      %v1149 = vpop.f32.mrf.mxu0
      %v1150 = vadd.f32 0.0, %v1149
      %v1151 = vpop.f32.mrf.mxu0
      %v1152 = vadd.f32 0.0, %v1151
      %1153 = vmatmul.bf16.gmra.mxu0 %v233
      %v1154 = vpop.f32.mrf.mxu0
      %v1155 = vadd.f32 0.0, %v1154
      %v1156 = vpop.f32.mrf.mxu0
      %v1157 = vadd.f32 0.0, %v1156
      %1158 = vmatmul.bf16.gmra.mxu0 %v234
      %v1159 = vpop.f32.mrf.mxu0
      %v1160 = vadd.f32 0.0, %v1159
      %v1161 = vpop.f32.mrf.mxu0
      %v1162 = vadd.f32 0.0, %v1161
      %1163 = vmatmul.bf16.gmra.mxu0 %v235
      %v1164 = vpop.f32.mrf.mxu0
      %v1165 = vadd.f32 0.0, %v1164
      %v1166 = vpop.f32.mrf.mxu0
      %v1167 = vadd.f32 0.0, %v1166
      %1168 = vmatmul.bf16.gmra.mxu0 %v236
      %v1169 = vpop.f32.mrf.mxu0
      %v1170 = vadd.f32 0.0, %v1169
      %v1171 = vpop.f32.mrf.mxu0
      %v1172 = vadd.f32 0.0, %v1171
      %1173 = vmatmul.bf16.gmra.mxu0 %v237
      %v1174 = vpop.f32.mrf.mxu0
      %v1175 = vadd.f32 0.0, %v1174
      %v1176 = vpop.f32.mrf.mxu0
      %v1177 = vadd.f32 0.0, %v1176
      %1178 = vmatmul.bf16.gmra.mxu0 %v238
      %v1179 = vpop.f32.mrf.mxu0
      %v1180 = vadd.f32 0.0, %v1179
      %v1181 = vpop.f32.mrf.mxu0
      %v1182 = vadd.f32 0.0, %v1181
      %1183 = vmatmul.bf16.gmra.mxu0 %v239
      %v1184 = vpop.f32.mrf.mxu0
      %v1185 = vadd.f32 0.0, %v1184
      %v1186 = vpop.f32.mrf.mxu0
      %v1187 = vadd.f32 0.0, %v1186
      %1188 = vmatmul.bf16.gmra.mxu0 %v1039
      %v1189 = vpop.f32.mrf.mxu0
      %v1190 = vadd.f32 0.0, %v1189
      %v1191 = vpop.f32.mrf.mxu0
      %v1192 = vadd.f32 0.0, %v1191
      %1193 = vdwg.mxu0
      %v1194 = vadd.f32 %v1007, %v1115
      %v1195 = vadd.f32 %v1008, %v1117
      %v1196 = vadd.f32 %v1009, %v1120
      %v1197 = vadd.f32 %v1010, %v1122
      %v1198 = vadd.f32 %v1011, %v1125
      %v1199 = vadd.f32 %v1012, %v1127
      %v1200 = vadd.f32 %v1013, %v1130
      %v1201 = vadd.f32 %v1014, %v1132
      %v1202 = vadd.f32 %v1015, %v1135
      %v1203 = vadd.f32 %v1016, %v1137
      %v1204 = vadd.f32 %v1017, %v1140
      %v1205 = vadd.f32 %v1018, %v1142
      %v1206 = vadd.f32 %v1019, %v1145
      %v1207 = vadd.f32 %v1020, %v1147
      %v1208 = vadd.f32 %v1021, %v1150
      %v1209 = vadd.f32 %v1022, %v1152
      %v1210 = vadd.f32 %v1023, %v1155
      %v1211 = vadd.f32 %v1024, %v1157
      %v1212 = vadd.f32 %v1025, %v1160
      %v1213 = vadd.f32 %v1026, %v1162
      %v1214 = vadd.f32 %v1027, %v1165
      %v1215 = vadd.f32 %v1028, %v1167
      %v1216 = vadd.f32 %v1029, %v1170
      %v1217 = vadd.f32 %v1030, %v1172
      %v1218 = vadd.f32 %v1031, %v1175
      %v1219 = vadd.f32 %v1032, %v1177
      %v1220 = vadd.f32 %v1033, %v1180
      %v1221 = vadd.f32 %v1034, %v1182
      %v1222 = vadd.f32 %v1035, %v1185
      %v1223 = vadd.f32 %v1036, %v1187
      %v1224 = vadd.f32 %v1037, %v1190
      %v1225 = vadd.f32 %v1038, %v1192
      %v1229 = vrot.slane %v218, 1
      %v1230 = vrot.slane %v219, 1
      %v1231 = vsel %vm304, %v1229, %v1230
      %v1232 = vrot.slane %v220, 1
      %v1233 = vsel %vm304, %v1230, %v1232
      %v1236 = vpack.c.bf16 %v1233, %v1231
      %s1237 = scalar_lea.vmem %s1, 256
      %v1238 = vld [vmem:[%s1237] sm:$0xf]
      %v1239 = vld [vmem:[%s1237 + $0x4] sm:$0xf]
      %v1240 = vld [vmem:[%s1237 + $0x8] sm:$0xf]
      %v1241 = vld [vmem:[%s1237 + $0xc] sm:$0xf]
      %v1242 = vld [vmem:[%s1237 + $0x10] sm:$0xf]
      %v1243 = vld [vmem:[%s1237 + $0x14] sm:$0xf]
      %v1244 = vld [vmem:[%s1237 + $0x18] sm:$0xf]
      %v1245 = vld [vmem:[%s1237 + $0x1c] sm:$0xf]
      %v1246 = vld [vmem:[%s1237 + $0x20] sm:$0xf]
      %v1247 = vld [vmem:[%s1237 + $0x24] sm:$0xf]
      %v1248 = vld [vmem:[%s1237 + $0x28] sm:$0xf]
      %v1249 = vld [vmem:[%s1237 + $0x2c] sm:$0xf]
      %v1250 = vld [vmem:[%s1237 + $0x30] sm:$0xf]
      %v1251 = vld [vmem:[%s1237 + $0x34] sm:$0xf]
      %v1252 = vld [vmem:[%s1237 + $0x38] sm:$0xf]
      %v1253 = vld [vmem:[%s1237 + $0x3c] sm:$0xf]
      %v1270 = vunpack.c.l.b16 %v1238
      %v1271 = vunpack.c.l.b16 %v1239
      %v1272 = vunpack.c.l.b16 %v1240
      %v1273 = vunpack.c.l.b16 %v1241
      %v1274 = vunpack.c.l.b16 %v1242
      %v1275 = vunpack.c.l.b16 %v1243
      %v1276 = vunpack.c.l.b16 %v1244
      %v1277 = vunpack.c.l.b16 %v1245
      %v1278 = vunpack.c.l.b16 %v1246
      %v1279 = vunpack.c.l.b16 %v1247
      %v1280 = vunpack.c.l.b16 %v1248
      %v1281 = vunpack.c.l.b16 %v1249
      %v1282 = vunpack.c.l.b16 %v1250
      %v1283 = vunpack.c.l.b16 %v1251
      %v1284 = vunpack.c.l.b16 %v1252
      %v1285 = vunpack.c.l.b16 %v1253
      %v1286 = vpack.c.b16 %v1271, %v1270
      %v1287 = vpack.c.b16 %v1273, %v1272
      %v1288 = vpack.c.b16 %v1275, %v1274
      %v1289 = vpack.c.b16 %v1277, %v1276
      %v1290 = vpack.c.b16 %v1279, %v1278
      %v1291 = vpack.c.b16 %v1281, %v1280
      %v1292 = vpack.c.b16 %v1283, %v1282
      %v1293 = vpack.c.b16 %v1285, %v1284
      %1302 = vmatpush.bf16.msra.mxu0 %v1293
      %1303 = vmatpush.bf16.msra.mxu0 %v1292
      %1304 = vmatpush.bf16.msra.mxu0 %v1291
      %1305 = vmatpush.bf16.msra.mxu0 %v1290
      %1306 = vmatpush.bf16.msra.mxu0 %v1289
      %1307 = vmatpush.bf16.msra.mxu0 %v1288
      %1308 = vmatpush.bf16.msra.mxu0 %v1287
      %1309 = vmatpush.bf16.msra.mxu0 %v1286
      %1310 = vmatmul.bf16.gmra.mxu0 %v418
      %v1311 = vpop.f32.mrf.mxu0
      %v1312 = vadd.f32 0.0, %v1311
      %v1313 = vpop.f32.mrf.mxu0
      %v1314 = vadd.f32 0.0, %v1313
      %1315 = vmatmul.bf16.gmra.mxu0 %v419
      %v1316 = vpop.f32.mrf.mxu0
      %v1317 = vadd.f32 0.0, %v1316
      %v1318 = vpop.f32.mrf.mxu0
      %v1319 = vadd.f32 0.0, %v1318
      %1320 = vmatmul.bf16.gmra.mxu0 %v420
      %v1321 = vpop.f32.mrf.mxu0
      %v1322 = vadd.f32 0.0, %v1321
      %v1323 = vpop.f32.mrf.mxu0
      %v1324 = vadd.f32 0.0, %v1323
      %1325 = vmatmul.bf16.gmra.mxu0 %v421
      %v1326 = vpop.f32.mrf.mxu0
      %v1327 = vadd.f32 0.0, %v1326
      %v1328 = vpop.f32.mrf.mxu0
      %v1329 = vadd.f32 0.0, %v1328
      %1330 = vmatmul.bf16.gmra.mxu0 %v422
      %v1331 = vpop.f32.mrf.mxu0
      %v1332 = vadd.f32 0.0, %v1331
      %v1333 = vpop.f32.mrf.mxu0
      %v1334 = vadd.f32 0.0, %v1333
      %1335 = vmatmul.bf16.gmra.mxu0 %v423
      %v1336 = vpop.f32.mrf.mxu0
      %v1337 = vadd.f32 0.0, %v1336
      %v1338 = vpop.f32.mrf.mxu0
      %v1339 = vadd.f32 0.0, %v1338
      %1340 = vmatmul.bf16.gmra.mxu0 %v424
      %v1341 = vpop.f32.mrf.mxu0
      %v1342 = vadd.f32 0.0, %v1341
      %v1343 = vpop.f32.mrf.mxu0
      %v1344 = vadd.f32 0.0, %v1343
      %1345 = vmatmul.bf16.gmra.mxu0 %v425
      %v1346 = vpop.f32.mrf.mxu0
      %v1347 = vadd.f32 0.0, %v1346
      %v1348 = vpop.f32.mrf.mxu0
      %v1349 = vadd.f32 0.0, %v1348
      %1350 = vmatmul.bf16.gmra.mxu0 %v426
      %v1351 = vpop.f32.mrf.mxu0
      %v1352 = vadd.f32 0.0, %v1351
      %v1353 = vpop.f32.mrf.mxu0
      %v1354 = vadd.f32 0.0, %v1353
      %1355 = vmatmul.bf16.gmra.mxu0 %v427
      %v1356 = vpop.f32.mrf.mxu0
      %v1357 = vadd.f32 0.0, %v1356
      %v1358 = vpop.f32.mrf.mxu0
      %v1359 = vadd.f32 0.0, %v1358
      %1360 = vmatmul.bf16.gmra.mxu0 %v428
      %v1361 = vpop.f32.mrf.mxu0
      %v1362 = vadd.f32 0.0, %v1361
      %v1363 = vpop.f32.mrf.mxu0
      %v1364 = vadd.f32 0.0, %v1363
      %1365 = vmatmul.bf16.gmra.mxu0 %v429
      %v1366 = vpop.f32.mrf.mxu0
      %v1367 = vadd.f32 0.0, %v1366
      %v1368 = vpop.f32.mrf.mxu0
      %v1369 = vadd.f32 0.0, %v1368
      %1370 = vmatmul.bf16.gmra.mxu0 %v430
      %v1371 = vpop.f32.mrf.mxu0
      %v1372 = vadd.f32 0.0, %v1371
      %v1373 = vpop.f32.mrf.mxu0
      %v1374 = vadd.f32 0.0, %v1373
      %1375 = vmatmul.bf16.gmra.mxu0 %v431
      %v1376 = vpop.f32.mrf.mxu0
      %v1377 = vadd.f32 0.0, %v1376
      %v1378 = vpop.f32.mrf.mxu0
      %v1379 = vadd.f32 0.0, %v1378
      %1380 = vmatmul.bf16.gmra.mxu0 %v432
      %v1381 = vpop.f32.mrf.mxu0
      %v1382 = vadd.f32 0.0, %v1381
      %v1383 = vpop.f32.mrf.mxu0
      %v1384 = vadd.f32 0.0, %v1383
      %1385 = vmatmul.bf16.gmra.mxu0 %v1236
      %v1386 = vpop.f32.mrf.mxu0
      %v1387 = vadd.f32 0.0, %v1386
      %v1388 = vpop.f32.mrf.mxu0
      %v1389 = vadd.f32 0.0, %v1388
      %1390 = vdwg.mxu0
      %v1391 = vadd.f32 %v1194, %v1312
      %v1392 = vadd.f32 %v1195, %v1314
      %v1393 = vadd.f32 %v1196, %v1317
      %v1394 = vadd.f32 %v1197, %v1319
      %v1395 = vadd.f32 %v1198, %v1322
      %v1396 = vadd.f32 %v1199, %v1324
      %v1397 = vadd.f32 %v1200, %v1327
      %v1398 = vadd.f32 %v1201, %v1329
      %v1399 = vadd.f32 %v1202, %v1332
      %v1400 = vadd.f32 %v1203, %v1334
      %v1401 = vadd.f32 %v1204, %v1337
      %v1402 = vadd.f32 %v1205, %v1339
      %v1403 = vadd.f32 %v1206, %v1342
      %v1404 = vadd.f32 %v1207, %v1344
      %v1405 = vadd.f32 %v1208, %v1347
      %v1406 = vadd.f32 %v1209, %v1349
      %v1407 = vadd.f32 %v1210, %v1352
      %v1408 = vadd.f32 %v1211, %v1354
      %v1409 = vadd.f32 %v1212, %v1357
      %v1410 = vadd.f32 %v1213, %v1359
      %v1411 = vadd.f32 %v1214, %v1362
      %v1412 = vadd.f32 %v1215, %v1364
      %v1413 = vadd.f32 %v1216, %v1367
      %v1414 = vadd.f32 %v1217, %v1369
      %v1415 = vadd.f32 %v1218, %v1372
      %v1416 = vadd.f32 %v1219, %v1374
      %v1417 = vadd.f32 %v1220, %v1377
      %v1418 = vadd.f32 %v1221, %v1379
      %v1419 = vadd.f32 %v1222, %v1382
      %v1420 = vadd.f32 %v1223, %v1384
      %v1421 = vadd.f32 %v1224, %v1387
      %v1422 = vadd.f32 %v1225, %v1389
      %v1423 = vrot.slane %v218, 2
      %v1424 = vrot.slane %v219, 2
      %v1425 = vsel %vm724, %v1423, %v1424
      %v1426 = vrot.slane %v220, 2
      %v1427 = vsel %vm724, %v1424, %v1426
      %v1430 = vpack.c.bf16 %v1427, %v1425
      %s1431 = scalar_lea.vmem %s1, 320
      %v1432 = vld [vmem:[%s1431] sm:$0xf]
      %v1433 = vld [vmem:[%s1431 + $0x4] sm:$0xf]
      %v1434 = vld [vmem:[%s1431 + $0x8] sm:$0xf]
      %v1435 = vld [vmem:[%s1431 + $0xc] sm:$0xf]
      %v1436 = vld [vmem:[%s1431 + $0x10] sm:$0xf]
      %v1437 = vld [vmem:[%s1431 + $0x14] sm:$0xf]
      %v1438 = vld [vmem:[%s1431 + $0x18] sm:$0xf]
      %v1439 = vld [vmem:[%s1431 + $0x1c] sm:$0xf]
      %v1440 = vld [vmem:[%s1431 + $0x20] sm:$0xf]
      %v1441 = vld [vmem:[%s1431 + $0x24] sm:$0xf]
      %v1442 = vld [vmem:[%s1431 + $0x28] sm:$0xf]
      %v1443 = vld [vmem:[%s1431 + $0x2c] sm:$0xf]
      %v1444 = vld [vmem:[%s1431 + $0x30] sm:$0xf]
      %v1445 = vld [vmem:[%s1431 + $0x34] sm:$0xf]
      %v1446 = vld [vmem:[%s1431 + $0x38] sm:$0xf]
      %v1447 = vld [vmem:[%s1431 + $0x3c] sm:$0xf]
      %v1464 = vunpack.c.l.b16 %v1432
      %v1465 = vunpack.c.l.b16 %v1433
      %v1466 = vunpack.c.l.b16 %v1434
      %v1467 = vunpack.c.l.b16 %v1435
      %v1468 = vunpack.c.l.b16 %v1436
      %v1469 = vunpack.c.l.b16 %v1437
      %v1470 = vunpack.c.l.b16 %v1438
      %v1471 = vunpack.c.l.b16 %v1439
      %v1472 = vunpack.c.l.b16 %v1440
      %v1473 = vunpack.c.l.b16 %v1441
      %v1474 = vunpack.c.l.b16 %v1442
      %v1475 = vunpack.c.l.b16 %v1443
      %v1476 = vunpack.c.l.b16 %v1444
      %v1477 = vunpack.c.l.b16 %v1445
      %v1478 = vunpack.c.l.b16 %v1446
      %v1479 = vunpack.c.l.b16 %v1447
      %v1480 = vpack.c.b16 %v1465, %v1464
      %v1481 = vpack.c.b16 %v1467, %v1466
      %v1482 = vpack.c.b16 %v1469, %v1468
      %v1483 = vpack.c.b16 %v1471, %v1470
      %v1484 = vpack.c.b16 %v1473, %v1472
      %v1485 = vpack.c.b16 %v1475, %v1474
      %v1486 = vpack.c.b16 %v1477, %v1476
      %v1487 = vpack.c.b16 %v1479, %v1478
      %1496 = vmatpush.bf16.msra.mxu0 %v1487
      %1497 = vmatpush.bf16.msra.mxu0 %v1486
      %1498 = vmatpush.bf16.msra.mxu0 %v1485
      %1499 = vmatpush.bf16.msra.mxu0 %v1484
      %1500 = vmatpush.bf16.msra.mxu0 %v1483
      %1501 = vmatpush.bf16.msra.mxu0 %v1482
      %1502 = vmatpush.bf16.msra.mxu0 %v1481
      %1503 = vmatpush.bf16.msra.mxu0 %v1480
      %1504 = vmatmul.bf16.gmra.mxu0 %v838
      %v1505 = vpop.f32.mrf.mxu0
      %v1506 = vadd.f32 0.0, %v1505
      %v1507 = vpop.f32.mrf.mxu0
      %v1508 = vadd.f32 0.0, %v1507
      %1509 = vmatmul.bf16.gmra.mxu0 %v839
      %v1510 = vpop.f32.mrf.mxu0
      %v1511 = vadd.f32 0.0, %v1510
      %v1512 = vpop.f32.mrf.mxu0
      %v1513 = vadd.f32 0.0, %v1512
      %1514 = vmatmul.bf16.gmra.mxu0 %v840
      %v1515 = vpop.f32.mrf.mxu0
      %v1516 = vadd.f32 0.0, %v1515
      %v1517 = vpop.f32.mrf.mxu0
      %v1518 = vadd.f32 0.0, %v1517
      %1519 = vmatmul.bf16.gmra.mxu0 %v841
      %v1520 = vpop.f32.mrf.mxu0
      %v1521 = vadd.f32 0.0, %v1520
      %v1522 = vpop.f32.mrf.mxu0
      %v1523 = vadd.f32 0.0, %v1522
      %1524 = vmatmul.bf16.gmra.mxu0 %v842
      %v1525 = vpop.f32.mrf.mxu0
      %v1526 = vadd.f32 0.0, %v1525
      %v1527 = vpop.f32.mrf.mxu0
      %v1528 = vadd.f32 0.0, %v1527
      %1529 = vmatmul.bf16.gmra.mxu0 %v843
      %v1530 = vpop.f32.mrf.mxu0
      %v1531 = vadd.f32 0.0, %v1530
      %v1532 = vpop.f32.mrf.mxu0
      %v1533 = vadd.f32 0.0, %v1532
      %1534 = vmatmul.bf16.gmra.mxu0 %v844
      %v1535 = vpop.f32.mrf.mxu0
      %v1536 = vadd.f32 0.0, %v1535
      %v1537 = vpop.f32.mrf.mxu0
      %v1538 = vadd.f32 0.0, %v1537
      %1539 = vmatmul.bf16.gmra.mxu0 %v845
      %v1540 = vpop.f32.mrf.mxu0
      %v1541 = vadd.f32 0.0, %v1540
      %v1542 = vpop.f32.mrf.mxu0
      %v1543 = vadd.f32 0.0, %v1542
      %1544 = vmatmul.bf16.gmra.mxu0 %v846
      %v1545 = vpop.f32.mrf.mxu0
      %v1546 = vadd.f32 0.0, %v1545
      %v1547 = vpop.f32.mrf.mxu0
      %v1548 = vadd.f32 0.0, %v1547
      %1549 = vmatmul.bf16.gmra.mxu0 %v847
      %v1550 = vpop.f32.mrf.mxu0
      %v1551 = vadd.f32 0.0, %v1550
      %v1552 = vpop.f32.mrf.mxu0
      %v1553 = vadd.f32 0.0, %v1552
      %1554 = vmatmul.bf16.gmra.mxu0 %v848
      %v1555 = vpop.f32.mrf.mxu0
      %v1556 = vadd.f32 0.0, %v1555
      %v1557 = vpop.f32.mrf.mxu0
      %v1558 = vadd.f32 0.0, %v1557
      %1559 = vmatmul.bf16.gmra.mxu0 %v849
      %v1560 = vpop.f32.mrf.mxu0
      %v1561 = vadd.f32 0.0, %v1560
      %v1562 = vpop.f32.mrf.mxu0
      %v1563 = vadd.f32 0.0, %v1562
      %1564 = vmatmul.bf16.gmra.mxu0 %v850
      %v1565 = vpop.f32.mrf.mxu0
      %v1566 = vadd.f32 0.0, %v1565
      %v1567 = vpop.f32.mrf.mxu0
      %v1568 = vadd.f32 0.0, %v1567
      %1569 = vmatmul.bf16.gmra.mxu0 %v851
      %v1570 = vpop.f32.mrf.mxu0
      %v1571 = vadd.f32 0.0, %v1570
      %v1572 = vpop.f32.mrf.mxu0
      %v1573 = vadd.f32 0.0, %v1572
      %1574 = vmatmul.bf16.gmra.mxu0 %v852
      %v1575 = vpop.f32.mrf.mxu0
      %v1576 = vadd.f32 0.0, %v1575
      %v1577 = vpop.f32.mrf.mxu0
      %v1578 = vadd.f32 0.0, %v1577
      %1579 = vmatmul.bf16.gmra.mxu0 %v1430
      %v1580 = vpop.f32.mrf.mxu0
      %v1581 = vadd.f32 0.0, %v1580
      %v1582 = vpop.f32.mrf.mxu0
      %v1583 = vadd.f32 0.0, %v1582
      %1584 = vdwg.mxu0
      %v1585 = vadd.f32 %v1391, %v1506
      %v1586 = vadd.f32 %v1392, %v1508
      %v1587 = vadd.f32 %v1393, %v1511
      %v1588 = vadd.f32 %v1394, %v1513
      %v1589 = vadd.f32 %v1395, %v1516
      %v1590 = vadd.f32 %v1396, %v1518
      %v1591 = vadd.f32 %v1397, %v1521
      %v1592 = vadd.f32 %v1398, %v1523
      %v1593 = vadd.f32 %v1399, %v1526
      %v1594 = vadd.f32 %v1400, %v1528
      %v1595 = vadd.f32 %v1401, %v1531
      %v1596 = vadd.f32 %v1402, %v1533
      %v1597 = vadd.f32 %v1403, %v1536
      %v1598 = vadd.f32 %v1404, %v1538
      %v1599 = vadd.f32 %v1405, %v1541
      %v1600 = vadd.f32 %v1406, %v1543
      %v1601 = vadd.f32 %v1407, %v1546
      %v1602 = vadd.f32 %v1408, %v1548
      %v1603 = vadd.f32 %v1409, %v1551
      %v1604 = vadd.f32 %v1410, %v1553
      %v1605 = vadd.f32 %v1411, %v1556
      %v1606 = vadd.f32 %v1412, %v1558
      %v1607 = vadd.f32 %v1413, %v1561
      %v1608 = vadd.f32 %v1414, %v1563
      %v1609 = vadd.f32 %v1415, %v1566
      %v1610 = vadd.f32 %v1416, %v1568
      %v1611 = vadd.f32 %v1417, %v1571
      %v1612 = vadd.f32 %v1418, %v1573
      %v1613 = vadd.f32 %v1419, %v1576
      %v1614 = vadd.f32 %v1420, %v1578
      %v1615 = vadd.f32 %v1421, %v1581
      %v1616 = vadd.f32 %v1422, %v1583
      %v1617 = vpack.c.bf16 %v222, %v221
      %s1618 = scalar_lea.vmem %s1, 384
      %v1619 = vld [vmem:[%s1618] sm:$0xf]
      %v1620 = vld [vmem:[%s1618 + $0x4] sm:$0xf]
      %v1621 = vld [vmem:[%s1618 + $0x8] sm:$0xf]
      %v1622 = vld [vmem:[%s1618 + $0xc] sm:$0xf]
      %v1623 = vld [vmem:[%s1618 + $0x10] sm:$0xf]
      %v1624 = vld [vmem:[%s1618 + $0x14] sm:$0xf]
      %v1625 = vld [vmem:[%s1618 + $0x18] sm:$0xf]
      %v1626 = vld [vmem:[%s1618 + $0x1c] sm:$0xf]
      %v1627 = vld [vmem:[%s1618 + $0x20] sm:$0xf]
      %v1628 = vld [vmem:[%s1618 + $0x24] sm:$0xf]
      %v1629 = vld [vmem:[%s1618 + $0x28] sm:$0xf]
      %v1630 = vld [vmem:[%s1618 + $0x2c] sm:$0xf]
      %v1631 = vld [vmem:[%s1618 + $0x30] sm:$0xf]
      %v1632 = vld [vmem:[%s1618 + $0x34] sm:$0xf]
      %v1633 = vld [vmem:[%s1618 + $0x38] sm:$0xf]
      %v1634 = vld [vmem:[%s1618 + $0x3c] sm:$0xf]
      %v1651 = vunpack.c.l.b16 %v1619
      %v1652 = vunpack.c.l.b16 %v1620
      %v1653 = vunpack.c.l.b16 %v1621
      %v1654 = vunpack.c.l.b16 %v1622
      %v1655 = vunpack.c.l.b16 %v1623
      %v1656 = vunpack.c.l.b16 %v1624
      %v1657 = vunpack.c.l.b16 %v1625
      %v1658 = vunpack.c.l.b16 %v1626
      %v1659 = vunpack.c.l.b16 %v1627
      %v1660 = vunpack.c.l.b16 %v1628
      %v1661 = vunpack.c.l.b16 %v1629
      %v1662 = vunpack.c.l.b16 %v1630
      %v1663 = vunpack.c.l.b16 %v1631
      %v1664 = vunpack.c.l.b16 %v1632
      %v1665 = vunpack.c.l.b16 %v1633
      %v1666 = vunpack.c.l.b16 %v1634
      %v1667 = vpack.c.b16 %v1652, %v1651
      %v1668 = vpack.c.b16 %v1654, %v1653
      %v1669 = vpack.c.b16 %v1656, %v1655
      %v1670 = vpack.c.b16 %v1658, %v1657
      %v1671 = vpack.c.b16 %v1660, %v1659
      %v1672 = vpack.c.b16 %v1662, %v1661
      %v1673 = vpack.c.b16 %v1664, %v1663
      %v1674 = vpack.c.b16 %v1666, %v1665
      %1683 = vmatpush.bf16.msra.mxu0 %v1674
      %1684 = vmatpush.bf16.msra.mxu0 %v1673
      %1685 = vmatpush.bf16.msra.mxu0 %v1672
      %1686 = vmatpush.bf16.msra.mxu0 %v1671
      %1687 = vmatpush.bf16.msra.mxu0 %v1670
      %1688 = vmatpush.bf16.msra.mxu0 %v1669
      %1689 = vmatpush.bf16.msra.mxu0 %v1668
      %1690 = vmatpush.bf16.msra.mxu0 %v1667
      %1691 = vmatmul.bf16.gmra.mxu0 %v226
      %v1692 = vpop.f32.mrf.mxu0
      %v1693 = vadd.f32 0.0, %v1692
      %v1694 = vpop.f32.mrf.mxu0
      %v1695 = vadd.f32 0.0, %v1694
      %1696 = vmatmul.bf16.gmra.mxu0 %v227
      %v1697 = vpop.f32.mrf.mxu0
      %v1698 = vadd.f32 0.0, %v1697
      %v1699 = vpop.f32.mrf.mxu0
      %v1700 = vadd.f32 0.0, %v1699
      %1701 = vmatmul.bf16.gmra.mxu0 %v228
      %v1702 = vpop.f32.mrf.mxu0
      %v1703 = vadd.f32 0.0, %v1702
      %v1704 = vpop.f32.mrf.mxu0
      %v1705 = vadd.f32 0.0, %v1704
      %1706 = vmatmul.bf16.gmra.mxu0 %v229
      %v1707 = vpop.f32.mrf.mxu0
      %v1708 = vadd.f32 0.0, %v1707
      %v1709 = vpop.f32.mrf.mxu0
      %v1710 = vadd.f32 0.0, %v1709
      %1711 = vmatmul.bf16.gmra.mxu0 %v230
      %v1712 = vpop.f32.mrf.mxu0
      %v1713 = vadd.f32 0.0, %v1712
      %v1714 = vpop.f32.mrf.mxu0
      %v1715 = vadd.f32 0.0, %v1714
      %1716 = vmatmul.bf16.gmra.mxu0 %v231
      %v1717 = vpop.f32.mrf.mxu0
      %v1718 = vadd.f32 0.0, %v1717
      %v1719 = vpop.f32.mrf.mxu0
      %v1720 = vadd.f32 0.0, %v1719
      %1721 = vmatmul.bf16.gmra.mxu0 %v232
      %v1722 = vpop.f32.mrf.mxu0
      %v1723 = vadd.f32 0.0, %v1722
      %v1724 = vpop.f32.mrf.mxu0
      %v1725 = vadd.f32 0.0, %v1724
      %1726 = vmatmul.bf16.gmra.mxu0 %v233
      %v1727 = vpop.f32.mrf.mxu0
      %v1728 = vadd.f32 0.0, %v1727
      %v1729 = vpop.f32.mrf.mxu0
      %v1730 = vadd.f32 0.0, %v1729
      %1731 = vmatmul.bf16.gmra.mxu0 %v234
      %v1732 = vpop.f32.mrf.mxu0
      %v1733 = vadd.f32 0.0, %v1732
      %v1734 = vpop.f32.mrf.mxu0
      %v1735 = vadd.f32 0.0, %v1734
      %1736 = vmatmul.bf16.gmra.mxu0 %v235
      %v1737 = vpop.f32.mrf.mxu0
      %v1738 = vadd.f32 0.0, %v1737
      %v1739 = vpop.f32.mrf.mxu0
      %v1740 = vadd.f32 0.0, %v1739
      %1741 = vmatmul.bf16.gmra.mxu0 %v236
      %v1742 = vpop.f32.mrf.mxu0
      %v1743 = vadd.f32 0.0, %v1742
      %v1744 = vpop.f32.mrf.mxu0
      %v1745 = vadd.f32 0.0, %v1744
      %1746 = vmatmul.bf16.gmra.mxu0 %v237
      %v1747 = vpop.f32.mrf.mxu0
      %v1748 = vadd.f32 0.0, %v1747
      %v1749 = vpop.f32.mrf.mxu0
      %v1750 = vadd.f32 0.0, %v1749
      %1751 = vmatmul.bf16.gmra.mxu0 %v238
      %v1752 = vpop.f32.mrf.mxu0
      %v1753 = vadd.f32 0.0, %v1752
      %v1754 = vpop.f32.mrf.mxu0
      %v1755 = vadd.f32 0.0, %v1754
      %1756 = vmatmul.bf16.gmra.mxu0 %v239
      %v1757 = vpop.f32.mrf.mxu0
      %v1758 = vadd.f32 0.0, %v1757
      %v1759 = vpop.f32.mrf.mxu0
      %v1760 = vadd.f32 0.0, %v1759
      %1761 = vmatmul.bf16.gmra.mxu0 %v1039
      %v1762 = vpop.f32.mrf.mxu0
      %v1763 = vadd.f32 0.0, %v1762
      %v1764 = vpop.f32.mrf.mxu0
      %v1765 = vadd.f32 0.0, %v1764
      %1766 = vmatmul.bf16.gmra.mxu0 %v1617
      %v1767 = vpop.f32.mrf.mxu0
      %v1768 = vadd.f32 0.0, %v1767
      %v1769 = vpop.f32.mrf.mxu0
      %v1770 = vadd.f32 0.0, %v1769
      %1771 = vdwg.mxu0
      %v1772 = vadd.f32 %v1585, %v1693
      %v1773 = vadd.f32 %v1586, %v1695
      %v1774 = vadd.f32 %v1587, %v1698
      %v1775 = vadd.f32 %v1588, %v1700
      %v1776 = vadd.f32 %v1589, %v1703
      %v1777 = vadd.f32 %v1590, %v1705
      %v1778 = vadd.f32 %v1591, %v1708
      %v1779 = vadd.f32 %v1592, %v1710
      %v1780 = vadd.f32 %v1593, %v1713
      %v1781 = vadd.f32 %v1594, %v1715
      %v1782 = vadd.f32 %v1595, %v1718
      %v1783 = vadd.f32 %v1596, %v1720
      %v1784 = vadd.f32 %v1597, %v1723
      %v1785 = vadd.f32 %v1598, %v1725
      %v1786 = vadd.f32 %v1599, %v1728
      %v1787 = vadd.f32 %v1600, %v1730
      %v1788 = vadd.f32 %v1601, %v1733
      %v1789 = vadd.f32 %v1602, %v1735
      %v1790 = vadd.f32 %v1603, %v1738
      %v1791 = vadd.f32 %v1604, %v1740
      %v1792 = vadd.f32 %v1605, %v1743
      %v1793 = vadd.f32 %v1606, %v1745
      %v1794 = vadd.f32 %v1607, %v1748
      %v1795 = vadd.f32 %v1608, %v1750
      %v1796 = vadd.f32 %v1609, %v1753
      %v1797 = vadd.f32 %v1610, %v1755
      %v1798 = vadd.f32 %v1611, %v1758
      %v1799 = vadd.f32 %v1612, %v1760
      %v1800 = vadd.f32 %v1613, %v1763
      %v1801 = vadd.f32 %v1614, %v1765
      %v1802 = vadd.f32 %v1615, %v1768
      %v1803 = vadd.f32 %v1616, %v1770
      %v1807 = vrot.slane %v221, 1
      %v1808 = vrot.slane %v222, 1
      %v1809 = vsel %vm304, %v1807, %v1808
      %v1810 = vrot.slane %v223, 1
      %v1811 = vsel %vm304, %v1808, %v1810
      %v1814 = vpack.c.bf16 %v1811, %v1809
      %s1815 = scalar_lea.vmem %s1, 448
      %v1816 = vld [vmem:[%s1815] sm:$0xf]
      %v1817 = vld [vmem:[%s1815 + $0x4] sm:$0xf]
      %v1818 = vld [vmem:[%s1815 + $0x8] sm:$0xf]
      %v1819 = vld [vmem:[%s1815 + $0xc] sm:$0xf]
      %v1820 = vld [vmem:[%s1815 + $0x10] sm:$0xf]
      %v1821 = vld [vmem:[%s1815 + $0x14] sm:$0xf]
      %v1822 = vld [vmem:[%s1815 + $0x18] sm:$0xf]
      %v1823 = vld [vmem:[%s1815 + $0x1c] sm:$0xf]
      %v1824 = vld [vmem:[%s1815 + $0x20] sm:$0xf]
      %v1825 = vld [vmem:[%s1815 + $0x24] sm:$0xf]
      %v1826 = vld [vmem:[%s1815 + $0x28] sm:$0xf]
      %v1827 = vld [vmem:[%s1815 + $0x2c] sm:$0xf]
      %v1828 = vld [vmem:[%s1815 + $0x30] sm:$0xf]
      %v1829 = vld [vmem:[%s1815 + $0x34] sm:$0xf]
      %v1830 = vld [vmem:[%s1815 + $0x38] sm:$0xf]
      %v1831 = vld [vmem:[%s1815 + $0x3c] sm:$0xf]
      %v1848 = vunpack.c.l.b16 %v1816
      %v1849 = vunpack.c.l.b16 %v1817
      %v1850 = vunpack.c.l.b16 %v1818
      %v1851 = vunpack.c.l.b16 %v1819
      %v1852 = vunpack.c.l.b16 %v1820
      %v1853 = vunpack.c.l.b16 %v1821
      %v1854 = vunpack.c.l.b16 %v1822
      %v1855 = vunpack.c.l.b16 %v1823
      %v1856 = vunpack.c.l.b16 %v1824
      %v1857 = vunpack.c.l.b16 %v1825
      %v1858 = vunpack.c.l.b16 %v1826
      %v1859 = vunpack.c.l.b16 %v1827
      %v1860 = vunpack.c.l.b16 %v1828
      %v1861 = vunpack.c.l.b16 %v1829
      %v1862 = vunpack.c.l.b16 %v1830
      %v1863 = vunpack.c.l.b16 %v1831
      %v1864 = vpack.c.b16 %v1849, %v1848
      %v1865 = vpack.c.b16 %v1851, %v1850
      %v1866 = vpack.c.b16 %v1853, %v1852
      %v1867 = vpack.c.b16 %v1855, %v1854
      %v1868 = vpack.c.b16 %v1857, %v1856
      %v1869 = vpack.c.b16 %v1859, %v1858
      %v1870 = vpack.c.b16 %v1861, %v1860
      %v1871 = vpack.c.b16 %v1863, %v1862
      %1880 = vmatpush.bf16.msra.mxu0 %v1871
      %1881 = vmatpush.bf16.msra.mxu0 %v1870
      %1882 = vmatpush.bf16.msra.mxu0 %v1869
      %1883 = vmatpush.bf16.msra.mxu0 %v1868
      %1884 = vmatpush.bf16.msra.mxu0 %v1867
      %1885 = vmatpush.bf16.msra.mxu0 %v1866
      %1886 = vmatpush.bf16.msra.mxu0 %v1865
      %1887 = vmatpush.bf16.msra.mxu0 %v1864
      %1888 = vmatmul.bf16.gmra.mxu0 %v419
      %v1889 = vpop.f32.mrf.mxu0
      %v1890 = vadd.f32 0.0, %v1889
      %v1891 = vpop.f32.mrf.mxu0
      %v1892 = vadd.f32 0.0, %v1891
      %1893 = vmatmul.bf16.gmra.mxu0 %v420
      %v1894 = vpop.f32.mrf.mxu0
      %v1895 = vadd.f32 0.0, %v1894
      %v1896 = vpop.f32.mrf.mxu0
      %v1897 = vadd.f32 0.0, %v1896
      %1898 = vmatmul.bf16.gmra.mxu0 %v421
      %v1899 = vpop.f32.mrf.mxu0
      %v1900 = vadd.f32 0.0, %v1899
      %v1901 = vpop.f32.mrf.mxu0
      %v1902 = vadd.f32 0.0, %v1901
      %1903 = vmatmul.bf16.gmra.mxu0 %v422
      %v1904 = vpop.f32.mrf.mxu0
      %v1905 = vadd.f32 0.0, %v1904
      %v1906 = vpop.f32.mrf.mxu0
      %v1907 = vadd.f32 0.0, %v1906
      %1908 = vmatmul.bf16.gmra.mxu0 %v423
      %v1909 = vpop.f32.mrf.mxu0
      %v1910 = vadd.f32 0.0, %v1909
      %v1911 = vpop.f32.mrf.mxu0
      %v1912 = vadd.f32 0.0, %v1911
      %1913 = vmatmul.bf16.gmra.mxu0 %v424
      %v1914 = vpop.f32.mrf.mxu0
      %v1915 = vadd.f32 0.0, %v1914
      %v1916 = vpop.f32.mrf.mxu0
      %v1917 = vadd.f32 0.0, %v1916
      %1918 = vmatmul.bf16.gmra.mxu0 %v425
      %v1919 = vpop.f32.mrf.mxu0
      %v1920 = vadd.f32 0.0, %v1919
      %v1921 = vpop.f32.mrf.mxu0
      %v1922 = vadd.f32 0.0, %v1921
      %1923 = vmatmul.bf16.gmra.mxu0 %v426
      %v1924 = vpop.f32.mrf.mxu0
      %v1925 = vadd.f32 0.0, %v1924
      %v1926 = vpop.f32.mrf.mxu0
      %v1927 = vadd.f32 0.0, %v1926
      %1928 = vmatmul.bf16.gmra.mxu0 %v427
      %v1929 = vpop.f32.mrf.mxu0
      %v1930 = vadd.f32 0.0, %v1929
      %v1931 = vpop.f32.mrf.mxu0
      %v1932 = vadd.f32 0.0, %v1931
      %1933 = vmatmul.bf16.gmra.mxu0 %v428
      %v1934 = vpop.f32.mrf.mxu0
      %v1935 = vadd.f32 0.0, %v1934
      %v1936 = vpop.f32.mrf.mxu0
      %v1937 = vadd.f32 0.0, %v1936
      %1938 = vmatmul.bf16.gmra.mxu0 %v429
      %v1939 = vpop.f32.mrf.mxu0
      %v1940 = vadd.f32 0.0, %v1939
      %v1941 = vpop.f32.mrf.mxu0
      %v1942 = vadd.f32 0.0, %v1941
      %1943 = vmatmul.bf16.gmra.mxu0 %v430
      %v1944 = vpop.f32.mrf.mxu0
      %v1945 = vadd.f32 0.0, %v1944
      %v1946 = vpop.f32.mrf.mxu0
      %v1947 = vadd.f32 0.0, %v1946
      %1948 = vmatmul.bf16.gmra.mxu0 %v431
      %v1949 = vpop.f32.mrf.mxu0
      %v1950 = vadd.f32 0.0, %v1949
      %v1951 = vpop.f32.mrf.mxu0
      %v1952 = vadd.f32 0.0, %v1951
      %1953 = vmatmul.bf16.gmra.mxu0 %v432
      %v1954 = vpop.f32.mrf.mxu0
      %v1955 = vadd.f32 0.0, %v1954
      %v1956 = vpop.f32.mrf.mxu0
      %v1957 = vadd.f32 0.0, %v1956
      %1958 = vmatmul.bf16.gmra.mxu0 %v1236
      %v1959 = vpop.f32.mrf.mxu0
      %v1960 = vadd.f32 0.0, %v1959
      %v1961 = vpop.f32.mrf.mxu0
      %v1962 = vadd.f32 0.0, %v1961
      %1963 = vmatmul.bf16.gmra.mxu0 %v1814
      %v1964 = vpop.f32.mrf.mxu0
      %v1965 = vadd.f32 0.0, %v1964
      %v1966 = vpop.f32.mrf.mxu0
      %v1967 = vadd.f32 0.0, %v1966
      %1968 = vdwg.mxu0
      %v1969 = vadd.f32 %v1772, %v1890
      %v1970 = vadd.f32 %v1773, %v1892
      %v1971 = vadd.f32 %v1774, %v1895
      %v1972 = vadd.f32 %v1775, %v1897
      %v1973 = vadd.f32 %v1776, %v1900
      %v1974 = vadd.f32 %v1777, %v1902
      %v1975 = vadd.f32 %v1778, %v1905
      %v1976 = vadd.f32 %v1779, %v1907
      %v1977 = vadd.f32 %v1780, %v1910
      %v1978 = vadd.f32 %v1781, %v1912
      %v1979 = vadd.f32 %v1782, %v1915
      %v1980 = vadd.f32 %v1783, %v1917
      %v1981 = vadd.f32 %v1784, %v1920
      %v1982 = vadd.f32 %v1785, %v1922
      %v1983 = vadd.f32 %v1786, %v1925
      %v1984 = vadd.f32 %v1787, %v1927
      %v1985 = vadd.f32 %v1788, %v1930
      %v1986 = vadd.f32 %v1789, %v1932
      %v1987 = vadd.f32 %v1790, %v1935
      %v1988 = vadd.f32 %v1791, %v1937
      %v1989 = vadd.f32 %v1792, %v1940
      %v1990 = vadd.f32 %v1793, %v1942
      %v1991 = vadd.f32 %v1794, %v1945
      %v1992 = vadd.f32 %v1795, %v1947
      %v1993 = vadd.f32 %v1796, %v1950
      %v1994 = vadd.f32 %v1797, %v1952
      %v1995 = vadd.f32 %v1798, %v1955
      %v1996 = vadd.f32 %v1799, %v1957
      %v1997 = vadd.f32 %v1800, %v1960
      %v1998 = vadd.f32 %v1801, %v1962
      %v1999 = vadd.f32 %v1802, %v1965
      %v2000 = vadd.f32 %v1803, %v1967
      %v2001 = vrot.slane %v221, 2
      %v2002 = vrot.slane %v222, 2
      %v2003 = vsel %vm724, %v2001, %v2002
      %v2004 = vrot.slane %v223, 2
      %v2005 = vsel %vm724, %v2002, %v2004
      %v2008 = vpack.c.bf16 %v2005, %v2003
      %s2009 = scalar_lea.vmem %s1, 512
      %v2010 = vld [vmem:[%s2009] sm:$0xf]
      %v2011 = vld [vmem:[%s2009 + $0x4] sm:$0xf]
      %v2012 = vld [vmem:[%s2009 + $0x8] sm:$0xf]
      %v2013 = vld [vmem:[%s2009 + $0xc] sm:$0xf]
      %v2014 = vld [vmem:[%s2009 + $0x10] sm:$0xf]
      %v2015 = vld [vmem:[%s2009 + $0x14] sm:$0xf]
      %v2016 = vld [vmem:[%s2009 + $0x18] sm:$0xf]
      %v2017 = vld [vmem:[%s2009 + $0x1c] sm:$0xf]
      %v2018 = vld [vmem:[%s2009 + $0x20] sm:$0xf]
      %v2019 = vld [vmem:[%s2009 + $0x24] sm:$0xf]
      %v2020 = vld [vmem:[%s2009 + $0x28] sm:$0xf]
      %v2021 = vld [vmem:[%s2009 + $0x2c] sm:$0xf]
      %v2022 = vld [vmem:[%s2009 + $0x30] sm:$0xf]
      %v2023 = vld [vmem:[%s2009 + $0x34] sm:$0xf]
      %v2024 = vld [vmem:[%s2009 + $0x38] sm:$0xf]
      %v2025 = vld [vmem:[%s2009 + $0x3c] sm:$0xf]
      %v2042 = vunpack.c.l.b16 %v2010
      %v2043 = vunpack.c.l.b16 %v2011
      %v2044 = vunpack.c.l.b16 %v2012
      %v2045 = vunpack.c.l.b16 %v2013
      %v2046 = vunpack.c.l.b16 %v2014
      %v2047 = vunpack.c.l.b16 %v2015
      %v2048 = vunpack.c.l.b16 %v2016
      %v2049 = vunpack.c.l.b16 %v2017
      %v2050 = vunpack.c.l.b16 %v2018
      %v2051 = vunpack.c.l.b16 %v2019
      %v2052 = vunpack.c.l.b16 %v2020
      %v2053 = vunpack.c.l.b16 %v2021
      %v2054 = vunpack.c.l.b16 %v2022
      %v2055 = vunpack.c.l.b16 %v2023
      %v2056 = vunpack.c.l.b16 %v2024
      %v2057 = vunpack.c.l.b16 %v2025
      %v2058 = vpack.c.b16 %v2043, %v2042
      %v2059 = vpack.c.b16 %v2045, %v2044
      %v2060 = vpack.c.b16 %v2047, %v2046
      %v2061 = vpack.c.b16 %v2049, %v2048
      %v2062 = vpack.c.b16 %v2051, %v2050
      %v2063 = vpack.c.b16 %v2053, %v2052
      %v2064 = vpack.c.b16 %v2055, %v2054
      %v2065 = vpack.c.b16 %v2057, %v2056
      %2074 = vmatpush.bf16.msra.mxu0 %v2065
      %2075 = vmatpush.bf16.msra.mxu0 %v2064
      %2076 = vmatpush.bf16.msra.mxu0 %v2063
      %2077 = vmatpush.bf16.msra.mxu0 %v2062
      %2078 = vmatpush.bf16.msra.mxu0 %v2061
      %2079 = vmatpush.bf16.msra.mxu0 %v2060
      %2080 = vmatpush.bf16.msra.mxu0 %v2059
      %2081 = vmatpush.bf16.msra.mxu0 %v2058
      %2082 = vmatmul.bf16.gmra.mxu0 %v839
      %v2083 = vpop.f32.mrf.mxu0
      %v2084 = vadd.f32 0.0, %v2083
      %v2085 = vpop.f32.mrf.mxu0
      %v2086 = vadd.f32 0.0, %v2085
      %2087 = vmatmul.bf16.gmra.mxu0 %v840
      %v2088 = vpop.f32.mrf.mxu0
      %v2089 = vadd.f32 0.0, %v2088
      %v2090 = vpop.f32.mrf.mxu0
      %v2091 = vadd.f32 0.0, %v2090
      %2092 = vmatmul.bf16.gmra.mxu0 %v841
      %v2093 = vpop.f32.mrf.mxu0
      %v2094 = vadd.f32 0.0, %v2093
      %v2095 = vpop.f32.mrf.mxu0
      %v2096 = vadd.f32 0.0, %v2095
      %2097 = vmatmul.bf16.gmra.mxu0 %v842
      %v2098 = vpop.f32.mrf.mxu0
      %v2099 = vadd.f32 0.0, %v2098
      %v2100 = vpop.f32.mrf.mxu0
      %v2101 = vadd.f32 0.0, %v2100
      %2102 = vmatmul.bf16.gmra.mxu0 %v843
      %v2103 = vpop.f32.mrf.mxu0
      %v2104 = vadd.f32 0.0, %v2103
      %v2105 = vpop.f32.mrf.mxu0
      %v2106 = vadd.f32 0.0, %v2105
      %2107 = vmatmul.bf16.gmra.mxu0 %v844
      %v2108 = vpop.f32.mrf.mxu0
      %v2109 = vadd.f32 0.0, %v2108
      %v2110 = vpop.f32.mrf.mxu0
      %v2111 = vadd.f32 0.0, %v2110
      %2112 = vmatmul.bf16.gmra.mxu0 %v845
      %v2113 = vpop.f32.mrf.mxu0
      %v2114 = vadd.f32 0.0, %v2113
      %v2115 = vpop.f32.mrf.mxu0
      %v2116 = vadd.f32 0.0, %v2115
      %2117 = vmatmul.bf16.gmra.mxu0 %v846
      %v2118 = vpop.f32.mrf.mxu0
      %v2119 = vadd.f32 0.0, %v2118
      %v2120 = vpop.f32.mrf.mxu0
      %v2121 = vadd.f32 0.0, %v2120
      %2122 = vmatmul.bf16.gmra.mxu0 %v847
      %v2123 = vpop.f32.mrf.mxu0
      %v2124 = vadd.f32 0.0, %v2123
      %v2125 = vpop.f32.mrf.mxu0
      %v2126 = vadd.f32 0.0, %v2125
      %2127 = vmatmul.bf16.gmra.mxu0 %v848
      %v2128 = vpop.f32.mrf.mxu0
      %v2129 = vadd.f32 0.0, %v2128
      %v2130 = vpop.f32.mrf.mxu0
      %v2131 = vadd.f32 0.0, %v2130
      %2132 = vmatmul.bf16.gmra.mxu0 %v849
      %v2133 = vpop.f32.mrf.mxu0
      %v2134 = vadd.f32 0.0, %v2133
      %v2135 = vpop.f32.mrf.mxu0
      %v2136 = vadd.f32 0.0, %v2135
      %2137 = vmatmul.bf16.gmra.mxu0 %v850
      %v2138 = vpop.f32.mrf.mxu0
      %v2139 = vadd.f32 0.0, %v2138
      %v2140 = vpop.f32.mrf.mxu0
      %v2141 = vadd.f32 0.0, %v2140
      %2142 = vmatmul.bf16.gmra.mxu0 %v851
      %v2143 = vpop.f32.mrf.mxu0
      %v2144 = vadd.f32 0.0, %v2143
      %v2145 = vpop.f32.mrf.mxu0
      %v2146 = vadd.f32 0.0, %v2145
      %2147 = vmatmul.bf16.gmra.mxu0 %v852
      %v2148 = vpop.f32.mrf.mxu0
      %v2149 = vadd.f32 0.0, %v2148
      %v2150 = vpop.f32.mrf.mxu0
      %v2151 = vadd.f32 0.0, %v2150
      %2152 = vmatmul.bf16.gmra.mxu0 %v1430
      %v2153 = vpop.f32.mrf.mxu0
      %v2154 = vadd.f32 0.0, %v2153
      %v2155 = vpop.f32.mrf.mxu0
      %v2156 = vadd.f32 0.0, %v2155
      %2157 = vmatmul.bf16.gmra.mxu0 %v2008
      %v2158 = vpop.f32.mrf.mxu0
      %v2159 = vadd.f32 0.0, %v2158
      %v2160 = vpop.f32.mrf.mxu0
      %v2161 = vadd.f32 0.0, %v2160
      %2162 = vdwg.mxu0
      %v2163 = vadd.f32 %v1969, %v2084
      %v2164 = vadd.f32 %v1970, %v2086
      %v2165 = vadd.f32 %v1971, %v2089
      %v2166 = vadd.f32 %v1972, %v2091
      %v2167 = vadd.f32 %v1973, %v2094
      %v2168 = vadd.f32 %v1974, %v2096
      %v2169 = vadd.f32 %v1975, %v2099
      %v2170 = vadd.f32 %v1976, %v2101
      %v2171 = vadd.f32 %v1977, %v2104
      %v2172 = vadd.f32 %v1978, %v2106
      %v2173 = vadd.f32 %v1979, %v2109
      %v2174 = vadd.f32 %v1980, %v2111
      %v2175 = vadd.f32 %v1981, %v2114
      %v2176 = vadd.f32 %v1982, %v2116
      %v2177 = vadd.f32 %v1983, %v2119
      %v2178 = vadd.f32 %v1984, %v2121
      %v2179 = vadd.f32 %v1985, %v2124
      %v2180 = vadd.f32 %v1986, %v2126
      %v2181 = vadd.f32 %v1987, %v2129
      %v2182 = vadd.f32 %v1988, %v2131
      %v2183 = vadd.f32 %v1989, %v2134
      %v2184 = vadd.f32 %v1990, %v2136
      %v2185 = vadd.f32 %v1991, %v2139
      %v2186 = vadd.f32 %v1992, %v2141
      %v2187 = vadd.f32 %v1993, %v2144
      %v2188 = vadd.f32 %v1994, %v2146
      %v2189 = vadd.f32 %v1995, %v2149
      %v2190 = vadd.f32 %v1996, %v2151
      %v2191 = vadd.f32 %v1997, %v2154
      %v2192 = vadd.f32 %v1998, %v2156
      %v2193 = vadd.f32 %v1999, %v2159
      %v2194 = vadd.f32 %v2000, %v2161
      %2195 = vst [vmem:[%s168] sm:$0xff] %v2163
      %2196 = vst [vmem:[%s168 + $0x8] sm:$0xff] %v2164
      %2197 = vst [vmem:[%s168 + $0x10] sm:$0xff] %v2165
      %2198 = vst [vmem:[%s168 + $0x18] sm:$0xff] %v2166
      %2199 = vst [vmem:[%s168 + $0x20] sm:$0xff] %v2167
      %2200 = vst [vmem:[%s168 + $0x28] sm:$0xff] %v2168
      %2201 = vst [vmem:[%s168 + $0x30] sm:$0xff] %v2169
      %2202 = vst [vmem:[%s168 + $0x38] sm:$0xff] %v2170
      %2203 = vst [vmem:[%s168 + $0x40] sm:$0xff] %v2171
      %2204 = vst [vmem:[%s168 + $0x48] sm:$0xff] %v2172
      %2205 = vst [vmem:[%s168 + $0x50] sm:$0xff] %v2173
      %2206 = vst [vmem:[%s168 + $0x58] sm:$0xff] %v2174
      %2207 = vst [vmem:[%s168 + $0x60] sm:$0xff] %v2175
      %2208 = vst [vmem:[%s168 + $0x68] sm:$0xff] %v2176
      %2209 = vst [vmem:[%s168 + $0x70] sm:$0xff] %v2177
      %2210 = vst [vmem:[%s168 + $0x78] sm:$0xff] %v2178
      %2211 = vst [vmem:[%s168 + $0x80] sm:$0xff] %v2179
      %2212 = vst [vmem:[%s168 + $0x88] sm:$0xff] %v2180
      %2213 = vst [vmem:[%s168 + $0x90] sm:$0xff] %v2181
      %2214 = vst [vmem:[%s168 + $0x98] sm:$0xff] %v2182
      %2215 = vst [vmem:[%s168 + $0xa0] sm:$0xff] %v2183
      %2216 = vst [vmem:[%s168 + $0xa8] sm:$0xff] %v2184
      %2217 = vst [vmem:[%s168 + $0xb0] sm:$0xff] %v2185
      %2218 = vst [vmem:[%s168 + $0xb8] sm:$0xff] %v2186
      %2219 = vst [vmem:[%s168 + $0xc0] sm:$0xff] %v2187
      %2220 = vst [vmem:[%s168 + $0xc8] sm:$0xff] %v2188
      %2221 = vst [vmem:[%s168 + $0xd0] sm:$0xff] %v2189
      %2222 = vst [vmem:[%s168 + $0xd8] sm:$0xff] %v2190
      %2223 = vst [vmem:[%s168 + $0xe0] sm:$0xff] %v2191
      %2224 = vst [vmem:[%s168 + $0xe8] sm:$0xff] %v2192
      %2225 = vst [vmem:[%s168 + $0xf0] sm:$0xff] %v2193
      %2226 = vst [vmem:[%s168 + $0xf8] sm:$0xff] %v2194
      %p2227 = scmp.eq.s32.totalorder %s15, 0
      // Predicated region
      $region29: #{basic_block_forward.3} parent=27 // pred_check
        %p2228 = pneg %p2227
      $region30: #{basic_block_forward.3} parent=27 // pred_check_branch
        %2230 = sbr.rel (%p2228) target = $region32
      $region31: #{basic_block_forward.3} parent=27 // pred_region
        %2231 = vst [vmem:[%s3] sm:$0x3] 0.0
      $region32: #{basic_block_forward.3} parent=27 // pred_fallthru
        _
      %v2232 = vld [vmem:[%s3] sm:$0x3]
      %v2233 = vadd.f32 %v2163, %v2164
      %v2234 = vadd.f32 %v2233, %v2165
      %v2235 = vadd.f32 %v2234, %v2166
      %v2236 = vadd.f32 %v2235, %v2167
      %v2237 = vadd.f32 %v2236, %v2168
      %v2238 = vadd.f32 %v2237, %v2169
      %v2239 = vadd.f32 %v2238, %v2170
      %v2240 = vadd.f32 %v2239, %v2171
      %v2241 = vadd.f32 %v2240, %v2172
      %v2242 = vadd.f32 %v2241, %v2173
      %v2243 = vadd.f32 %v2242, %v2174
      %v2244 = vadd.f32 %v2243, %v2175
      %v2245 = vadd.f32 %v2244, %v2176
      %v2246 = vadd.f32 %v2245, %v2177
      %v2247 = vadd.f32 %v2246, %v2178
      %v2248 = vadd.f32 %v2247, %v2179
      %v2249 = vadd.f32 %v2248, %v2180
      %v2250 = vadd.f32 %v2249, %v2181
      %v2251 = vadd.f32 %v2250, %v2182
      %v2252 = vadd.f32 %v2251, %v2183
      %v2253 = vadd.f32 %v2252, %v2184
      %v2254 = vadd.f32 %v2253, %v2185
      %v2255 = vadd.f32 %v2254, %v2186
      %v2256 = vadd.f32 %v2255, %v2187
      %v2257 = vadd.f32 %v2256, %v2188
      %v2258 = vadd.f32 %v2257, %v2189
      %v2259 = vadd.f32 %v2258, %v2190
      %v2260 = vadd.f32 %v2259, %v2191
      %v2261 = vadd.f32 %v2260, %v2192
      %v2262 = vadd.f32 %v2261, %v2193
      %v2263 = vadd.f32 %v2262, %v2194
      %v2264 = vrot.slane %v2263, 4
      %v2265 = vadd.f32 %v2263, %v2264
      %v2266 = vrot.slane %v2265, 2
      %v2267 = vadd.f32 %v2265, %v2266
      %v2268 = vrot.slane %v2267, 1
      %v2269 = vadd.f32 %v2267, %v2268
      %v2270 = vmul.f32 %v2163, %v2163
      %v2271 = vmul.f32 %v2164, %v2164
      %v2272 = vmul.f32 %v2165, %v2165
      %v2273 = vmul.f32 %v2166, %v2166
      %v2274 = vmul.f32 %v2167, %v2167
      %v2275 = vmul.f32 %v2168, %v2168
      %v2276 = vmul.f32 %v2169, %v2169
      %v2277 = vmul.f32 %v2170, %v2170
      %v2278 = vmul.f32 %v2171, %v2171
      %v2279 = vmul.f32 %v2172, %v2172
      %v2280 = vmul.f32 %v2173, %v2173
      %v2281 = vmul.f32 %v2174, %v2174
      %v2282 = vmul.f32 %v2175, %v2175
      %v2283 = vmul.f32 %v2176, %v2176
      %v2284 = vmul.f32 %v2177, %v2177
      %v2285 = vmul.f32 %v2178, %v2178
      %v2286 = vmul.f32 %v2179, %v2179
      %v2287 = vmul.f32 %v2180, %v2180
      %v2288 = vmul.f32 %v2181, %v2181
      %v2289 = vmul.f32 %v2182, %v2182
      %v2290 = vmul.f32 %v2183, %v2183
      %v2291 = vmul.f32 %v2184, %v2184
      %v2292 = vmul.f32 %v2185, %v2185
      %v2293 = vmul.f32 %v2186, %v2186
      %v2294 = vmul.f32 %v2187, %v2187
      %v2295 = vmul.f32 %v2188, %v2188
      %v2296 = vmul.f32 %v2189, %v2189
      %v2297 = vmul.f32 %v2190, %v2190
      %v2298 = vmul.f32 %v2191, %v2191
      %v2299 = vmul.f32 %v2192, %v2192
      %v2300 = vmul.f32 %v2193, %v2193
      %v2301 = vmul.f32 %v2194, %v2194
      %v2302 = vadd.f32 %v2270, %v2271
      %v2303 = vadd.f32 %v2302, %v2272
      %v2304 = vadd.f32 %v2303, %v2273
      %v2305 = vadd.f32 %v2304, %v2274
      %v2306 = vadd.f32 %v2305, %v2275
      %v2307 = vadd.f32 %v2306, %v2276
      %v2308 = vadd.f32 %v2307, %v2277
      %v2309 = vadd.f32 %v2308, %v2278
      %v2310 = vadd.f32 %v2309, %v2279
      %v2311 = vadd.f32 %v2310, %v2280
      %v2312 = vadd.f32 %v2311, %v2281
      %v2313 = vadd.f32 %v2312, %v2282
      %v2314 = vadd.f32 %v2313, %v2283
      %v2315 = vadd.f32 %v2314, %v2284
      %v2316 = vadd.f32 %v2315, %v2285
      %v2317 = vadd.f32 %v2316, %v2286
      %v2318 = vadd.f32 %v2317, %v2287
      %v2319 = vadd.f32 %v2318, %v2288
      %v2320 = vadd.f32 %v2319, %v2289
      %v2321 = vadd.f32 %v2320, %v2290
      %v2322 = vadd.f32 %v2321, %v2291
      %v2323 = vadd.f32 %v2322, %v2292
      %v2324 = vadd.f32 %v2323, %v2293
      %v2325 = vadd.f32 %v2324, %v2294
      %v2326 = vadd.f32 %v2325, %v2295
      %v2327 = vadd.f32 %v2326, %v2296
      %v2328 = vadd.f32 %v2327, %v2297
      %v2329 = vadd.f32 %v2328, %v2298
      %v2330 = vadd.f32 %v2329, %v2299
      %v2331 = vadd.f32 %v2330, %v2300
      %v2332 = vadd.f32 %v2331, %v2301
      %v2333 = vrot.slane %v2332, 4
      %v2334 = vadd.f32 %v2332, %v2333
      %v2335 = vrot.slane %v2334, 2
      %v2336 = vadd.f32 %v2334, %v2335
      %v2337 = vrot.slane %v2336, 1
      %v2338 = vadd.f32 %v2336, %v2337
      %vm2339 = vcmask 1040384
      %v2340 = vsel %vm2339, %v2269, %v2338
      %v2341 = vadd.f32 %v2232, %v2340
      %2342 = vst [vmem:[%s3] sm:$0x3] %v2341
      %s2343 = smul.u32 32, %s15
      %p2344 = scmp.lt.s32.totalorder %s2343, 63
      %s2345 = scalar_select %p2344, %s2343, 63
      %s2346 = smul.addr %s2345, 8
      %s2347 = scalar_lea.vmem %s2, %s2346
      // Predicated region
      $region33: #{basic_block_forward.3} parent=27 // pred_check
        %p2348 = pneg %p80
      $region34: #{basic_block_forward.3} parent=27 // pred_check_branch
        %2350 = sbr.rel (%p2348) target = $region36
      $region35: #{basic_block_forward.3} parent=27 // pred_region
        %s2351 = smul.u32 32, %s15
      $region36: #{basic_block_forward.3} parent=27 // pred_fallthru
        _
      // Predicated region
      $region37: #{basic_block_forward.3} parent=27 // pred_check
        %p2352 = pneg %p101
      $region38: #{basic_block_forward.3} parent=27 // pred_check_branch
        %2354 = sbr.rel (%p2352) target = $region40
      $region39: #{basic_block_forward.3} parent=27 // pred_region
        _
      $region40: #{basic_block_forward.3} parent=27 // pred_fallthru
        _
      // Predicated region
      $region41: #{basic_block_forward.3} parent=27 // pred_check
        %p2355 = pneg %p101
      $region42: #{basic_block_forward.3} parent=27 // pred_check_branch
        %2357 = sbr.rel (%p2355) target = $region44
      $region43: #{basic_block_forward.3} parent=27 // pred_region
        _
      $region44: #{basic_block_forward.3} parent=27 // pred_fallthru
        _
    $region28: #{basic_block_forward.3} parent=5 // pred_fallthru
      _
    %p2358 = scmp.le.s32.totalorder 2, %s10
    // Predicated region
    $region45: #{basic_block_forward.3} parent=5 // pred_check
      %p2359 = pneg %p2358
    $region46: #{basic_block_forward.3} parent=5 // pred_check_branch
      %2361 = sbr.rel (%p2359) target = $region48
    $region47: #{basic_block_forward.3} parent=5 // pred_region
      %s2362 = ssub.s32 %s10, 2
      // Predicated region
      $region49: #{basic_block_forward.3} parent=47 // pred_check
        %p2363 = pneg %p86
      $region50: #{basic_block_forward.3} parent=47 // pred_check_branch
        %2365 = sbr.rel (%p2363) target = $region52
      $region51: #{basic_block_forward.3} parent=47 // pred_region
        %s2366 = smul.u32 32, %s16
        %p2367 = scmp.lt.s32.totalorder %s2366, 63
        %s2368 = scalar_select %p2367, %s2366, 63
        %s2369 = smul.addr %s2368, 8
        %s2370 = scalar_lea.vmem %s2, %s2369
      $region52: #{basic_block_forward.3} parent=47 // pred_fallthru
        _
    $region48: #{basic_block_forward.3} parent=5 // pred_fallthru
      _
  $region6: #{basic_block_forward.3} parent=0 // loop_footer
    %s14 = sadd.s32 1, %s10
  $region7: #{basic_block_forward.3} parent=0 // loop_footer_branch
    %9 = sbr.rel target = $region3
  $region8: #{basic_block_forward.3} parent=0 // loop_exit
    _

// kernel: basic_block_forward.4
$region0: #{basic_block_forward.4}
  #allocation0 [shape = 'u32[]', space=smem, size = 0x4, offset = 0x4, fixed_abs, tag = 'smem constant byte address 0x4 - core index']
  #allocation1 [shape = 'u32[72,128]{1,0:T(1,128)}', space=vmem, size = 0x9000, scoped, tag = 'internal scratch']
  #allocation2 [shape = 'f32[18,18,128]{2,1,0:T(8,128)}', space=vmem, size = 0x36000, scoped, tag = 'scratch operand']
  %s0 = inlined_call_operand.vmem [shape: f32[512,128], index: 0, kind: input, shape index: {}]
  %s1 = inlined_call_operand.vmem [shape: f32[1,128], index: 1, kind: input, shape index: {}]
  %s2 = inlined_call_operand.vmem [shape: f32[1,128], index: 2, kind: input, shape index: {}]
  %s3 = inlined_call_operand.vmem [shape: bf16[9,128,128], index: 3, kind: input, shape index: {}]
  %s4 = inlined_call_operand.vmem [shape: f32[512,128], index: 4, kind: output, shape index: {0}]
  %s5 = inlined_call_operand.vmem [shape: f32[2,128], index: 5, kind: output, shape index: {1}]
  %6 = xla_tuple %s4, %s5
  %s7 = sld [smem:[#allocation0]]
  $region65: #{basic_block_forward.4} parent=0
    _
  %s9 = ssub.s32 1, %s7
  %s10 = scalar_select 0, %s9, %s7
  loop: start=0, step=1, limit=4
  $region2: #{basic_block_forward.4} parent=0 // loop_pre_header
    _
  $region3: #{basic_block_forward.4} parent=0 // loop_header
    %s12 = sphi 0, %s16
    %p13 = scmp.ge.s32.totalorder %s12, 4
    %s22 = sphi 0, %s24
    %s25 = sphi 0, %s22
    %s26 = sphi 0, %s25
    %s42 = sphi 0, %s26
    %s46 = sphi 0, %s46
    %s48 = sphi 0, %s46
    %s49 = sphi 0, %s48
    %s63 = sphi 0, %s49
    %s67 = sphi 0, %s67
    %s69 = sphi 0, %s67
    %s70 = sphi 0, %s69
    %s84 = sphi 0, %s70
    %s88 = sphi 0, %s88
    %s90 = sphi 0, %s88
    %s91 = sphi 0, %s90
    %s105 = sphi 0, %s91
    %s111 = sphi 0, %s113
    %s114 = sphi 0, %s111
    %s115 = sphi 0, %s114
    %s131 = sphi 0, %s115
    %s135 = sphi 0, %s135
    %s137 = sphi 0, %s135
    %s138 = sphi 0, %s137
    %s152 = sphi 0, %s138
  $region4: #{basic_block_forward.4} parent=0 // loop_header_branch
    %15 = sbr.rel (%p13) target = $region8
  $region5: #{basic_block_forward.4} parent=0 // loop_body
    %s17 = ssub.s32 %s12, 1
    %s18 = ssub.s32 %s12, 2
    %s19 = sadd.s32 %s12, 1
    %s20 = ssub.s32 %s12, %s19
    %p21 = scmp.eq.s32.totalorder %s20, 0
    %s23 = sadd.s32 %s22, 1
    %s24 = scalar_select %p21, %s22, %s23
    %p27 = pneg %p21
    %p28 = scmp.eq.s32.totalorder %s12, 1
    %p29 = por %p27, %p28
    %p30 = scmp.ne.s32.totalorder %s22, %s25
    %p31 = scmp.eq.s32.totalorder %s12, 0
    %p32 = por %p30, %p31
    %p33 = scmp.ne.s32.totalorder %s22, %s25
    %p34 = scmp.eq.s32.totalorder %s17, 1
    %p35 = por %p33, %p34
    %p36 = scmp.ne.s32.totalorder %s25, %s26
    %p37 = scmp.eq.s32.totalorder %s17, 0
    %p38 = por %p36, %p37
    %p39 = scmp.ne.s32.totalorder %s25, %s26
    %p40 = scmp.eq.s32.totalorder %s18, 1
    %p41 = por %p39, %p40
    %p43 = scmp.ne.s32.totalorder %s26, %s42
    %p44 = scmp.eq.s32.totalorder %s18, 0
    %p45 = por %p43, %p44
    %s47 = sadd.s32 %s46, 1
    %p50 = scmp.eq.s32.totalorder %s12, 1
    %p51 = scmp.ne.s32.totalorder %s46, %s48
    %p52 = scmp.eq.s32.totalorder %s12, 0
    %p53 = por %p51, %p52
    %p54 = scmp.ne.s32.totalorder %s46, %s48
    %p55 = scmp.eq.s32.totalorder %s17, 1
    %p56 = por %p54, %p55
    %p57 = scmp.ne.s32.totalorder %s48, %s49
    %p58 = scmp.eq.s32.totalorder %s17, 0
    %p59 = por %p57, %p58
    %p60 = scmp.ne.s32.totalorder %s48, %s49
    %p61 = scmp.eq.s32.totalorder %s18, 1
    %p62 = por %p60, %p61
    %p64 = scmp.ne.s32.totalorder %s49, %s63
    %p65 = scmp.eq.s32.totalorder %s18, 0
    %p66 = por %p64, %p65
    %s68 = sadd.s32 %s67, 1
    %p71 = scmp.eq.s32.totalorder %s12, 1
    %p72 = scmp.ne.s32.totalorder %s67, %s69
    %p73 = scmp.eq.s32.totalorder %s12, 0
    %p74 = por %p72, %p73
    %p75 = scmp.ne.s32.totalorder %s67, %s69
    %p76 = scmp.eq.s32.totalorder %s17, 1
    %p77 = por %p75, %p76
    %p78 = scmp.ne.s32.totalorder %s69, %s70
    %p79 = scmp.eq.s32.totalorder %s17, 0
    %p80 = por %p78, %p79
    %p81 = scmp.ne.s32.totalorder %s69, %s70
    %p82 = scmp.eq.s32.totalorder %s18, 1
    %p83 = por %p81, %p82
    %p85 = scmp.ne.s32.totalorder %s70, %s84
    %p86 = scmp.eq.s32.totalorder %s18, 0
    %p87 = por %p85, %p86
    %s89 = sadd.s32 %s88, 1
    %p92 = scmp.eq.s32.totalorder %s12, 1
    %p93 = scmp.ne.s32.totalorder %s88, %s90
    %p94 = scmp.eq.s32.totalorder %s12, 0
    %p95 = por %p93, %p94
    %p96 = scmp.ne.s32.totalorder %s88, %s90
    %p97 = scmp.eq.s32.totalorder %s17, 1
    %p98 = por %p96, %p97
    %p99 = scmp.ne.s32.totalorder %s90, %s91
    %p100 = scmp.eq.s32.totalorder %s17, 0
    %p101 = por %p99, %p100
    %p102 = scmp.ne.s32.totalorder %s90, %s91
    %p103 = scmp.eq.s32.totalorder %s18, 1
    %p104 = por %p102, %p103
    %p106 = scmp.ne.s32.totalorder %s91, %s105
    %p107 = scmp.eq.s32.totalorder %s18, 0
    %p108 = por %p106, %p107
    %s109 = ssub.s32 %s12, %s19
    %p110 = scmp.eq.s32.totalorder %s109, 0
    %s112 = sadd.s32 %s111, 1
    %s113 = scalar_select %p110, %s111, %s112
    %p116 = pneg %p110
    %p117 = scmp.eq.s32.totalorder %s12, 1
    %p118 = por %p116, %p117
    %p119 = scmp.ne.s32.totalorder %s111, %s114
    %p120 = scmp.eq.s32.totalorder %s12, 0
    %p121 = por %p119, %p120
    %p122 = scmp.ne.s32.totalorder %s111, %s114
    %p123 = scmp.eq.s32.totalorder %s17, 1
    %p124 = por %p122, %p123
    %p125 = scmp.ne.s32.totalorder %s114, %s115
    %p126 = scmp.eq.s32.totalorder %s17, 0
    %p127 = por %p125, %p126
    %p128 = scmp.ne.s32.totalorder %s114, %s115
    %p129 = scmp.eq.s32.totalorder %s18, 1
    %p130 = por %p128, %p129
    %p132 = scmp.ne.s32.totalorder %s115, %s131
    %p133 = scmp.eq.s32.totalorder %s18, 0
    %p134 = por %p132, %p133
    %s136 = sadd.s32 %s135, 1
    %p139 = scmp.eq.s32.totalorder %s12, 1
    %p140 = scmp.ne.s32.totalorder %s135, %s137
    %p141 = scmp.eq.s32.totalorder %s12, 0
    %p142 = por %p140, %p141
    %p143 = scmp.ne.s32.totalorder %s135, %s137
    %p144 = scmp.eq.s32.totalorder %s17, 1
    %p145 = por %p143, %p144
    %p146 = scmp.ne.s32.totalorder %s137, %s138
    %p147 = scmp.eq.s32.totalorder %s17, 0
    %p148 = por %p146, %p147
    %p149 = scmp.ne.s32.totalorder %s137, %s138
    %p150 = scmp.eq.s32.totalorder %s18, 1
    %p151 = por %p149, %p150
    %p153 = scmp.ne.s32.totalorder %s138, %s152
    %p154 = scmp.eq.s32.totalorder %s18, 0
    %p155 = por %p153, %p154
    %p156 = scmp.le.s32.totalorder 1, %s12
    %p157 = scmp.lt.s32.totalorder %s12, 3
    %p158 = pnand %p156, %p157
    %p159 = pneg %p158
    // Predicated region
    $region9: #{basic_block_forward.4} parent=5 // pred_check
      _
    $region10: #{basic_block_forward.4} parent=5 // pred_check_branch
      %161 = sbr.rel (%p158) target = $region12
    $region11: #{basic_block_forward.4} parent=5 // pred_region
      %s162 = ssub.s32 %s12, 1
      // Predicated region
      $region13: #{basic_block_forward.4} parent=11 // pred_check
        %p163 = pneg %p59
      $region14: #{basic_block_forward.4} parent=11 // pred_check_branch
        %165 = sbr.rel (%p163) target = $region16
      $region15: #{basic_block_forward.4} parent=11 // pred_region
        _
      $region16: #{basic_block_forward.4} parent=11 // pred_fallthru
        _
      // Predicated region
      $region17: #{basic_block_forward.4} parent=11 // pred_check
        %p166 = pneg %p80
      $region18: #{basic_block_forward.4} parent=11 // pred_check_branch
        %168 = sbr.rel (%p166) target = $region20
      $region19: #{basic_block_forward.4} parent=11 // pred_region
        _
      $region20: #{basic_block_forward.4} parent=11 // pred_fallthru
        _
      // Predicated region
      $region21: #{basic_block_forward.4} parent=11 // pred_check
        %p169 = pneg %p101
      $region22: #{basic_block_forward.4} parent=11 // pred_check_branch
        %171 = sbr.rel (%p169) target = $region24
      $region23: #{basic_block_forward.4} parent=11 // pred_region
        _
      $region24: #{basic_block_forward.4} parent=11 // pred_fallthru
        _
    $region12: #{basic_block_forward.4} parent=5 // pred_fallthru
      _
    %p172 = scmp.lt.s32.totalorder %s12, 2
    // Predicated region
    $region25: #{basic_block_forward.4} parent=5 // pred_check
      %p173 = pneg %p172
    $region26: #{basic_block_forward.4} parent=5 // pred_check_branch
      %175 = sbr.rel (%p173) target = $region28
    $region27: #{basic_block_forward.4} parent=5 // pred_region
      // Predicated region
      $region29: #{basic_block_forward.4} parent=27 // pred_check
        %p176 = pneg %p32
      $region30: #{basic_block_forward.4} parent=27 // pred_check_branch
        %178 = sbr.rel (%p176) target = $region32
      $region31: #{basic_block_forward.4} parent=27 // pred_region
        %s179 = smul.u32 32, %s12
        %p180 = scmp.lt.s32.totalorder %s179, 63
        %s181 = scalar_select %p180, %s179, 63
        %s182 = smul.addr %s181, 8
        %s183 = scalar_lea.vmem %s0, %s182
        %s184 = smul.u32 32, %s12
      $region32: #{basic_block_forward.4} parent=27 // pred_fallthru
        _
    $region28: #{basic_block_forward.4} parent=5 // pred_fallthru
      _
    %p185 = scmp.le.s32.totalorder 1, %s12
    %p186 = scmp.lt.s32.totalorder %s12, 3
    %p187 = pnand %p185, %p186
    %p188 = pneg %p187
    // Predicated region
    $region33: #{basic_block_forward.4} parent=5 // pred_check
      _
    $region34: #{basic_block_forward.4} parent=5 // pred_check_branch
      %190 = sbr.rel (%p187) target = $region36
    $region35: #{basic_block_forward.4} parent=5 // pred_region
      %s191 = ssub.s32 %s12, 1
      %s192 = smul.u32 32, %s17
      %p193 = scmp.lt.s32.totalorder %s192, 63
      %s194 = scalar_select %p193, %s192, 63
      %s195 = smul.addr %s194, 8
      %s196 = scalar_lea.vmem %s0, %s195
      %p197 = pneg %p38
      %p198 = pneg %p35
      %p199 = pneg %p59
      %p200 = pneg %p56
      %p201 = pneg %p80
      %p202 = pneg %p77
      %p203 = pneg %p101
      %p204 = pneg %p98
      %p205 = pneg %p127
      %p206 = pneg %p124
      %s207 = smul.u32 32, %s17
      %p208 = scmp.lt.s32.totalorder %s207, 63
      %s209 = scalar_select %p208, %s207, 63
      %s210 = smul.addr %s209, 8
      %s211 = scalar_lea.vmem %s4, %s210
      %p212 = pneg %p148
      %p213 = pneg %p145
      %s214 = smul.u32 32, %s17
      %p215 = scmp.lt.s32.totalorder %s214, 63
      %s216 = scalar_select %p215, %s214, 63
      %s217 = smul.addr %s216, 8
      %s218 = scalar_lea.vmem %s0, %s217
      %s219 = smul.u32 32, %s17
      %s220 = smul.u32 32, %s17
      %p221 = scmp.lt.s32.totalorder %s220, 63
      %s222 = scalar_select %p221, %s220, 63
      %s223 = smul.addr %s222, 8
      %s224 = scalar_lea.vmem %s4, %s223
      %s225 = smul.u32 32, %s17
      %v226 = vld [vmem:[%s218] sm:$0xff]
      %v227 = vld [vmem:[%s218 + $0x8] sm:$0xff]
      %v228 = vld [vmem:[%s218 + $0x10] sm:$0xff]
      %v229 = vld [vmem:[%s218 + $0x18] sm:$0xff]
      %v230 = vld [vmem:[%s218 + $0x20] sm:$0xff]
      %v231 = vld [vmem:[%s218 + $0x28] sm:$0xff]
      %v232 = vld [vmem:[%s218 + $0x30] sm:$0xff]
      %v233 = vld [vmem:[%s218 + $0x38] sm:$0xff]
      %v234 = vld [vmem:[%s218 + $0x40] sm:$0xff]
      %v235 = vld [vmem:[%s218 + $0x48] sm:$0xff]
      %v236 = vld [vmem:[%s218 + $0x50] sm:$0xff]
      %v237 = vld [vmem:[%s218 + $0x58] sm:$0xff]
      %v238 = vld [vmem:[%s218 + $0x60] sm:$0xff]
      %v239 = vld [vmem:[%s218 + $0x68] sm:$0xff]
      %v240 = vld [vmem:[%s218 + $0x70] sm:$0xff]
      %v241 = vld [vmem:[%s218 + $0x78] sm:$0xff]
      %v242 = vld [vmem:[%s218 + $0x80] sm:$0xff]
      %v243 = vld [vmem:[%s218 + $0x88] sm:$0xff]
      %v244 = vld [vmem:[%s218 + $0x90] sm:$0xff]
      %v245 = vld [vmem:[%s218 + $0x98] sm:$0xff]
      %v246 = vld [vmem:[%s218 + $0xa0] sm:$0xff]
      %v247 = vld [vmem:[%s218 + $0xa8] sm:$0xff]
      %v248 = vld [vmem:[%s218 + $0xb0] sm:$0xff]
      %v249 = vld [vmem:[%s218 + $0xb8] sm:$0xff]
      %v250 = vld [vmem:[%s218 + $0xc0] sm:$0xff]
      %v251 = vld [vmem:[%s218 + $0xc8] sm:$0xff]
      %v252 = vld [vmem:[%s218 + $0xd0] sm:$0xff]
      %v253 = vld [vmem:[%s218 + $0xd8] sm:$0xff]
      %v254 = vld [vmem:[%s218 + $0xe0] sm:$0xff]
      %v255 = vld [vmem:[%s218 + $0xe8] sm:$0xff]
      %v256 = vld [vmem:[%s218 + $0xf0] sm:$0xff]
      %v257 = vld [vmem:[%s218 + $0xf8] sm:$0xff]
      %v258 = vld [vmem:[%s1] sm:$0x1]
      %v260 = vperm.slane %v258, 0
      %v262 = vmul.f32 %v226, %v260
      %v263 = vmul.f32 %v227, %v260
      %v264 = vmul.f32 %v228, %v260
      %v265 = vmul.f32 %v229, %v260
      %v266 = vmul.f32 %v230, %v260
      %v267 = vmul.f32 %v231, %v260
      %v268 = vmul.f32 %v232, %v260
      %v269 = vmul.f32 %v233, %v260
      %v270 = vmul.f32 %v234, %v260
      %v271 = vmul.f32 %v235, %v260
      %v272 = vmul.f32 %v236, %v260
      %v273 = vmul.f32 %v237, %v260
      %v274 = vmul.f32 %v238, %v260
      %v275 = vmul.f32 %v239, %v260
      %v276 = vmul.f32 %v240, %v260
      %v277 = vmul.f32 %v241, %v260
      %v278 = vmul.f32 %v242, %v260
      %v279 = vmul.f32 %v243, %v260
      %v280 = vmul.f32 %v244, %v260
      %v281 = vmul.f32 %v245, %v260
      %v282 = vmul.f32 %v246, %v260
      %v283 = vmul.f32 %v247, %v260
      %v284 = vmul.f32 %v248, %v260
      %v285 = vmul.f32 %v249, %v260
      %v286 = vmul.f32 %v250, %v260
      %v287 = vmul.f32 %v251, %v260
      %v288 = vmul.f32 %v252, %v260
      %v289 = vmul.f32 %v253, %v260
      %v290 = vmul.f32 %v254, %v260
      %v291 = vmul.f32 %v255, %v260
      %v292 = vmul.f32 %v256, %v260
      %v293 = vmul.f32 %v257, %v260
      %v294 = vld [vmem:[%s2] sm:$0x1]
      %v296 = vperm.slane %v294, 0
      %v298 = vadd.f32 %v262, %v296
      %v299 = vadd.f32 %v263, %v296
      %v300 = vadd.f32 %v264, %v296
      %v301 = vadd.f32 %v265, %v296
      %v302 = vadd.f32 %v266, %v296
      %v303 = vadd.f32 %v267, %v296
      %v304 = vadd.f32 %v268, %v296
      %v305 = vadd.f32 %v269, %v296
      %v306 = vadd.f32 %v270, %v296
      %v307 = vadd.f32 %v271, %v296
      %v308 = vadd.f32 %v272, %v296
      %v309 = vadd.f32 %v273, %v296
      %v310 = vadd.f32 %v274, %v296
      %v311 = vadd.f32 %v275, %v296
      %v312 = vadd.f32 %v276, %v296
      %v313 = vadd.f32 %v277, %v296
      %v314 = vadd.f32 %v278, %v296
      %v315 = vadd.f32 %v279, %v296
      %v316 = vadd.f32 %v280, %v296
      %v317 = vadd.f32 %v281, %v296
      %v318 = vadd.f32 %v282, %v296
      %v319 = vadd.f32 %v283, %v296
      %v320 = vadd.f32 %v284, %v296
      %v321 = vadd.f32 %v285, %v296
      %v322 = vadd.f32 %v286, %v296
      %v323 = vadd.f32 %v287, %v296
      %v324 = vadd.f32 %v288, %v296
      %v325 = vadd.f32 %v289, %v296
      %v326 = vadd.f32 %v290, %v296
      %v327 = vadd.f32 %v291, %v296
      %v328 = vadd.f32 %v292, %v296
      %v329 = vadd.f32 %v293, %v296
      %v330 = vmax.f32 %v298, 0.0
      %v331 = vmax.f32 %v299, 0.0
      %v332 = vmax.f32 %v300, 0.0
      %v333 = vmax.f32 %v301, 0.0
      %v334 = vmax.f32 %v302, 0.0
      %v335 = vmax.f32 %v303, 0.0
      %v336 = vmax.f32 %v304, 0.0
      %v337 = vmax.f32 %v305, 0.0
      %v338 = vmax.f32 %v306, 0.0
      %v339 = vmax.f32 %v307, 0.0
      %v340 = vmax.f32 %v308, 0.0
      %v341 = vmax.f32 %v309, 0.0
      %v342 = vmax.f32 %v310, 0.0
      %v343 = vmax.f32 %v311, 0.0
      %v344 = vmax.f32 %v312, 0.0
      %v345 = vmax.f32 %v313, 0.0
      %v346 = vmax.f32 %v314, 0.0
      %v347 = vmax.f32 %v315, 0.0
      %v348 = vmax.f32 %v316, 0.0
      %v349 = vmax.f32 %v317, 0.0
      %v350 = vmax.f32 %v318, 0.0
      %v351 = vmax.f32 %v319, 0.0
      %v352 = vmax.f32 %v320, 0.0
      %v353 = vmax.f32 %v321, 0.0
      %v354 = vmax.f32 %v322, 0.0
      %v355 = vmax.f32 %v323, 0.0
      %v356 = vmax.f32 %v324, 0.0
      %v357 = vmax.f32 %v325, 0.0
      %v358 = vmax.f32 %v326, 0.0
      %v359 = vmax.f32 %v327, 0.0
      %v360 = vmax.f32 %v328, 0.0
      %v361 = vmax.f32 %v329, 0.0
      %p362 = scmp.eq.s32.totalorder %s17, 0
      // Predicated region
      $region37: #{basic_block_forward.4} parent=35 // pred_check
        %p363 = pneg %p362
      $region38: #{basic_block_forward.4} parent=35 // pred_check_branch
        %365 = sbr.rel (%p363) target = $region40
      $region39: #{basic_block_forward.4} parent=35 // pred_region
        %366 = vst [vmem:[#allocation2] sm:$0xff] 0.0
        %367 = vst [vmem:[#allocation2 + $0x8] sm:$0xff] 0.0
        %368 = vst [vmem:[#allocation2 + $0x10] sm:$0x3] 0.0
        %369 = vst [vmem:[#allocation2 + $0x18] sm:$0xff] 0.0
        %370 = vst [vmem:[#allocation2 + $0x20] sm:$0xff] 0.0
        %371 = vst [vmem:[#allocation2 + $0x28] sm:$0x3] 0.0
        %372 = vst [vmem:[#allocation2 + $0x30] sm:$0xff] 0.0
        %373 = vst [vmem:[#allocation2 + $0x38] sm:$0xff] 0.0
        %374 = vst [vmem:[#allocation2 + $0x40] sm:$0x3] 0.0
        %375 = vst [vmem:[#allocation2 + $0x48] sm:$0xff] 0.0
        %376 = vst [vmem:[#allocation2 + $0x50] sm:$0xff] 0.0
        %377 = vst [vmem:[#allocation2 + $0x58] sm:$0x3] 0.0
        %378 = vst [vmem:[#allocation2 + $0x60] sm:$0xff] 0.0
        %379 = vst [vmem:[#allocation2 + $0x68] sm:$0xff] 0.0
        %380 = vst [vmem:[#allocation2 + $0x70] sm:$0x3] 0.0
        %381 = vst [vmem:[#allocation2 + $0x78] sm:$0xff] 0.0
        %382 = vst [vmem:[#allocation2 + $0x80] sm:$0xff] 0.0
        %383 = vst [vmem:[#allocation2 + $0x88] sm:$0x3] 0.0
        %384 = vst [vmem:[#allocation2 + $0x90] sm:$0xff] 0.0
        %385 = vst [vmem:[#allocation2 + $0x98] sm:$0xff] 0.0
        %386 = vst [vmem:[#allocation2 + $0xa0] sm:$0x3] 0.0
        %387 = vst [vmem:[#allocation2 + $0xa8] sm:$0xff] 0.0
        %388 = vst [vmem:[#allocation2 + $0xb0] sm:$0xff] 0.0
        %389 = vst [vmem:[#allocation2 + $0xb8] sm:$0x3] 0.0
        %390 = vst [vmem:[#allocation2 + $0xc0] sm:$0xff] 0.0
        %391 = vst [vmem:[#allocation2 + $0xc8] sm:$0xff] 0.0
        %392 = vst [vmem:[#allocation2 + $0xd0] sm:$0x3] 0.0
        %393 = vst [vmem:[#allocation2 + $0xd8] sm:$0xff] 0.0
        %394 = vst [vmem:[#allocation2 + $0xe0] sm:$0xff] 0.0
        %395 = vst [vmem:[#allocation2 + $0xe8] sm:$0x3] 0.0
        %396 = vst [vmem:[#allocation2 + $0xf0] sm:$0xff] 0.0
        %397 = vst [vmem:[#allocation2 + $0xf8] sm:$0xff] 0.0
        %398 = vst [vmem:[#allocation2 + $0x100] sm:$0x3] 0.0
        %399 = vst [vmem:[#allocation2 + $0x108] sm:$0xff] 0.0
        %400 = vst [vmem:[#allocation2 + $0x110] sm:$0xff] 0.0
        %401 = vst [vmem:[#allocation2 + $0x118] sm:$0x3] 0.0
        %402 = vst [vmem:[#allocation2 + $0x120] sm:$0xff] 0.0
        %403 = vst [vmem:[#allocation2 + $0x128] sm:$0xff] 0.0
        %404 = vst [vmem:[#allocation2 + $0x130] sm:$0x3] 0.0
        %405 = vst [vmem:[#allocation2 + $0x138] sm:$0xff] 0.0
        %406 = vst [vmem:[#allocation2 + $0x140] sm:$0xff] 0.0
        %407 = vst [vmem:[#allocation2 + $0x148] sm:$0x3] 0.0
        %408 = vst [vmem:[#allocation2 + $0x150] sm:$0xff] 0.0
        %409 = vst [vmem:[#allocation2 + $0x158] sm:$0xff] 0.0
        %410 = vst [vmem:[#allocation2 + $0x160] sm:$0x3] 0.0
        %411 = vst [vmem:[#allocation2 + $0x168] sm:$0xff] 0.0
        %412 = vst [vmem:[#allocation2 + $0x170] sm:$0xff] 0.0
        %413 = vst [vmem:[#allocation2 + $0x178] sm:$0x3] 0.0
        %414 = vst [vmem:[#allocation2 + $0x180] sm:$0xff] 0.0
        %415 = vst [vmem:[#allocation2 + $0x188] sm:$0xff] 0.0
        %416 = vst [vmem:[#allocation2 + $0x190] sm:$0x3] 0.0
        %417 = vst [vmem:[#allocation2 + $0x198] sm:$0xff] 0.0
        %418 = vst [vmem:[#allocation2 + $0x1a0] sm:$0xff] 0.0
        %419 = vst [vmem:[#allocation2 + $0x1a8] sm:$0x3] 0.0
      $region40: #{basic_block_forward.4} parent=35 // pred_fallthru
        _
      %s420 = scalar_lea.vmem [#allocation2], 24
      %421 = vst [vmem:[%s420 + $0x1] sm:$0xff] %v330
      %422 = vst [vmem:[%s420 + $0x9] sm:$0xff] %v331
      %423 = vst [vmem:[%s420 + $0x19] sm:$0xff] %v332
      %424 = vst [vmem:[%s420 + $0x21] sm:$0xff] %v333
      %425 = vst [vmem:[%s420 + $0x31] sm:$0xff] %v334
      %426 = vst [vmem:[%s420 + $0x39] sm:$0xff] %v335
      %427 = vst [vmem:[%s420 + $0x49] sm:$0xff] %v336
      %428 = vst [vmem:[%s420 + $0x51] sm:$0xff] %v337
      %429 = vst [vmem:[%s420 + $0x61] sm:$0xff] %v338
      %430 = vst [vmem:[%s420 + $0x69] sm:$0xff] %v339
      %431 = vst [vmem:[%s420 + $0x79] sm:$0xff] %v340
      %432 = vst [vmem:[%s420 + $0x81] sm:$0xff] %v341
      %433 = vst [vmem:[%s420 + $0x91] sm:$0xff] %v342
      %434 = vst [vmem:[%s420 + $0x99] sm:$0xff] %v343
      %435 = vst [vmem:[%s420 + $0xa9] sm:$0xff] %v344
      %436 = vst [vmem:[%s420 + $0xb1] sm:$0xff] %v345
      %437 = vst [vmem:[%s420 + $0xc1] sm:$0xff] %v346
      %438 = vst [vmem:[%s420 + $0xc9] sm:$0xff] %v347
      %439 = vst [vmem:[%s420 + $0xd9] sm:$0xff] %v348
      %440 = vst [vmem:[%s420 + $0xe1] sm:$0xff] %v349
      %441 = vst [vmem:[%s420 + $0xf1] sm:$0xff] %v350
      %442 = vst [vmem:[%s420 + $0xf9] sm:$0xff] %v351
      %443 = vst [vmem:[%s420 + $0x109] sm:$0xff] %v352
      %444 = vst [vmem:[%s420 + $0x111] sm:$0xff] %v353
      %445 = vst [vmem:[%s420 + $0x121] sm:$0xff] %v354
      %446 = vst [vmem:[%s420 + $0x129] sm:$0xff] %v355
      %447 = vst [vmem:[%s420 + $0x139] sm:$0xff] %v356
      %448 = vst [vmem:[%s420 + $0x141] sm:$0xff] %v357
      %449 = vst [vmem:[%s420 + $0x151] sm:$0xff] %v358
      %450 = vst [vmem:[%s420 + $0x159] sm:$0xff] %v359
      %451 = vst [vmem:[%s420 + $0x169] sm:$0xff] %v360
      %452 = vst [vmem:[%s420 + $0x171] sm:$0xff] %v361
      %v453 = vld [vmem:[#allocation2] sm:$0xff]
      %v454 = vld [vmem:[#allocation2 + $0x8] sm:$0xff]
      %v455 = vld [vmem:[#allocation2 + $0x10] sm:$0x3]
      %v456 = vld [vmem:[#allocation2 + $0x18] sm:$0xff]
      %v457 = vld [vmem:[#allocation2 + $0x20] sm:$0xff]
      %v458 = vld [vmem:[#allocation2 + $0x28] sm:$0x3]
      %v459 = vld [vmem:[#allocation2 + $0x30] sm:$0xff]
      %v460 = vld [vmem:[#allocation2 + $0x38] sm:$0xff]
      %v461 = vld [vmem:[#allocation2 + $0x40] sm:$0x3]
      %v462 = vld [vmem:[#allocation2 + $0x48] sm:$0xff]
      %v463 = vld [vmem:[#allocation2 + $0x50] sm:$0xff]
      %v464 = vld [vmem:[#allocation2 + $0x58] sm:$0x3]
      %v465 = vld [vmem:[#allocation2 + $0x60] sm:$0xff]
      %v466 = vld [vmem:[#allocation2 + $0x68] sm:$0xff]
      %v467 = vld [vmem:[#allocation2 + $0x70] sm:$0x3]
      %v468 = vld [vmem:[#allocation2 + $0x78] sm:$0xff]
      %v469 = vld [vmem:[#allocation2 + $0x80] sm:$0xff]
      %v470 = vld [vmem:[#allocation2 + $0x88] sm:$0x3]
      %v471 = vld [vmem:[#allocation2 + $0x90] sm:$0xff]
      %v472 = vld [vmem:[#allocation2 + $0x98] sm:$0xff]
      %v473 = vld [vmem:[#allocation2 + $0xa0] sm:$0x3]
      %v474 = vld [vmem:[#allocation2 + $0xa8] sm:$0xff]
      %v475 = vld [vmem:[#allocation2 + $0xb0] sm:$0xff]
      %v476 = vld [vmem:[#allocation2 + $0xb8] sm:$0x3]
      %v477 = vld [vmem:[#allocation2 + $0xc0] sm:$0xff]
      %v478 = vld [vmem:[#allocation2 + $0xc8] sm:$0xff]
      %v479 = vld [vmem:[#allocation2 + $0xd0] sm:$0x3]
      %v480 = vld [vmem:[#allocation2 + $0xd8] sm:$0xff]
      %v481 = vld [vmem:[#allocation2 + $0xe0] sm:$0xff]
      %v482 = vld [vmem:[#allocation2 + $0xe8] sm:$0x3]
      %v483 = vld [vmem:[#allocation2 + $0xf0] sm:$0xff]
      %v484 = vld [vmem:[#allocation2 + $0xf8] sm:$0xff]
      %v485 = vld [vmem:[#allocation2 + $0x100] sm:$0x3]
      %v486 = vld [vmem:[#allocation2 + $0x108] sm:$0xff]
      %v487 = vld [vmem:[#allocation2 + $0x110] sm:$0xff]
      %v488 = vld [vmem:[#allocation2 + $0x118] sm:$0x3]
      %v489 = vld [vmem:[#allocation2 + $0x120] sm:$0xff]
      %v490 = vld [vmem:[#allocation2 + $0x128] sm:$0xff]
      %v491 = vld [vmem:[#allocation2 + $0x130] sm:$0x3]
      %v492 = vld [vmem:[#allocation2 + $0x138] sm:$0xff]
      %v493 = vld [vmem:[#allocation2 + $0x140] sm:$0xff]
      %v494 = vld [vmem:[#allocation2 + $0x148] sm:$0x3]
      %v495 = vld [vmem:[#allocation2 + $0x150] sm:$0xff]
      %v496 = vld [vmem:[#allocation2 + $0x158] sm:$0xff]
      %v497 = vld [vmem:[#allocation2 + $0x160] sm:$0x3]
      %v498 = vld [vmem:[#allocation2 + $0x168] sm:$0xff]
      %v499 = vld [vmem:[#allocation2 + $0x170] sm:$0xff]
      %v500 = vld [vmem:[#allocation2 + $0x178] sm:$0x3]
      %v501 = vld [vmem:[#allocation2 + $0x180] sm:$0xff]
      %v502 = vld [vmem:[#allocation2 + $0x188] sm:$0xff]
      %v503 = vld [vmem:[#allocation2 + $0x190] sm:$0x3]
      %v504 = vld [vmem:[#allocation2 + $0x198] sm:$0xff]
      %v505 = vld [vmem:[#allocation2 + $0x1a0] sm:$0xff]
      %v506 = vld [vmem:[#allocation2 + $0x1a8] sm:$0x3]
      %v507 = vpack.c.bf16 %v454, %v453
      %v508 = vpack.c.bf16 %v457, %v456
      %v509 = vpack.c.bf16 %v460, %v459
      %v510 = vpack.c.bf16 %v463, %v462
      %v511 = vpack.c.bf16 %v466, %v465
      %v512 = vpack.c.bf16 %v469, %v468
      %v513 = vpack.c.bf16 %v472, %v471
      %v514 = vpack.c.bf16 %v475, %v474
      %v515 = vpack.c.bf16 %v478, %v477
      %v516 = vpack.c.bf16 %v481, %v480
      %v517 = vpack.c.bf16 %v484, %v483
      %v518 = vpack.c.bf16 %v487, %v486
      %v519 = vpack.c.bf16 %v490, %v489
      %v520 = vpack.c.bf16 %v493, %v492
      %v521 = vpack.c.bf16 %v496, %v495
      %v522 = vpack.c.bf16 %v499, %v498
      %v523 = vld [vmem:[%s3] sm:$0xf]
      %v524 = vld [vmem:[%s3 + $0x4] sm:$0xf]
      %v525 = vld [vmem:[%s3 + $0x8] sm:$0xf]
      %v526 = vld [vmem:[%s3 + $0xc] sm:$0xf]
      %v527 = vld [vmem:[%s3 + $0x10] sm:$0xf]
      %v528 = vld [vmem:[%s3 + $0x14] sm:$0xf]
      %v529 = vld [vmem:[%s3 + $0x18] sm:$0xf]
      %v530 = vld [vmem:[%s3 + $0x1c] sm:$0xf]
      %v531 = vld [vmem:[%s3 + $0x20] sm:$0xf]
      %v532 = vld [vmem:[%s3 + $0x24] sm:$0xf]
      %v533 = vld [vmem:[%s3 + $0x28] sm:$0xf]
      %v534 = vld [vmem:[%s3 + $0x2c] sm:$0xf]
      %v535 = vld [vmem:[%s3 + $0x30] sm:$0xf]
      %v536 = vld [vmem:[%s3 + $0x34] sm:$0xf]
      %v537 = vld [vmem:[%s3 + $0x38] sm:$0xf]
      %v538 = vld [vmem:[%s3 + $0x3c] sm:$0xf]
      %vm587 = vcmask 1046528
      %v588 = vrot.slane %v453, 1
      %v589 = vrot.slane %v454, 1
      %v590 = vsel %vm587, %v588, %v589
      %v591 = vrot.slane %v455, 1
      %v592 = vsel %vm587, %v589, %v591
      %v593 = vrot.slane %v456, 1
      %v594 = vrot.slane %v457, 1
      %v595 = vsel %vm587, %v593, %v594
      %v596 = vrot.slane %v458, 1
      %v597 = vsel %vm587, %v594, %v596
      %v598 = vrot.slane %v459, 1
      %v599 = vrot.slane %v460, 1
      %v600 = vsel %vm587, %v598, %v599
      %v601 = vrot.slane %v461, 1
      %v602 = vsel %vm587, %v599, %v601
      %v603 = vrot.slane %v462, 1
      %v604 = vrot.slane %v463, 1
      %v605 = vsel %vm587, %v603, %v604
      %v606 = vrot.slane %v464, 1
      %v607 = vsel %vm587, %v604, %v606
      %v608 = vrot.slane %v465, 1
      %v609 = vrot.slane %v466, 1
      %v610 = vsel %vm587, %v608, %v609
      %v611 = vrot.slane %v467, 1
      %v612 = vsel %vm587, %v609, %v611
      %v613 = vrot.slane %v468, 1
      %v614 = vrot.slane %v469, 1
      %v615 = vsel %vm587, %v613, %v614
      %v616 = vrot.slane %v470, 1
      %v617 = vsel %vm587, %v614, %v616
      %v618 = vrot.slane %v471, 1
      %v619 = vrot.slane %v472, 1
      %v620 = vsel %vm587, %v618, %v619
      %v621 = vrot.slane %v473, 1
      %v622 = vsel %vm587, %v619, %v621
      %v623 = vrot.slane %v474, 1
      %v624 = vrot.slane %v475, 1
      %v625 = vsel %vm587, %v623, %v624
      %v626 = vrot.slane %v476, 1
      %v627 = vsel %vm587, %v624, %v626
      %v628 = vrot.slane %v477, 1
      %v629 = vrot.slane %v478, 1
      %v630 = vsel %vm587, %v628, %v629
      %v631 = vrot.slane %v479, 1
      %v632 = vsel %vm587, %v629, %v631
      %v633 = vrot.slane %v480, 1
      %v634 = vrot.slane %v481, 1
      %v635 = vsel %vm587, %v633, %v634
      %v636 = vrot.slane %v482, 1
      %v637 = vsel %vm587, %v634, %v636
      %v638 = vrot.slane %v483, 1
      %v639 = vrot.slane %v484, 1
      %v640 = vsel %vm587, %v638, %v639
      %v641 = vrot.slane %v485, 1
      %v642 = vsel %vm587, %v639, %v641
      %v643 = vrot.slane %v486, 1
      %v644 = vrot.slane %v487, 1
      %v645 = vsel %vm587, %v643, %v644
      %v646 = vrot.slane %v488, 1
      %v647 = vsel %vm587, %v644, %v646
      %v648 = vrot.slane %v489, 1
      %v649 = vrot.slane %v490, 1
      %v650 = vsel %vm587, %v648, %v649
      %v651 = vrot.slane %v491, 1
      %v652 = vsel %vm587, %v649, %v651
      %v653 = vrot.slane %v492, 1
      %v654 = vrot.slane %v493, 1
      %v655 = vsel %vm587, %v653, %v654
      %v656 = vrot.slane %v494, 1
      %v657 = vsel %vm587, %v654, %v656
      %v658 = vrot.slane %v495, 1
      %v659 = vrot.slane %v496, 1
      %v660 = vsel %vm587, %v658, %v659
      %v661 = vrot.slane %v497, 1
      %v662 = vsel %vm587, %v659, %v661
      %v663 = vrot.slane %v498, 1
      %v664 = vrot.slane %v499, 1
      %v665 = vsel %vm587, %v663, %v664
      %v666 = vrot.slane %v500, 1
      %v667 = vsel %vm587, %v664, %v666
      %v700 = vpack.c.bf16 %v592, %v590
      %v701 = vpack.c.bf16 %v597, %v595
      %v702 = vpack.c.bf16 %v602, %v600
      %v703 = vpack.c.bf16 %v607, %v605
      %v704 = vpack.c.bf16 %v612, %v610
      %v705 = vpack.c.bf16 %v617, %v615
      %v706 = vpack.c.bf16 %v622, %v620
      %v707 = vpack.c.bf16 %v627, %v625
      %v708 = vpack.c.bf16 %v632, %v630
      %v709 = vpack.c.bf16 %v637, %v635
      %v710 = vpack.c.bf16 %v642, %v640
      %v711 = vpack.c.bf16 %v647, %v645
      %v712 = vpack.c.bf16 %v652, %v650
      %v713 = vpack.c.bf16 %v657, %v655
      %v714 = vpack.c.bf16 %v662, %v660
      %v715 = vpack.c.bf16 %v667, %v665
      %s716 = scalar_lea.vmem %s3, 64
      %v717 = vld [vmem:[%s716] sm:$0xf]
      %v718 = vld [vmem:[%s716 + $0x4] sm:$0xf]
      %v719 = vld [vmem:[%s716 + $0x8] sm:$0xf]
      %v720 = vld [vmem:[%s716 + $0xc] sm:$0xf]
      %v721 = vld [vmem:[%s716 + $0x10] sm:$0xf]
      %v722 = vld [vmem:[%s716 + $0x14] sm:$0xf]
      %v723 = vld [vmem:[%s716 + $0x18] sm:$0xf]
      %v724 = vld [vmem:[%s716 + $0x1c] sm:$0xf]
      %v725 = vld [vmem:[%s716 + $0x20] sm:$0xf]
      %v726 = vld [vmem:[%s716 + $0x24] sm:$0xf]
      %v727 = vld [vmem:[%s716 + $0x28] sm:$0xf]
      %v728 = vld [vmem:[%s716 + $0x2c] sm:$0xf]
      %v729 = vld [vmem:[%s716 + $0x30] sm:$0xf]
      %v730 = vld [vmem:[%s716 + $0x34] sm:$0xf]
      %v731 = vld [vmem:[%s716 + $0x38] sm:$0xf]
      %v732 = vld [vmem:[%s716 + $0x3c] sm:$0xf]
      %v749 = vunpack.c.l.b16 %v717
      %v750 = vunpack.c.l.b16 %v718
      %v751 = vunpack.c.l.b16 %v719
      %v752 = vunpack.c.l.b16 %v720
      %v753 = vunpack.c.l.b16 %v721
      %v754 = vunpack.c.l.b16 %v722
      %v755 = vunpack.c.l.b16 %v723
      %v756 = vunpack.c.l.b16 %v724
      %v757 = vunpack.c.l.b16 %v725
      %v758 = vunpack.c.l.b16 %v726
      %v759 = vunpack.c.l.b16 %v727
      %v760 = vunpack.c.l.b16 %v728
      %v761 = vunpack.c.l.b16 %v729
      %v762 = vunpack.c.l.b16 %v730
      %v763 = vunpack.c.l.b16 %v731
      %v764 = vunpack.c.l.b16 %v732
      %v765 = vpack.c.b16 %v750, %v749
      %v766 = vpack.c.b16 %v752, %v751
      %v767 = vpack.c.b16 %v754, %v753
      %v768 = vpack.c.b16 %v756, %v755
      %v769 = vpack.c.b16 %v758, %v757
      %v770 = vpack.c.b16 %v760, %v759
      %v771 = vpack.c.b16 %v762, %v761
      %v772 = vpack.c.b16 %v764, %v763
      %781 = vmatpush.bf16.msra.mxu0 %v772
      %782 = vmatpush.bf16.msra.mxu0 %v771
      %783 = vmatpush.bf16.msra.mxu0 %v770
      %784 = vmatpush.bf16.msra.mxu0 %v769
      %785 = vmatpush.bf16.msra.mxu0 %v768
      %786 = vmatpush.bf16.msra.mxu0 %v767
      %787 = vmatpush.bf16.msra.mxu0 %v766
      %788 = vmatpush.bf16.msra.mxu0 %v765
      %789 = vmatmul.bf16.gmra.mxu0 %v700
      %v790 = vpop.f32.mrf.mxu0
      %v791 = vadd.f32 0.0, %v790
      %v792 = vpop.f32.mrf.mxu0
      %v793 = vadd.f32 0.0, %v792
      %794 = vmatmul.bf16.gmra.mxu0 %v701
      %v795 = vpop.f32.mrf.mxu0
      %v796 = vadd.f32 0.0, %v795
      %v797 = vpop.f32.mrf.mxu0
      %v798 = vadd.f32 0.0, %v797
      %799 = vmatmul.bf16.gmra.mxu0 %v702
      %v800 = vpop.f32.mrf.mxu0
      %v801 = vadd.f32 0.0, %v800
      %v802 = vpop.f32.mrf.mxu0
      %v803 = vadd.f32 0.0, %v802
      %804 = vmatmul.bf16.gmra.mxu0 %v703
      %v805 = vpop.f32.mrf.mxu0
      %v806 = vadd.f32 0.0, %v805
      %v807 = vpop.f32.mrf.mxu0
      %v808 = vadd.f32 0.0, %v807
      %809 = vmatmul.bf16.gmra.mxu0 %v704
      %v810 = vpop.f32.mrf.mxu0
      %v811 = vadd.f32 0.0, %v810
      %v812 = vpop.f32.mrf.mxu0
      %v813 = vadd.f32 0.0, %v812
      %814 = vmatmul.bf16.gmra.mxu0 %v705
      %v815 = vpop.f32.mrf.mxu0
      %v816 = vadd.f32 0.0, %v815
      %v817 = vpop.f32.mrf.mxu0
      %v818 = vadd.f32 0.0, %v817
      %819 = vmatmul.bf16.gmra.mxu0 %v706
      %v820 = vpop.f32.mrf.mxu0
      %v821 = vadd.f32 0.0, %v820
      %v822 = vpop.f32.mrf.mxu0
      %v823 = vadd.f32 0.0, %v822
      %824 = vmatmul.bf16.gmra.mxu0 %v707
      %v825 = vpop.f32.mrf.mxu0
      %v826 = vadd.f32 0.0, %v825
      %v827 = vpop.f32.mrf.mxu0
      %v828 = vadd.f32 0.0, %v827
      %829 = vmatmul.bf16.gmra.mxu0 %v708
      %v830 = vpop.f32.mrf.mxu0
      %v831 = vadd.f32 0.0, %v830
      %v832 = vpop.f32.mrf.mxu0
      %v833 = vadd.f32 0.0, %v832
      %834 = vmatmul.bf16.gmra.mxu0 %v709
      %v835 = vpop.f32.mrf.mxu0
      %v836 = vadd.f32 0.0, %v835
      %v837 = vpop.f32.mrf.mxu0
      %v838 = vadd.f32 0.0, %v837
      %839 = vmatmul.bf16.gmra.mxu0 %v710
      %v840 = vpop.f32.mrf.mxu0
      %v841 = vadd.f32 0.0, %v840
      %v842 = vpop.f32.mrf.mxu0
      %v843 = vadd.f32 0.0, %v842
      %844 = vmatmul.bf16.gmra.mxu0 %v711
      %v845 = vpop.f32.mrf.mxu0
      %v846 = vadd.f32 0.0, %v845
      %v847 = vpop.f32.mrf.mxu0
      %v848 = vadd.f32 0.0, %v847
      %849 = vmatmul.bf16.gmra.mxu0 %v712
      %v850 = vpop.f32.mrf.mxu0
      %v851 = vadd.f32 0.0, %v850
      %v852 = vpop.f32.mrf.mxu0
      %v853 = vadd.f32 0.0, %v852
      %854 = vmatmul.bf16.gmra.mxu0 %v713
      %v855 = vpop.f32.mrf.mxu0
      %v856 = vadd.f32 0.0, %v855
      %v857 = vpop.f32.mrf.mxu0
      %v858 = vadd.f32 0.0, %v857
      %859 = vmatmul.bf16.gmra.mxu0 %v714
      %v860 = vpop.f32.mrf.mxu0
      %v861 = vadd.f32 0.0, %v860
      %v862 = vpop.f32.mrf.mxu0
      %v863 = vadd.f32 0.0, %v862
      %864 = vmatmul.bf16.gmra.mxu0 %v715
      %v865 = vpop.f32.mrf.mxu0
      %v866 = vadd.f32 0.0, %v865
      %v867 = vpop.f32.mrf.mxu0
      %v868 = vadd.f32 0.0, %v867
      %869 = vdwg.mxu0
      %v886 = vunpack.c.l.b16 %v523
      %v887 = vunpack.c.l.b16 %v524
      %v888 = vunpack.c.l.b16 %v525
      %v889 = vunpack.c.l.b16 %v526
      %v890 = vunpack.c.l.b16 %v527
      %v891 = vunpack.c.l.b16 %v528
      %v892 = vunpack.c.l.b16 %v529
      %v893 = vunpack.c.l.b16 %v530
      %v894 = vunpack.c.l.b16 %v531
      %v895 = vunpack.c.l.b16 %v532
      %v896 = vunpack.c.l.b16 %v533
      %v897 = vunpack.c.l.b16 %v534
      %v898 = vunpack.c.l.b16 %v535
      %v899 = vunpack.c.l.b16 %v536
      %v900 = vunpack.c.l.b16 %v537
      %v901 = vunpack.c.l.b16 %v538
      %v902 = vpack.c.b16 %v887, %v886
      %v903 = vpack.c.b16 %v889, %v888
      %v904 = vpack.c.b16 %v891, %v890
      %v905 = vpack.c.b16 %v893, %v892
      %v906 = vpack.c.b16 %v895, %v894
      %v907 = vpack.c.b16 %v897, %v896
      %v908 = vpack.c.b16 %v899, %v898
      %v909 = vpack.c.b16 %v901, %v900
      %918 = vmatpush.bf16.msra.mxu0 %v909
      %919 = vmatpush.bf16.msra.mxu0 %v908
      %920 = vmatpush.bf16.msra.mxu0 %v907
      %921 = vmatpush.bf16.msra.mxu0 %v906
      %922 = vmatpush.bf16.msra.mxu0 %v905
      %923 = vmatpush.bf16.msra.mxu0 %v904
      %924 = vmatpush.bf16.msra.mxu0 %v903
      %925 = vmatpush.bf16.msra.mxu0 %v902
      %926 = vmatmul.bf16.gmra.mxu0 %v507
      %v927 = vpop.f32.mrf.mxu0
      %v928 = vadd.f32 %v791, %v927
      %v929 = vpop.f32.mrf.mxu0
      %v930 = vadd.f32 %v793, %v929
      %931 = vmatmul.bf16.gmra.mxu0 %v508
      %v932 = vpop.f32.mrf.mxu0
      %v933 = vadd.f32 %v796, %v932
      %v934 = vpop.f32.mrf.mxu0
      %v935 = vadd.f32 %v798, %v934
      %936 = vmatmul.bf16.gmra.mxu0 %v509
      %v937 = vpop.f32.mrf.mxu0
      %v938 = vadd.f32 %v801, %v937
      %v939 = vpop.f32.mrf.mxu0
      %v940 = vadd.f32 %v803, %v939
      %941 = vmatmul.bf16.gmra.mxu0 %v510
      %v942 = vpop.f32.mrf.mxu0
      %v943 = vadd.f32 %v806, %v942
      %v944 = vpop.f32.mrf.mxu0
      %v945 = vadd.f32 %v808, %v944
      %946 = vmatmul.bf16.gmra.mxu0 %v511
      %v947 = vpop.f32.mrf.mxu0
      %v948 = vadd.f32 %v811, %v947
      %v949 = vpop.f32.mrf.mxu0
      %v950 = vadd.f32 %v813, %v949
      %951 = vmatmul.bf16.gmra.mxu0 %v512
      %v952 = vpop.f32.mrf.mxu0
      %v953 = vadd.f32 %v816, %v952
      %v954 = vpop.f32.mrf.mxu0
      %v955 = vadd.f32 %v818, %v954
      %956 = vmatmul.bf16.gmra.mxu0 %v513
      %v957 = vpop.f32.mrf.mxu0
      %v958 = vadd.f32 %v821, %v957
      %v959 = vpop.f32.mrf.mxu0
      %v960 = vadd.f32 %v823, %v959
      %961 = vmatmul.bf16.gmra.mxu0 %v514
      %v962 = vpop.f32.mrf.mxu0
      %v963 = vadd.f32 %v826, %v962
      %v964 = vpop.f32.mrf.mxu0
      %v965 = vadd.f32 %v828, %v964
      %966 = vmatmul.bf16.gmra.mxu0 %v515
      %v967 = vpop.f32.mrf.mxu0
      %v968 = vadd.f32 %v831, %v967
      %v969 = vpop.f32.mrf.mxu0
      %v970 = vadd.f32 %v833, %v969
      %971 = vmatmul.bf16.gmra.mxu0 %v516
      %v972 = vpop.f32.mrf.mxu0
      %v973 = vadd.f32 %v836, %v972
      %v974 = vpop.f32.mrf.mxu0
      %v975 = vadd.f32 %v838, %v974
      %976 = vmatmul.bf16.gmra.mxu0 %v517
      %v977 = vpop.f32.mrf.mxu0
      %v978 = vadd.f32 %v841, %v977
      %v979 = vpop.f32.mrf.mxu0
      %v980 = vadd.f32 %v843, %v979
      %981 = vmatmul.bf16.gmra.mxu0 %v518
      %v982 = vpop.f32.mrf.mxu0
      %v983 = vadd.f32 %v846, %v982
      %v984 = vpop.f32.mrf.mxu0
      %v985 = vadd.f32 %v848, %v984
      %986 = vmatmul.bf16.gmra.mxu0 %v519
      %v987 = vpop.f32.mrf.mxu0
      %v988 = vadd.f32 %v851, %v987
      %v989 = vpop.f32.mrf.mxu0
      %v990 = vadd.f32 %v853, %v989
      %991 = vmatmul.bf16.gmra.mxu0 %v520
      %v992 = vpop.f32.mrf.mxu0
      %v993 = vadd.f32 %v856, %v992
      %v994 = vpop.f32.mrf.mxu0
      %v995 = vadd.f32 %v858, %v994
      %996 = vmatmul.bf16.gmra.mxu0 %v521
      %v997 = vpop.f32.mrf.mxu0
      %v998 = vadd.f32 %v861, %v997
      %v999 = vpop.f32.mrf.mxu0
      %v1000 = vadd.f32 %v863, %v999
      %1001 = vmatmul.bf16.gmra.mxu0 %v522
      %v1002 = vpop.f32.mrf.mxu0
      %v1003 = vadd.f32 %v866, %v1002
      %v1004 = vpop.f32.mrf.mxu0
      %v1005 = vadd.f32 %v868, %v1004
      %1006 = vdwg.mxu0
      %vm1007 = vcmask 1045504
      %v1008 = vrot.slane %v453, 2
      %v1009 = vrot.slane %v454, 2
      %v1010 = vsel %vm1007, %v1008, %v1009
      %v1011 = vrot.slane %v455, 2
      %v1012 = vsel %vm1007, %v1009, %v1011
      %v1013 = vrot.slane %v456, 2
      %v1014 = vrot.slane %v457, 2
      %v1015 = vsel %vm1007, %v1013, %v1014
      %v1016 = vrot.slane %v458, 2
      %v1017 = vsel %vm1007, %v1014, %v1016
      %v1018 = vrot.slane %v459, 2
      %v1019 = vrot.slane %v460, 2
      %v1020 = vsel %vm1007, %v1018, %v1019
      %v1021 = vrot.slane %v461, 2
      %v1022 = vsel %vm1007, %v1019, %v1021
      %v1023 = vrot.slane %v462, 2
      %v1024 = vrot.slane %v463, 2
      %v1025 = vsel %vm1007, %v1023, %v1024
      %v1026 = vrot.slane %v464, 2
      %v1027 = vsel %vm1007, %v1024, %v1026
      %v1028 = vrot.slane %v465, 2
      %v1029 = vrot.slane %v466, 2
      %v1030 = vsel %vm1007, %v1028, %v1029
      %v1031 = vrot.slane %v467, 2
      %v1032 = vsel %vm1007, %v1029, %v1031
      %v1033 = vrot.slane %v468, 2
      %v1034 = vrot.slane %v469, 2
      %v1035 = vsel %vm1007, %v1033, %v1034
      %v1036 = vrot.slane %v470, 2
      %v1037 = vsel %vm1007, %v1034, %v1036
      %v1038 = vrot.slane %v471, 2
      %v1039 = vrot.slane %v472, 2
      %v1040 = vsel %vm1007, %v1038, %v1039
      %v1041 = vrot.slane %v473, 2
      %v1042 = vsel %vm1007, %v1039, %v1041
      %v1043 = vrot.slane %v474, 2
      %v1044 = vrot.slane %v475, 2
      %v1045 = vsel %vm1007, %v1043, %v1044
      %v1046 = vrot.slane %v476, 2
      %v1047 = vsel %vm1007, %v1044, %v1046
      %v1048 = vrot.slane %v477, 2
      %v1049 = vrot.slane %v478, 2
      %v1050 = vsel %vm1007, %v1048, %v1049
      %v1051 = vrot.slane %v479, 2
      %v1052 = vsel %vm1007, %v1049, %v1051
      %v1053 = vrot.slane %v480, 2
      %v1054 = vrot.slane %v481, 2
      %v1055 = vsel %vm1007, %v1053, %v1054
      %v1056 = vrot.slane %v482, 2
      %v1057 = vsel %vm1007, %v1054, %v1056
      %v1058 = vrot.slane %v483, 2
      %v1059 = vrot.slane %v484, 2
      %v1060 = vsel %vm1007, %v1058, %v1059
      %v1061 = vrot.slane %v485, 2
      %v1062 = vsel %vm1007, %v1059, %v1061
      %v1063 = vrot.slane %v486, 2
      %v1064 = vrot.slane %v487, 2
      %v1065 = vsel %vm1007, %v1063, %v1064
      %v1066 = vrot.slane %v488, 2
      %v1067 = vsel %vm1007, %v1064, %v1066
      %v1068 = vrot.slane %v489, 2
      %v1069 = vrot.slane %v490, 2
      %v1070 = vsel %vm1007, %v1068, %v1069
      %v1071 = vrot.slane %v491, 2
      %v1072 = vsel %vm1007, %v1069, %v1071
      %v1073 = vrot.slane %v492, 2
      %v1074 = vrot.slane %v493, 2
      %v1075 = vsel %vm1007, %v1073, %v1074
      %v1076 = vrot.slane %v494, 2
      %v1077 = vsel %vm1007, %v1074, %v1076
      %v1078 = vrot.slane %v495, 2
      %v1079 = vrot.slane %v496, 2
      %v1080 = vsel %vm1007, %v1078, %v1079
      %v1081 = vrot.slane %v497, 2
      %v1082 = vsel %vm1007, %v1079, %v1081
      %v1083 = vrot.slane %v498, 2
      %v1084 = vrot.slane %v499, 2
      %v1085 = vsel %vm1007, %v1083, %v1084
      %v1086 = vrot.slane %v500, 2
      %v1087 = vsel %vm1007, %v1084, %v1086
      %v1120 = vpack.c.bf16 %v1012, %v1010
      %v1121 = vpack.c.bf16 %v1017, %v1015
      %v1122 = vpack.c.bf16 %v1022, %v1020
      %v1123 = vpack.c.bf16 %v1027, %v1025
      %v1124 = vpack.c.bf16 %v1032, %v1030
      %v1125 = vpack.c.bf16 %v1037, %v1035
      %v1126 = vpack.c.bf16 %v1042, %v1040
      %v1127 = vpack.c.bf16 %v1047, %v1045
      %v1128 = vpack.c.bf16 %v1052, %v1050
      %v1129 = vpack.c.bf16 %v1057, %v1055
      %v1130 = vpack.c.bf16 %v1062, %v1060
      %v1131 = vpack.c.bf16 %v1067, %v1065
      %v1132 = vpack.c.bf16 %v1072, %v1070
      %v1133 = vpack.c.bf16 %v1077, %v1075
      %v1134 = vpack.c.bf16 %v1082, %v1080
      %v1135 = vpack.c.bf16 %v1087, %v1085
      %s1136 = scalar_lea.vmem %s3, 128
      %v1137 = vld [vmem:[%s1136] sm:$0xf]
      %v1138 = vld [vmem:[%s1136 + $0x4] sm:$0xf]
      %v1139 = vld [vmem:[%s1136 + $0x8] sm:$0xf]
      %v1140 = vld [vmem:[%s1136 + $0xc] sm:$0xf]
      %v1141 = vld [vmem:[%s1136 + $0x10] sm:$0xf]
      %v1142 = vld [vmem:[%s1136 + $0x14] sm:$0xf]
      %v1143 = vld [vmem:[%s1136 + $0x18] sm:$0xf]
      %v1144 = vld [vmem:[%s1136 + $0x1c] sm:$0xf]
      %v1145 = vld [vmem:[%s1136 + $0x20] sm:$0xf]
      %v1146 = vld [vmem:[%s1136 + $0x24] sm:$0xf]
      %v1147 = vld [vmem:[%s1136 + $0x28] sm:$0xf]
      %v1148 = vld [vmem:[%s1136 + $0x2c] sm:$0xf]
      %v1149 = vld [vmem:[%s1136 + $0x30] sm:$0xf]
      %v1150 = vld [vmem:[%s1136 + $0x34] sm:$0xf]
      %v1151 = vld [vmem:[%s1136 + $0x38] sm:$0xf]
      %v1152 = vld [vmem:[%s1136 + $0x3c] sm:$0xf]
      %v1169 = vunpack.c.l.b16 %v1137
      %v1170 = vunpack.c.l.b16 %v1138
      %v1171 = vunpack.c.l.b16 %v1139
      %v1172 = vunpack.c.l.b16 %v1140
      %v1173 = vunpack.c.l.b16 %v1141
      %v1174 = vunpack.c.l.b16 %v1142
      %v1175 = vunpack.c.l.b16 %v1143
      %v1176 = vunpack.c.l.b16 %v1144
      %v1177 = vunpack.c.l.b16 %v1145
      %v1178 = vunpack.c.l.b16 %v1146
      %v1179 = vunpack.c.l.b16 %v1147
      %v1180 = vunpack.c.l.b16 %v1148
      %v1181 = vunpack.c.l.b16 %v1149
      %v1182 = vunpack.c.l.b16 %v1150
      %v1183 = vunpack.c.l.b16 %v1151
      %v1184 = vunpack.c.l.b16 %v1152
      %v1185 = vpack.c.b16 %v1170, %v1169
      %v1186 = vpack.c.b16 %v1172, %v1171
      %v1187 = vpack.c.b16 %v1174, %v1173
      %v1188 = vpack.c.b16 %v1176, %v1175
      %v1189 = vpack.c.b16 %v1178, %v1177
      %v1190 = vpack.c.b16 %v1180, %v1179
      %v1191 = vpack.c.b16 %v1182, %v1181
      %v1192 = vpack.c.b16 %v1184, %v1183
      %1201 = vmatpush.bf16.msra.mxu0 %v1192
      %1202 = vmatpush.bf16.msra.mxu0 %v1191
      %1203 = vmatpush.bf16.msra.mxu0 %v1190
      %1204 = vmatpush.bf16.msra.mxu0 %v1189
      %1205 = vmatpush.bf16.msra.mxu0 %v1188
      %1206 = vmatpush.bf16.msra.mxu0 %v1187
      %1207 = vmatpush.bf16.msra.mxu0 %v1186
      %1208 = vmatpush.bf16.msra.mxu0 %v1185
      %1209 = vmatmul.bf16.gmra.mxu0 %v1120
      %v1210 = vpop.f32.mrf.mxu0
      %v1211 = vadd.f32 0.0, %v1210
      %v1212 = vpop.f32.mrf.mxu0
      %v1213 = vadd.f32 0.0, %v1212
      %1214 = vmatmul.bf16.gmra.mxu0 %v1121
      %v1215 = vpop.f32.mrf.mxu0
      %v1216 = vadd.f32 0.0, %v1215
      %v1217 = vpop.f32.mrf.mxu0
      %v1218 = vadd.f32 0.0, %v1217
      %1219 = vmatmul.bf16.gmra.mxu0 %v1122
      %v1220 = vpop.f32.mrf.mxu0
      %v1221 = vadd.f32 0.0, %v1220
      %v1222 = vpop.f32.mrf.mxu0
      %v1223 = vadd.f32 0.0, %v1222
      %1224 = vmatmul.bf16.gmra.mxu0 %v1123
      %v1225 = vpop.f32.mrf.mxu0
      %v1226 = vadd.f32 0.0, %v1225
      %v1227 = vpop.f32.mrf.mxu0
      %v1228 = vadd.f32 0.0, %v1227
      %1229 = vmatmul.bf16.gmra.mxu0 %v1124
      %v1230 = vpop.f32.mrf.mxu0
      %v1231 = vadd.f32 0.0, %v1230
      %v1232 = vpop.f32.mrf.mxu0
      %v1233 = vadd.f32 0.0, %v1232
      %1234 = vmatmul.bf16.gmra.mxu0 %v1125
      %v1235 = vpop.f32.mrf.mxu0
      %v1236 = vadd.f32 0.0, %v1235
      %v1237 = vpop.f32.mrf.mxu0
      %v1238 = vadd.f32 0.0, %v1237
      %1239 = vmatmul.bf16.gmra.mxu0 %v1126
      %v1240 = vpop.f32.mrf.mxu0
      %v1241 = vadd.f32 0.0, %v1240
      %v1242 = vpop.f32.mrf.mxu0
      %v1243 = vadd.f32 0.0, %v1242
      %1244 = vmatmul.bf16.gmra.mxu0 %v1127
      %v1245 = vpop.f32.mrf.mxu0
      %v1246 = vadd.f32 0.0, %v1245
      %v1247 = vpop.f32.mrf.mxu0
      %v1248 = vadd.f32 0.0, %v1247
      %1249 = vmatmul.bf16.gmra.mxu0 %v1128
      %v1250 = vpop.f32.mrf.mxu0
      %v1251 = vadd.f32 0.0, %v1250
      %v1252 = vpop.f32.mrf.mxu0
      %v1253 = vadd.f32 0.0, %v1252
      %1254 = vmatmul.bf16.gmra.mxu0 %v1129
      %v1255 = vpop.f32.mrf.mxu0
      %v1256 = vadd.f32 0.0, %v1255
      %v1257 = vpop.f32.mrf.mxu0
      %v1258 = vadd.f32 0.0, %v1257
      %1259 = vmatmul.bf16.gmra.mxu0 %v1130
      %v1260 = vpop.f32.mrf.mxu0
      %v1261 = vadd.f32 0.0, %v1260
      %v1262 = vpop.f32.mrf.mxu0
      %v1263 = vadd.f32 0.0, %v1262
      %1264 = vmatmul.bf16.gmra.mxu0 %v1131
      %v1265 = vpop.f32.mrf.mxu0
      %v1266 = vadd.f32 0.0, %v1265
      %v1267 = vpop.f32.mrf.mxu0
      %v1268 = vadd.f32 0.0, %v1267
      %1269 = vmatmul.bf16.gmra.mxu0 %v1132
      %v1270 = vpop.f32.mrf.mxu0
      %v1271 = vadd.f32 0.0, %v1270
      %v1272 = vpop.f32.mrf.mxu0
      %v1273 = vadd.f32 0.0, %v1272
      %1274 = vmatmul.bf16.gmra.mxu0 %v1133
      %v1275 = vpop.f32.mrf.mxu0
      %v1276 = vadd.f32 0.0, %v1275
      %v1277 = vpop.f32.mrf.mxu0
      %v1278 = vadd.f32 0.0, %v1277
      %1279 = vmatmul.bf16.gmra.mxu0 %v1134
      %v1280 = vpop.f32.mrf.mxu0
      %v1281 = vadd.f32 0.0, %v1280
      %v1282 = vpop.f32.mrf.mxu0
      %v1283 = vadd.f32 0.0, %v1282
      %1284 = vmatmul.bf16.gmra.mxu0 %v1135
      %v1285 = vpop.f32.mrf.mxu0
      %v1286 = vadd.f32 0.0, %v1285
      %v1287 = vpop.f32.mrf.mxu0
      %v1288 = vadd.f32 0.0, %v1287
      %1289 = vdwg.mxu0
      %v1290 = vadd.f32 %v928, %v1211
      %v1291 = vadd.f32 %v930, %v1213
      %v1292 = vadd.f32 %v933, %v1216
      %v1293 = vadd.f32 %v935, %v1218
      %v1294 = vadd.f32 %v938, %v1221
      %v1295 = vadd.f32 %v940, %v1223
      %v1296 = vadd.f32 %v943, %v1226
      %v1297 = vadd.f32 %v945, %v1228
      %v1298 = vadd.f32 %v948, %v1231
      %v1299 = vadd.f32 %v950, %v1233
      %v1300 = vadd.f32 %v953, %v1236
      %v1301 = vadd.f32 %v955, %v1238
      %v1302 = vadd.f32 %v958, %v1241
      %v1303 = vadd.f32 %v960, %v1243
      %v1304 = vadd.f32 %v963, %v1246
      %v1305 = vadd.f32 %v965, %v1248
      %v1306 = vadd.f32 %v968, %v1251
      %v1307 = vadd.f32 %v970, %v1253
      %v1308 = vadd.f32 %v973, %v1256
      %v1309 = vadd.f32 %v975, %v1258
      %v1310 = vadd.f32 %v978, %v1261
      %v1311 = vadd.f32 %v980, %v1263
      %v1312 = vadd.f32 %v983, %v1266
      %v1313 = vadd.f32 %v985, %v1268
      %v1314 = vadd.f32 %v988, %v1271
      %v1315 = vadd.f32 %v990, %v1273
      %v1316 = vadd.f32 %v993, %v1276
      %v1317 = vadd.f32 %v995, %v1278
      %v1318 = vadd.f32 %v998, %v1281
      %v1319 = vadd.f32 %v1000, %v1283
      %v1320 = vadd.f32 %v1003, %v1286
      %v1321 = vadd.f32 %v1005, %v1288
      %v1322 = vpack.c.bf16 %v502, %v501
      %s1323 = scalar_lea.vmem %s3, 192
      %v1324 = vld [vmem:[%s1323] sm:$0xf]
      %v1325 = vld [vmem:[%s1323 + $0x4] sm:$0xf]
      %v1326 = vld [vmem:[%s1323 + $0x8] sm:$0xf]
      %v1327 = vld [vmem:[%s1323 + $0xc] sm:$0xf]
      %v1328 = vld [vmem:[%s1323 + $0x10] sm:$0xf]
      %v1329 = vld [vmem:[%s1323 + $0x14] sm:$0xf]
      %v1330 = vld [vmem:[%s1323 + $0x18] sm:$0xf]
      %v1331 = vld [vmem:[%s1323 + $0x1c] sm:$0xf]
      %v1332 = vld [vmem:[%s1323 + $0x20] sm:$0xf]
      %v1333 = vld [vmem:[%s1323 + $0x24] sm:$0xf]
      %v1334 = vld [vmem:[%s1323 + $0x28] sm:$0xf]
      %v1335 = vld [vmem:[%s1323 + $0x2c] sm:$0xf]
      %v1336 = vld [vmem:[%s1323 + $0x30] sm:$0xf]
      %v1337 = vld [vmem:[%s1323 + $0x34] sm:$0xf]
      %v1338 = vld [vmem:[%s1323 + $0x38] sm:$0xf]
      %v1339 = vld [vmem:[%s1323 + $0x3c] sm:$0xf]
      %v1356 = vunpack.c.l.b16 %v1324
      %v1357 = vunpack.c.l.b16 %v1325
      %v1358 = vunpack.c.l.b16 %v1326
      %v1359 = vunpack.c.l.b16 %v1327
      %v1360 = vunpack.c.l.b16 %v1328
      %v1361 = vunpack.c.l.b16 %v1329
      %v1362 = vunpack.c.l.b16 %v1330
      %v1363 = vunpack.c.l.b16 %v1331
      %v1364 = vunpack.c.l.b16 %v1332
      %v1365 = vunpack.c.l.b16 %v1333
      %v1366 = vunpack.c.l.b16 %v1334
      %v1367 = vunpack.c.l.b16 %v1335
      %v1368 = vunpack.c.l.b16 %v1336
      %v1369 = vunpack.c.l.b16 %v1337
      %v1370 = vunpack.c.l.b16 %v1338
      %v1371 = vunpack.c.l.b16 %v1339
      %v1372 = vpack.c.b16 %v1357, %v1356
      %v1373 = vpack.c.b16 %v1359, %v1358
      %v1374 = vpack.c.b16 %v1361, %v1360
      %v1375 = vpack.c.b16 %v1363, %v1362
      %v1376 = vpack.c.b16 %v1365, %v1364
      %v1377 = vpack.c.b16 %v1367, %v1366
      %v1378 = vpack.c.b16 %v1369, %v1368
      %v1379 = vpack.c.b16 %v1371, %v1370
      %1388 = vmatpush.bf16.msra.mxu0 %v1379
      %1389 = vmatpush.bf16.msra.mxu0 %v1378
      %1390 = vmatpush.bf16.msra.mxu0 %v1377
      %1391 = vmatpush.bf16.msra.mxu0 %v1376
      %1392 = vmatpush.bf16.msra.mxu0 %v1375
      %1393 = vmatpush.bf16.msra.mxu0 %v1374
      %1394 = vmatpush.bf16.msra.mxu0 %v1373
      %1395 = vmatpush.bf16.msra.mxu0 %v1372
      %1396 = vmatmul.bf16.gmra.mxu0 %v508
      %v1397 = vpop.f32.mrf.mxu0
      %v1398 = vadd.f32 0.0, %v1397
      %v1399 = vpop.f32.mrf.mxu0
      %v1400 = vadd.f32 0.0, %v1399
      %1401 = vmatmul.bf16.gmra.mxu0 %v509
      %v1402 = vpop.f32.mrf.mxu0
      %v1403 = vadd.f32 0.0, %v1402
      %v1404 = vpop.f32.mrf.mxu0
      %v1405 = vadd.f32 0.0, %v1404
      %1406 = vmatmul.bf16.gmra.mxu0 %v510
      %v1407 = vpop.f32.mrf.mxu0
      %v1408 = vadd.f32 0.0, %v1407
      %v1409 = vpop.f32.mrf.mxu0
      %v1410 = vadd.f32 0.0, %v1409
      %1411 = vmatmul.bf16.gmra.mxu0 %v511
      %v1412 = vpop.f32.mrf.mxu0
      %v1413 = vadd.f32 0.0, %v1412
      %v1414 = vpop.f32.mrf.mxu0
      %v1415 = vadd.f32 0.0, %v1414
      %1416 = vmatmul.bf16.gmra.mxu0 %v512
      %v1417 = vpop.f32.mrf.mxu0
      %v1418 = vadd.f32 0.0, %v1417
      %v1419 = vpop.f32.mrf.mxu0
      %v1420 = vadd.f32 0.0, %v1419
      %1421 = vmatmul.bf16.gmra.mxu0 %v513
      %v1422 = vpop.f32.mrf.mxu0
      %v1423 = vadd.f32 0.0, %v1422
      %v1424 = vpop.f32.mrf.mxu0
      %v1425 = vadd.f32 0.0, %v1424
      %1426 = vmatmul.bf16.gmra.mxu0 %v514
      %v1427 = vpop.f32.mrf.mxu0
      %v1428 = vadd.f32 0.0, %v1427
      %v1429 = vpop.f32.mrf.mxu0
      %v1430 = vadd.f32 0.0, %v1429
      %1431 = vmatmul.bf16.gmra.mxu0 %v515
      %v1432 = vpop.f32.mrf.mxu0
      %v1433 = vadd.f32 0.0, %v1432
      %v1434 = vpop.f32.mrf.mxu0
      %v1435 = vadd.f32 0.0, %v1434
      %1436 = vmatmul.bf16.gmra.mxu0 %v516
      %v1437 = vpop.f32.mrf.mxu0
      %v1438 = vadd.f32 0.0, %v1437
      %v1439 = vpop.f32.mrf.mxu0
      %v1440 = vadd.f32 0.0, %v1439
      %1441 = vmatmul.bf16.gmra.mxu0 %v517
      %v1442 = vpop.f32.mrf.mxu0
      %v1443 = vadd.f32 0.0, %v1442
      %v1444 = vpop.f32.mrf.mxu0
      %v1445 = vadd.f32 0.0, %v1444
      %1446 = vmatmul.bf16.gmra.mxu0 %v518
      %v1447 = vpop.f32.mrf.mxu0
      %v1448 = vadd.f32 0.0, %v1447
      %v1449 = vpop.f32.mrf.mxu0
      %v1450 = vadd.f32 0.0, %v1449
      %1451 = vmatmul.bf16.gmra.mxu0 %v519
      %v1452 = vpop.f32.mrf.mxu0
      %v1453 = vadd.f32 0.0, %v1452
      %v1454 = vpop.f32.mrf.mxu0
      %v1455 = vadd.f32 0.0, %v1454
      %1456 = vmatmul.bf16.gmra.mxu0 %v520
      %v1457 = vpop.f32.mrf.mxu0
      %v1458 = vadd.f32 0.0, %v1457
      %v1459 = vpop.f32.mrf.mxu0
      %v1460 = vadd.f32 0.0, %v1459
      %1461 = vmatmul.bf16.gmra.mxu0 %v521
      %v1462 = vpop.f32.mrf.mxu0
      %v1463 = vadd.f32 0.0, %v1462
      %v1464 = vpop.f32.mrf.mxu0
      %v1465 = vadd.f32 0.0, %v1464
      %1466 = vmatmul.bf16.gmra.mxu0 %v522
      %v1467 = vpop.f32.mrf.mxu0
      %v1468 = vadd.f32 0.0, %v1467
      %v1469 = vpop.f32.mrf.mxu0
      %v1470 = vadd.f32 0.0, %v1469
      %1471 = vmatmul.bf16.gmra.mxu0 %v1322
      %v1472 = vpop.f32.mrf.mxu0
      %v1473 = vadd.f32 0.0, %v1472
      %v1474 = vpop.f32.mrf.mxu0
      %v1475 = vadd.f32 0.0, %v1474
      %1476 = vdwg.mxu0
      %v1477 = vadd.f32 %v1290, %v1398
      %v1478 = vadd.f32 %v1291, %v1400
      %v1479 = vadd.f32 %v1292, %v1403
      %v1480 = vadd.f32 %v1293, %v1405
      %v1481 = vadd.f32 %v1294, %v1408
      %v1482 = vadd.f32 %v1295, %v1410
      %v1483 = vadd.f32 %v1296, %v1413
      %v1484 = vadd.f32 %v1297, %v1415
      %v1485 = vadd.f32 %v1298, %v1418
      %v1486 = vadd.f32 %v1299, %v1420
      %v1487 = vadd.f32 %v1300, %v1423
      %v1488 = vadd.f32 %v1301, %v1425
      %v1489 = vadd.f32 %v1302, %v1428
      %v1490 = vadd.f32 %v1303, %v1430
      %v1491 = vadd.f32 %v1304, %v1433
      %v1492 = vadd.f32 %v1305, %v1435
      %v1493 = vadd.f32 %v1306, %v1438
      %v1494 = vadd.f32 %v1307, %v1440
      %v1495 = vadd.f32 %v1308, %v1443
      %v1496 = vadd.f32 %v1309, %v1445
      %v1497 = vadd.f32 %v1310, %v1448
      %v1498 = vadd.f32 %v1311, %v1450
      %v1499 = vadd.f32 %v1312, %v1453
      %v1500 = vadd.f32 %v1313, %v1455
      %v1501 = vadd.f32 %v1314, %v1458
      %v1502 = vadd.f32 %v1315, %v1460
      %v1503 = vadd.f32 %v1316, %v1463
      %v1504 = vadd.f32 %v1317, %v1465
      %v1505 = vadd.f32 %v1318, %v1468
      %v1506 = vadd.f32 %v1319, %v1470
      %v1507 = vadd.f32 %v1320, %v1473
      %v1508 = vadd.f32 %v1321, %v1475
      %v1512 = vrot.slane %v501, 1
      %v1513 = vrot.slane %v502, 1
      %v1514 = vsel %vm587, %v1512, %v1513
      %v1515 = vrot.slane %v503, 1
      %v1516 = vsel %vm587, %v1513, %v1515
      %v1519 = vpack.c.bf16 %v1516, %v1514
      %s1520 = scalar_lea.vmem %s3, 256
      %v1521 = vld [vmem:[%s1520] sm:$0xf]
      %v1522 = vld [vmem:[%s1520 + $0x4] sm:$0xf]
      %v1523 = vld [vmem:[%s1520 + $0x8] sm:$0xf]
      %v1524 = vld [vmem:[%s1520 + $0xc] sm:$0xf]
      %v1525 = vld [vmem:[%s1520 + $0x10] sm:$0xf]
      %v1526 = vld [vmem:[%s1520 + $0x14] sm:$0xf]
      %v1527 = vld [vmem:[%s1520 + $0x18] sm:$0xf]
      %v1528 = vld [vmem:[%s1520 + $0x1c] sm:$0xf]
      %v1529 = vld [vmem:[%s1520 + $0x20] sm:$0xf]
      %v1530 = vld [vmem:[%s1520 + $0x24] sm:$0xf]
      %v1531 = vld [vmem:[%s1520 + $0x28] sm:$0xf]
      %v1532 = vld [vmem:[%s1520 + $0x2c] sm:$0xf]
      %v1533 = vld [vmem:[%s1520 + $0x30] sm:$0xf]
      %v1534 = vld [vmem:[%s1520 + $0x34] sm:$0xf]
      %v1535 = vld [vmem:[%s1520 + $0x38] sm:$0xf]
      %v1536 = vld [vmem:[%s1520 + $0x3c] sm:$0xf]
      %v1553 = vunpack.c.l.b16 %v1521
      %v1554 = vunpack.c.l.b16 %v1522
      %v1555 = vunpack.c.l.b16 %v1523
      %v1556 = vunpack.c.l.b16 %v1524
      %v1557 = vunpack.c.l.b16 %v1525
      %v1558 = vunpack.c.l.b16 %v1526
      %v1559 = vunpack.c.l.b16 %v1527
      %v1560 = vunpack.c.l.b16 %v1528
      %v1561 = vunpack.c.l.b16 %v1529
      %v1562 = vunpack.c.l.b16 %v1530
      %v1563 = vunpack.c.l.b16 %v1531
      %v1564 = vunpack.c.l.b16 %v1532
      %v1565 = vunpack.c.l.b16 %v1533
      %v1566 = vunpack.c.l.b16 %v1534
      %v1567 = vunpack.c.l.b16 %v1535
      %v1568 = vunpack.c.l.b16 %v1536
      %v1569 = vpack.c.b16 %v1554, %v1553
      %v1570 = vpack.c.b16 %v1556, %v1555
      %v1571 = vpack.c.b16 %v1558, %v1557
      %v1572 = vpack.c.b16 %v1560, %v1559
      %v1573 = vpack.c.b16 %v1562, %v1561
      %v1574 = vpack.c.b16 %v1564, %v1563
      %v1575 = vpack.c.b16 %v1566, %v1565
      %v1576 = vpack.c.b16 %v1568, %v1567
      %1585 = vmatpush.bf16.msra.mxu0 %v1576
      %1586 = vmatpush.bf16.msra.mxu0 %v1575
      %1587 = vmatpush.bf16.msra.mxu0 %v1574
      %1588 = vmatpush.bf16.msra.mxu0 %v1573
      %1589 = vmatpush.bf16.msra.mxu0 %v1572
      %1590 = vmatpush.bf16.msra.mxu0 %v1571
      %1591 = vmatpush.bf16.msra.mxu0 %v1570
      %1592 = vmatpush.bf16.msra.mxu0 %v1569
      %1593 = vmatmul.bf16.gmra.mxu0 %v701
      %v1594 = vpop.f32.mrf.mxu0
      %v1595 = vadd.f32 0.0, %v1594
      %v1596 = vpop.f32.mrf.mxu0
      %v1597 = vadd.f32 0.0, %v1596
      %1598 = vmatmul.bf16.gmra.mxu0 %v702
      %v1599 = vpop.f32.mrf.mxu0
      %v1600 = vadd.f32 0.0, %v1599
      %v1601 = vpop.f32.mrf.mxu0
      %v1602 = vadd.f32 0.0, %v1601
      %1603 = vmatmul.bf16.gmra.mxu0 %v703
      %v1604 = vpop.f32.mrf.mxu0
      %v1605 = vadd.f32 0.0, %v1604
      %v1606 = vpop.f32.mrf.mxu0
      %v1607 = vadd.f32 0.0, %v1606
      %1608 = vmatmul.bf16.gmra.mxu0 %v704
      %v1609 = vpop.f32.mrf.mxu0
      %v1610 = vadd.f32 0.0, %v1609
      %v1611 = vpop.f32.mrf.mxu0
      %v1612 = vadd.f32 0.0, %v1611
      %1613 = vmatmul.bf16.gmra.mxu0 %v705
      %v1614 = vpop.f32.mrf.mxu0
      %v1615 = vadd.f32 0.0, %v1614
      %v1616 = vpop.f32.mrf.mxu0
      %v1617 = vadd.f32 0.0, %v1616
      %1618 = vmatmul.bf16.gmra.mxu0 %v706
      %v1619 = vpop.f32.mrf.mxu0
      %v1620 = vadd.f32 0.0, %v1619
      %v1621 = vpop.f32.mrf.mxu0
      %v1622 = vadd.f32 0.0, %v1621
      %1623 = vmatmul.bf16.gmra.mxu0 %v707
      %v1624 = vpop.f32.mrf.mxu0
      %v1625 = vadd.f32 0.0, %v1624
      %v1626 = vpop.f32.mrf.mxu0
      %v1627 = vadd.f32 0.0, %v1626
      %1628 = vmatmul.bf16.gmra.mxu0 %v708
      %v1629 = vpop.f32.mrf.mxu0
      %v1630 = vadd.f32 0.0, %v1629
      %v1631 = vpop.f32.mrf.mxu0
      %v1632 = vadd.f32 0.0, %v1631
      %1633 = vmatmul.bf16.gmra.mxu0 %v709
      %v1634 = vpop.f32.mrf.mxu0
      %v1635 = vadd.f32 0.0, %v1634
      %v1636 = vpop.f32.mrf.mxu0
      %v1637 = vadd.f32 0.0, %v1636
      %1638 = vmatmul.bf16.gmra.mxu0 %v710
      %v1639 = vpop.f32.mrf.mxu0
      %v1640 = vadd.f32 0.0, %v1639
      %v1641 = vpop.f32.mrf.mxu0
      %v1642 = vadd.f32 0.0, %v1641
      %1643 = vmatmul.bf16.gmra.mxu0 %v711
      %v1644 = vpop.f32.mrf.mxu0
      %v1645 = vadd.f32 0.0, %v1644
      %v1646 = vpop.f32.mrf.mxu0
      %v1647 = vadd.f32 0.0, %v1646
      %1648 = vmatmul.bf16.gmra.mxu0 %v712
      %v1649 = vpop.f32.mrf.mxu0
      %v1650 = vadd.f32 0.0, %v1649
      %v1651 = vpop.f32.mrf.mxu0
      %v1652 = vadd.f32 0.0, %v1651
      %1653 = vmatmul.bf16.gmra.mxu0 %v713
      %v1654 = vpop.f32.mrf.mxu0
      %v1655 = vadd.f32 0.0, %v1654
      %v1656 = vpop.f32.mrf.mxu0
      %v1657 = vadd.f32 0.0, %v1656
      %1658 = vmatmul.bf16.gmra.mxu0 %v714
      %v1659 = vpop.f32.mrf.mxu0
      %v1660 = vadd.f32 0.0, %v1659
      %v1661 = vpop.f32.mrf.mxu0
      %v1662 = vadd.f32 0.0, %v1661
      %1663 = vmatmul.bf16.gmra.mxu0 %v715
      %v1664 = vpop.f32.mrf.mxu0
      %v1665 = vadd.f32 0.0, %v1664
      %v1666 = vpop.f32.mrf.mxu0
      %v1667 = vadd.f32 0.0, %v1666
      %1668 = vmatmul.bf16.gmra.mxu0 %v1519
      %v1669 = vpop.f32.mrf.mxu0
      %v1670 = vadd.f32 0.0, %v1669
      %v1671 = vpop.f32.mrf.mxu0
      %v1672 = vadd.f32 0.0, %v1671
      %1673 = vdwg.mxu0
      %v1674 = vadd.f32 %v1477, %v1595
      %v1675 = vadd.f32 %v1478, %v1597
      %v1676 = vadd.f32 %v1479, %v1600
      %v1677 = vadd.f32 %v1480, %v1602
      %v1678 = vadd.f32 %v1481, %v1605
      %v1679 = vadd.f32 %v1482, %v1607
      %v1680 = vadd.f32 %v1483, %v1610
      %v1681 = vadd.f32 %v1484, %v1612
      %v1682 = vadd.f32 %v1485, %v1615
      %v1683 = vadd.f32 %v1486, %v1617
      %v1684 = vadd.f32 %v1487, %v1620
      %v1685 = vadd.f32 %v1488, %v1622
      %v1686 = vadd.f32 %v1489, %v1625
      %v1687 = vadd.f32 %v1490, %v1627
      %v1688 = vadd.f32 %v1491, %v1630
      %v1689 = vadd.f32 %v1492, %v1632
      %v1690 = vadd.f32 %v1493, %v1635
      %v1691 = vadd.f32 %v1494, %v1637
      %v1692 = vadd.f32 %v1495, %v1640
      %v1693 = vadd.f32 %v1496, %v1642
      %v1694 = vadd.f32 %v1497, %v1645
      %v1695 = vadd.f32 %v1498, %v1647
      %v1696 = vadd.f32 %v1499, %v1650
      %v1697 = vadd.f32 %v1500, %v1652
      %v1698 = vadd.f32 %v1501, %v1655
      %v1699 = vadd.f32 %v1502, %v1657
      %v1700 = vadd.f32 %v1503, %v1660
      %v1701 = vadd.f32 %v1504, %v1662
      %v1702 = vadd.f32 %v1505, %v1665
      %v1703 = vadd.f32 %v1506, %v1667
      %v1704 = vadd.f32 %v1507, %v1670
      %v1705 = vadd.f32 %v1508, %v1672
      %v1706 = vrot.slane %v501, 2
      %v1707 = vrot.slane %v502, 2
      %v1708 = vsel %vm1007, %v1706, %v1707
      %v1709 = vrot.slane %v503, 2
      %v1710 = vsel %vm1007, %v1707, %v1709
      %v1713 = vpack.c.bf16 %v1710, %v1708
      %s1714 = scalar_lea.vmem %s3, 320
      %v1715 = vld [vmem:[%s1714] sm:$0xf]
      %v1716 = vld [vmem:[%s1714 + $0x4] sm:$0xf]
      %v1717 = vld [vmem:[%s1714 + $0x8] sm:$0xf]
      %v1718 = vld [vmem:[%s1714 + $0xc] sm:$0xf]
      %v1719 = vld [vmem:[%s1714 + $0x10] sm:$0xf]
      %v1720 = vld [vmem:[%s1714 + $0x14] sm:$0xf]
      %v1721 = vld [vmem:[%s1714 + $0x18] sm:$0xf]
      %v1722 = vld [vmem:[%s1714 + $0x1c] sm:$0xf]
      %v1723 = vld [vmem:[%s1714 + $0x20] sm:$0xf]
      %v1724 = vld [vmem:[%s1714 + $0x24] sm:$0xf]
      %v1725 = vld [vmem:[%s1714 + $0x28] sm:$0xf]
      %v1726 = vld [vmem:[%s1714 + $0x2c] sm:$0xf]
      %v1727 = vld [vmem:[%s1714 + $0x30] sm:$0xf]
      %v1728 = vld [vmem:[%s1714 + $0x34] sm:$0xf]
      %v1729 = vld [vmem:[%s1714 + $0x38] sm:$0xf]
      %v1730 = vld [vmem:[%s1714 + $0x3c] sm:$0xf]
      %v1747 = vunpack.c.l.b16 %v1715
      %v1748 = vunpack.c.l.b16 %v1716
      %v1749 = vunpack.c.l.b16 %v1717
      %v1750 = vunpack.c.l.b16 %v1718
      %v1751 = vunpack.c.l.b16 %v1719
      %v1752 = vunpack.c.l.b16 %v1720
      %v1753 = vunpack.c.l.b16 %v1721
      %v1754 = vunpack.c.l.b16 %v1722
      %v1755 = vunpack.c.l.b16 %v1723
      %v1756 = vunpack.c.l.b16 %v1724
      %v1757 = vunpack.c.l.b16 %v1725
      %v1758 = vunpack.c.l.b16 %v1726
      %v1759 = vunpack.c.l.b16 %v1727
      %v1760 = vunpack.c.l.b16 %v1728
      %v1761 = vunpack.c.l.b16 %v1729
      %v1762 = vunpack.c.l.b16 %v1730
      %v1763 = vpack.c.b16 %v1748, %v1747
      %v1764 = vpack.c.b16 %v1750, %v1749
      %v1765 = vpack.c.b16 %v1752, %v1751
      %v1766 = vpack.c.b16 %v1754, %v1753
      %v1767 = vpack.c.b16 %v1756, %v1755
      %v1768 = vpack.c.b16 %v1758, %v1757
      %v1769 = vpack.c.b16 %v1760, %v1759
      %v1770 = vpack.c.b16 %v1762, %v1761
      %1779 = vmatpush.bf16.msra.mxu0 %v1770
      %1780 = vmatpush.bf16.msra.mxu0 %v1769
      %1781 = vmatpush.bf16.msra.mxu0 %v1768
      %1782 = vmatpush.bf16.msra.mxu0 %v1767
      %1783 = vmatpush.bf16.msra.mxu0 %v1766
      %1784 = vmatpush.bf16.msra.mxu0 %v1765
      %1785 = vmatpush.bf16.msra.mxu0 %v1764
      %1786 = vmatpush.bf16.msra.mxu0 %v1763
      %1787 = vmatmul.bf16.gmra.mxu0 %v1121
      %v1788 = vpop.f32.mrf.mxu0
      %v1789 = vadd.f32 0.0, %v1788
      %v1790 = vpop.f32.mrf.mxu0
      %v1791 = vadd.f32 0.0, %v1790
      %1792 = vmatmul.bf16.gmra.mxu0 %v1122
      %v1793 = vpop.f32.mrf.mxu0
      %v1794 = vadd.f32 0.0, %v1793
      %v1795 = vpop.f32.mrf.mxu0
      %v1796 = vadd.f32 0.0, %v1795
      %1797 = vmatmul.bf16.gmra.mxu0 %v1123
      %v1798 = vpop.f32.mrf.mxu0
      %v1799 = vadd.f32 0.0, %v1798
      %v1800 = vpop.f32.mrf.mxu0
      %v1801 = vadd.f32 0.0, %v1800
      %1802 = vmatmul.bf16.gmra.mxu0 %v1124
      %v1803 = vpop.f32.mrf.mxu0
      %v1804 = vadd.f32 0.0, %v1803
      %v1805 = vpop.f32.mrf.mxu0
      %v1806 = vadd.f32 0.0, %v1805
      %1807 = vmatmul.bf16.gmra.mxu0 %v1125
      %v1808 = vpop.f32.mrf.mxu0
      %v1809 = vadd.f32 0.0, %v1808
      %v1810 = vpop.f32.mrf.mxu0
      %v1811 = vadd.f32 0.0, %v1810
      %1812 = vmatmul.bf16.gmra.mxu0 %v1126
      %v1813 = vpop.f32.mrf.mxu0
      %v1814 = vadd.f32 0.0, %v1813
      %v1815 = vpop.f32.mrf.mxu0
      %v1816 = vadd.f32 0.0, %v1815
      %1817 = vmatmul.bf16.gmra.mxu0 %v1127
      %v1818 = vpop.f32.mrf.mxu0
      %v1819 = vadd.f32 0.0, %v1818
      %v1820 = vpop.f32.mrf.mxu0
      %v1821 = vadd.f32 0.0, %v1820
      %1822 = vmatmul.bf16.gmra.mxu0 %v1128
      %v1823 = vpop.f32.mrf.mxu0
      %v1824 = vadd.f32 0.0, %v1823
      %v1825 = vpop.f32.mrf.mxu0
      %v1826 = vadd.f32 0.0, %v1825
      %1827 = vmatmul.bf16.gmra.mxu0 %v1129
      %v1828 = vpop.f32.mrf.mxu0
      %v1829 = vadd.f32 0.0, %v1828
      %v1830 = vpop.f32.mrf.mxu0
      %v1831 = vadd.f32 0.0, %v1830
      %1832 = vmatmul.bf16.gmra.mxu0 %v1130
      %v1833 = vpop.f32.mrf.mxu0
      %v1834 = vadd.f32 0.0, %v1833
      %v1835 = vpop.f32.mrf.mxu0
      %v1836 = vadd.f32 0.0, %v1835
      %1837 = vmatmul.bf16.gmra.mxu0 %v1131
      %v1838 = vpop.f32.mrf.mxu0
      %v1839 = vadd.f32 0.0, %v1838
      %v1840 = vpop.f32.mrf.mxu0
      %v1841 = vadd.f32 0.0, %v1840
      %1842 = vmatmul.bf16.gmra.mxu0 %v1132
      %v1843 = vpop.f32.mrf.mxu0
      %v1844 = vadd.f32 0.0, %v1843
      %v1845 = vpop.f32.mrf.mxu0
      %v1846 = vadd.f32 0.0, %v1845
      %1847 = vmatmul.bf16.gmra.mxu0 %v1133
      %v1848 = vpop.f32.mrf.mxu0
      %v1849 = vadd.f32 0.0, %v1848
      %v1850 = vpop.f32.mrf.mxu0
      %v1851 = vadd.f32 0.0, %v1850
      %1852 = vmatmul.bf16.gmra.mxu0 %v1134
      %v1853 = vpop.f32.mrf.mxu0
      %v1854 = vadd.f32 0.0, %v1853
      %v1855 = vpop.f32.mrf.mxu0
      %v1856 = vadd.f32 0.0, %v1855
      %1857 = vmatmul.bf16.gmra.mxu0 %v1135
      %v1858 = vpop.f32.mrf.mxu0
      %v1859 = vadd.f32 0.0, %v1858
      %v1860 = vpop.f32.mrf.mxu0
      %v1861 = vadd.f32 0.0, %v1860
      %1862 = vmatmul.bf16.gmra.mxu0 %v1713
      %v1863 = vpop.f32.mrf.mxu0
      %v1864 = vadd.f32 0.0, %v1863
      %v1865 = vpop.f32.mrf.mxu0
      %v1866 = vadd.f32 0.0, %v1865
      %1867 = vdwg.mxu0
      %v1868 = vadd.f32 %v1674, %v1789
      %v1869 = vadd.f32 %v1675, %v1791
      %v1870 = vadd.f32 %v1676, %v1794
      %v1871 = vadd.f32 %v1677, %v1796
      %v1872 = vadd.f32 %v1678, %v1799
      %v1873 = vadd.f32 %v1679, %v1801
      %v1874 = vadd.f32 %v1680, %v1804
      %v1875 = vadd.f32 %v1681, %v1806
      %v1876 = vadd.f32 %v1682, %v1809
      %v1877 = vadd.f32 %v1683, %v1811
      %v1878 = vadd.f32 %v1684, %v1814
      %v1879 = vadd.f32 %v1685, %v1816
      %v1880 = vadd.f32 %v1686, %v1819
      %v1881 = vadd.f32 %v1687, %v1821
      %v1882 = vadd.f32 %v1688, %v1824
      %v1883 = vadd.f32 %v1689, %v1826
      %v1884 = vadd.f32 %v1690, %v1829
      %v1885 = vadd.f32 %v1691, %v1831
      %v1886 = vadd.f32 %v1692, %v1834
      %v1887 = vadd.f32 %v1693, %v1836
      %v1888 = vadd.f32 %v1694, %v1839
      %v1889 = vadd.f32 %v1695, %v1841
      %v1890 = vadd.f32 %v1696, %v1844
      %v1891 = vadd.f32 %v1697, %v1846
      %v1892 = vadd.f32 %v1698, %v1849
      %v1893 = vadd.f32 %v1699, %v1851
      %v1894 = vadd.f32 %v1700, %v1854
      %v1895 = vadd.f32 %v1701, %v1856
      %v1896 = vadd.f32 %v1702, %v1859
      %v1897 = vadd.f32 %v1703, %v1861
      %v1898 = vadd.f32 %v1704, %v1864
      %v1899 = vadd.f32 %v1705, %v1866
      %v1900 = vpack.c.bf16 %v505, %v504
      %s1901 = scalar_lea.vmem %s3, 384
      %v1902 = vld [vmem:[%s1901] sm:$0xf]
      %v1903 = vld [vmem:[%s1901 + $0x4] sm:$0xf]
      %v1904 = vld [vmem:[%s1901 + $0x8] sm:$0xf]
      %v1905 = vld [vmem:[%s1901 + $0xc] sm:$0xf]
      %v1906 = vld [vmem:[%s1901 + $0x10] sm:$0xf]
      %v1907 = vld [vmem:[%s1901 + $0x14] sm:$0xf]
      %v1908 = vld [vmem:[%s1901 + $0x18] sm:$0xf]
      %v1909 = vld [vmem:[%s1901 + $0x1c] sm:$0xf]
      %v1910 = vld [vmem:[%s1901 + $0x20] sm:$0xf]
      %v1911 = vld [vmem:[%s1901 + $0x24] sm:$0xf]
      %v1912 = vld [vmem:[%s1901 + $0x28] sm:$0xf]
      %v1913 = vld [vmem:[%s1901 + $0x2c] sm:$0xf]
      %v1914 = vld [vmem:[%s1901 + $0x30] sm:$0xf]
      %v1915 = vld [vmem:[%s1901 + $0x34] sm:$0xf]
      %v1916 = vld [vmem:[%s1901 + $0x38] sm:$0xf]
      %v1917 = vld [vmem:[%s1901 + $0x3c] sm:$0xf]
      %v1934 = vunpack.c.l.b16 %v1902
      %v1935 = vunpack.c.l.b16 %v1903
      %v1936 = vunpack.c.l.b16 %v1904
      %v1937 = vunpack.c.l.b16 %v1905
      %v1938 = vunpack.c.l.b16 %v1906
      %v1939 = vunpack.c.l.b16 %v1907
      %v1940 = vunpack.c.l.b16 %v1908
      %v1941 = vunpack.c.l.b16 %v1909
      %v1942 = vunpack.c.l.b16 %v1910
      %v1943 = vunpack.c.l.b16 %v1911
      %v1944 = vunpack.c.l.b16 %v1912
      %v1945 = vunpack.c.l.b16 %v1913
      %v1946 = vunpack.c.l.b16 %v1914
      %v1947 = vunpack.c.l.b16 %v1915
      %v1948 = vunpack.c.l.b16 %v1916
      %v1949 = vunpack.c.l.b16 %v1917
      %v1950 = vpack.c.b16 %v1935, %v1934
      %v1951 = vpack.c.b16 %v1937, %v1936
      %v1952 = vpack.c.b16 %v1939, %v1938
      %v1953 = vpack.c.b16 %v1941, %v1940
      %v1954 = vpack.c.b16 %v1943, %v1942
      %v1955 = vpack.c.b16 %v1945, %v1944
      %v1956 = vpack.c.b16 %v1947, %v1946
      %v1957 = vpack.c.b16 %v1949, %v1948
      %1966 = vmatpush.bf16.msra.mxu0 %v1957
      %1967 = vmatpush.bf16.msra.mxu0 %v1956
      %1968 = vmatpush.bf16.msra.mxu0 %v1955
      %1969 = vmatpush.bf16.msra.mxu0 %v1954
      %1970 = vmatpush.bf16.msra.mxu0 %v1953
      %1971 = vmatpush.bf16.msra.mxu0 %v1952
      %1972 = vmatpush.bf16.msra.mxu0 %v1951
      %1973 = vmatpush.bf16.msra.mxu0 %v1950
      %1974 = vmatmul.bf16.gmra.mxu0 %v509
      %v1975 = vpop.f32.mrf.mxu0
      %v1976 = vadd.f32 0.0, %v1975
      %v1977 = vpop.f32.mrf.mxu0
      %v1978 = vadd.f32 0.0, %v1977
      %1979 = vmatmul.bf16.gmra.mxu0 %v510
      %v1980 = vpop.f32.mrf.mxu0
      %v1981 = vadd.f32 0.0, %v1980
      %v1982 = vpop.f32.mrf.mxu0
      %v1983 = vadd.f32 0.0, %v1982
      %1984 = vmatmul.bf16.gmra.mxu0 %v511
      %v1985 = vpop.f32.mrf.mxu0
      %v1986 = vadd.f32 0.0, %v1985
      %v1987 = vpop.f32.mrf.mxu0
      %v1988 = vadd.f32 0.0, %v1987
      %1989 = vmatmul.bf16.gmra.mxu0 %v512
      %v1990 = vpop.f32.mrf.mxu0
      %v1991 = vadd.f32 0.0, %v1990
      %v1992 = vpop.f32.mrf.mxu0
      %v1993 = vadd.f32 0.0, %v1992
      %1994 = vmatmul.bf16.gmra.mxu0 %v513
      %v1995 = vpop.f32.mrf.mxu0
      %v1996 = vadd.f32 0.0, %v1995
      %v1997 = vpop.f32.mrf.mxu0
      %v1998 = vadd.f32 0.0, %v1997
      %1999 = vmatmul.bf16.gmra.mxu0 %v514
      %v2000 = vpop.f32.mrf.mxu0
      %v2001 = vadd.f32 0.0, %v2000
      %v2002 = vpop.f32.mrf.mxu0
      %v2003 = vadd.f32 0.0, %v2002
      %2004 = vmatmul.bf16.gmra.mxu0 %v515
      %v2005 = vpop.f32.mrf.mxu0
      %v2006 = vadd.f32 0.0, %v2005
      %v2007 = vpop.f32.mrf.mxu0
      %v2008 = vadd.f32 0.0, %v2007
      %2009 = vmatmul.bf16.gmra.mxu0 %v516
      %v2010 = vpop.f32.mrf.mxu0
      %v2011 = vadd.f32 0.0, %v2010
      %v2012 = vpop.f32.mrf.mxu0
      %v2013 = vadd.f32 0.0, %v2012
      %2014 = vmatmul.bf16.gmra.mxu0 %v517
      %v2015 = vpop.f32.mrf.mxu0
      %v2016 = vadd.f32 0.0, %v2015
      %v2017 = vpop.f32.mrf.mxu0
      %v2018 = vadd.f32 0.0, %v2017
      %2019 = vmatmul.bf16.gmra.mxu0 %v518
      %v2020 = vpop.f32.mrf.mxu0
      %v2021 = vadd.f32 0.0, %v2020
      %v2022 = vpop.f32.mrf.mxu0
      %v2023 = vadd.f32 0.0, %v2022
      %2024 = vmatmul.bf16.gmra.mxu0 %v519
      %v2025 = vpop.f32.mrf.mxu0
      %v2026 = vadd.f32 0.0, %v2025
      %v2027 = vpop.f32.mrf.mxu0
      %v2028 = vadd.f32 0.0, %v2027
      %2029 = vmatmul.bf16.gmra.mxu0 %v520
      %v2030 = vpop.f32.mrf.mxu0
      %v2031 = vadd.f32 0.0, %v2030
      %v2032 = vpop.f32.mrf.mxu0
      %v2033 = vadd.f32 0.0, %v2032
      %2034 = vmatmul.bf16.gmra.mxu0 %v521
      %v2035 = vpop.f32.mrf.mxu0
      %v2036 = vadd.f32 0.0, %v2035
      %v2037 = vpop.f32.mrf.mxu0
      %v2038 = vadd.f32 0.0, %v2037
      %2039 = vmatmul.bf16.gmra.mxu0 %v522
      %v2040 = vpop.f32.mrf.mxu0
      %v2041 = vadd.f32 0.0, %v2040
      %v2042 = vpop.f32.mrf.mxu0
      %v2043 = vadd.f32 0.0, %v2042
      %2044 = vmatmul.bf16.gmra.mxu0 %v1322
      %v2045 = vpop.f32.mrf.mxu0
      %v2046 = vadd.f32 0.0, %v2045
      %v2047 = vpop.f32.mrf.mxu0
      %v2048 = vadd.f32 0.0, %v2047
      %2049 = vmatmul.bf16.gmra.mxu0 %v1900
      %v2050 = vpop.f32.mrf.mxu0
      %v2051 = vadd.f32 0.0, %v2050
      %v2052 = vpop.f32.mrf.mxu0
      %v2053 = vadd.f32 0.0, %v2052
      %2054 = vdwg.mxu0
      %v2055 = vadd.f32 %v1868, %v1976
      %v2056 = vadd.f32 %v1869, %v1978
      %v2057 = vadd.f32 %v1870, %v1981
      %v2058 = vadd.f32 %v1871, %v1983
      %v2059 = vadd.f32 %v1872, %v1986
      %v2060 = vadd.f32 %v1873, %v1988
      %v2061 = vadd.f32 %v1874, %v1991
      %v2062 = vadd.f32 %v1875, %v1993
      %v2063 = vadd.f32 %v1876, %v1996
      %v2064 = vadd.f32 %v1877, %v1998
      %v2065 = vadd.f32 %v1878, %v2001
      %v2066 = vadd.f32 %v1879, %v2003
      %v2067 = vadd.f32 %v1880, %v2006
      %v2068 = vadd.f32 %v1881, %v2008
      %v2069 = vadd.f32 %v1882, %v2011
      %v2070 = vadd.f32 %v1883, %v2013
      %v2071 = vadd.f32 %v1884, %v2016
      %v2072 = vadd.f32 %v1885, %v2018
      %v2073 = vadd.f32 %v1886, %v2021
      %v2074 = vadd.f32 %v1887, %v2023
      %v2075 = vadd.f32 %v1888, %v2026
      %v2076 = vadd.f32 %v1889, %v2028
      %v2077 = vadd.f32 %v1890, %v2031
      %v2078 = vadd.f32 %v1891, %v2033
      %v2079 = vadd.f32 %v1892, %v2036
      %v2080 = vadd.f32 %v1893, %v2038
      %v2081 = vadd.f32 %v1894, %v2041
      %v2082 = vadd.f32 %v1895, %v2043
      %v2083 = vadd.f32 %v1896, %v2046
      %v2084 = vadd.f32 %v1897, %v2048
      %v2085 = vadd.f32 %v1898, %v2051
      %v2086 = vadd.f32 %v1899, %v2053
      %v2090 = vrot.slane %v504, 1
      %v2091 = vrot.slane %v505, 1
      %v2092 = vsel %vm587, %v2090, %v2091
      %v2093 = vrot.slane %v506, 1
      %v2094 = vsel %vm587, %v2091, %v2093
      %v2097 = vpack.c.bf16 %v2094, %v2092
      %s2098 = scalar_lea.vmem %s3, 448
      %v2099 = vld [vmem:[%s2098] sm:$0xf]
      %v2100 = vld [vmem:[%s2098 + $0x4] sm:$0xf]
      %v2101 = vld [vmem:[%s2098 + $0x8] sm:$0xf]
      %v2102 = vld [vmem:[%s2098 + $0xc] sm:$0xf]
      %v2103 = vld [vmem:[%s2098 + $0x10] sm:$0xf]
      %v2104 = vld [vmem:[%s2098 + $0x14] sm:$0xf]
      %v2105 = vld [vmem:[%s2098 + $0x18] sm:$0xf]
      %v2106 = vld [vmem:[%s2098 + $0x1c] sm:$0xf]
      %v2107 = vld [vmem:[%s2098 + $0x20] sm:$0xf]
      %v2108 = vld [vmem:[%s2098 + $0x24] sm:$0xf]
      %v2109 = vld [vmem:[%s2098 + $0x28] sm:$0xf]
      %v2110 = vld [vmem:[%s2098 + $0x2c] sm:$0xf]
      %v2111 = vld [vmem:[%s2098 + $0x30] sm:$0xf]
      %v2112 = vld [vmem:[%s2098 + $0x34] sm:$0xf]
      %v2113 = vld [vmem:[%s2098 + $0x38] sm:$0xf]
      %v2114 = vld [vmem:[%s2098 + $0x3c] sm:$0xf]
      %v2131 = vunpack.c.l.b16 %v2099
      %v2132 = vunpack.c.l.b16 %v2100
      %v2133 = vunpack.c.l.b16 %v2101
      %v2134 = vunpack.c.l.b16 %v2102
      %v2135 = vunpack.c.l.b16 %v2103
      %v2136 = vunpack.c.l.b16 %v2104
      %v2137 = vunpack.c.l.b16 %v2105
      %v2138 = vunpack.c.l.b16 %v2106
      %v2139 = vunpack.c.l.b16 %v2107
      %v2140 = vunpack.c.l.b16 %v2108
      %v2141 = vunpack.c.l.b16 %v2109
      %v2142 = vunpack.c.l.b16 %v2110
      %v2143 = vunpack.c.l.b16 %v2111
      %v2144 = vunpack.c.l.b16 %v2112
      %v2145 = vunpack.c.l.b16 %v2113
      %v2146 = vunpack.c.l.b16 %v2114
      %v2147 = vpack.c.b16 %v2132, %v2131
      %v2148 = vpack.c.b16 %v2134, %v2133
      %v2149 = vpack.c.b16 %v2136, %v2135
      %v2150 = vpack.c.b16 %v2138, %v2137
      %v2151 = vpack.c.b16 %v2140, %v2139
      %v2152 = vpack.c.b16 %v2142, %v2141
      %v2153 = vpack.c.b16 %v2144, %v2143
      %v2154 = vpack.c.b16 %v2146, %v2145
      %2163 = vmatpush.bf16.msra.mxu0 %v2154
      %2164 = vmatpush.bf16.msra.mxu0 %v2153
      %2165 = vmatpush.bf16.msra.mxu0 %v2152
      %2166 = vmatpush.bf16.msra.mxu0 %v2151
      %2167 = vmatpush.bf16.msra.mxu0 %v2150
      %2168 = vmatpush.bf16.msra.mxu0 %v2149
      %2169 = vmatpush.bf16.msra.mxu0 %v2148
      %2170 = vmatpush.bf16.msra.mxu0 %v2147
      %2171 = vmatmul.bf16.gmra.mxu0 %v702
      %v2172 = vpop.f32.mrf.mxu0
      %v2173 = vadd.f32 0.0, %v2172
      %v2174 = vpop.f32.mrf.mxu0
      %v2175 = vadd.f32 0.0, %v2174
      %2176 = vmatmul.bf16.gmra.mxu0 %v703
      %v2177 = vpop.f32.mrf.mxu0
      %v2178 = vadd.f32 0.0, %v2177
      %v2179 = vpop.f32.mrf.mxu0
      %v2180 = vadd.f32 0.0, %v2179
      %2181 = vmatmul.bf16.gmra.mxu0 %v704
      %v2182 = vpop.f32.mrf.mxu0
      %v2183 = vadd.f32 0.0, %v2182
      %v2184 = vpop.f32.mrf.mxu0
      %v2185 = vadd.f32 0.0, %v2184
      %2186 = vmatmul.bf16.gmra.mxu0 %v705
      %v2187 = vpop.f32.mrf.mxu0
      %v2188 = vadd.f32 0.0, %v2187
      %v2189 = vpop.f32.mrf.mxu0
      %v2190 = vadd.f32 0.0, %v2189
      %2191 = vmatmul.bf16.gmra.mxu0 %v706
      %v2192 = vpop.f32.mrf.mxu0
      %v2193 = vadd.f32 0.0, %v2192
      %v2194 = vpop.f32.mrf.mxu0
      %v2195 = vadd.f32 0.0, %v2194
      %2196 = vmatmul.bf16.gmra.mxu0 %v707
      %v2197 = vpop.f32.mrf.mxu0
      %v2198 = vadd.f32 0.0, %v2197
      %v2199 = vpop.f32.mrf.mxu0
      %v2200 = vadd.f32 0.0, %v2199
      %2201 = vmatmul.bf16.gmra.mxu0 %v708
      %v2202 = vpop.f32.mrf.mxu0
      %v2203 = vadd.f32 0.0, %v2202
      %v2204 = vpop.f32.mrf.mxu0
      %v2205 = vadd.f32 0.0, %v2204
      %2206 = vmatmul.bf16.gmra.mxu0 %v709
      %v2207 = vpop.f32.mrf.mxu0
      %v2208 = vadd.f32 0.0, %v2207
      %v2209 = vpop.f32.mrf.mxu0
      %v2210 = vadd.f32 0.0, %v2209
      %2211 = vmatmul.bf16.gmra.mxu0 %v710
      %v2212 = vpop.f32.mrf.mxu0
      %v2213 = vadd.f32 0.0, %v2212
      %v2214 = vpop.f32.mrf.mxu0
      %v2215 = vadd.f32 0.0, %v2214
      %2216 = vmatmul.bf16.gmra.mxu0 %v711
      %v2217 = vpop.f32.mrf.mxu0
      %v2218 = vadd.f32 0.0, %v2217
      %v2219 = vpop.f32.mrf.mxu0
      %v2220 = vadd.f32 0.0, %v2219
      %2221 = vmatmul.bf16.gmra.mxu0 %v712
      %v2222 = vpop.f32.mrf.mxu0
      %v2223 = vadd.f32 0.0, %v2222
      %v2224 = vpop.f32.mrf.mxu0
      %v2225 = vadd.f32 0.0, %v2224
      %2226 = vmatmul.bf16.gmra.mxu0 %v713
      %v2227 = vpop.f32.mrf.mxu0
      %v2228 = vadd.f32 0.0, %v2227
      %v2229 = vpop.f32.mrf.mxu0
      %v2230 = vadd.f32 0.0, %v2229
      %2231 = vmatmul.bf16.gmra.mxu0 %v714
      %v2232 = vpop.f32.mrf.mxu0
      %v2233 = vadd.f32 0.0, %v2232
      %v2234 = vpop.f32.mrf.mxu0
      %v2235 = vadd.f32 0.0, %v2234
      %2236 = vmatmul.bf16.gmra.mxu0 %v715
      %v2237 = vpop.f32.mrf.mxu0
      %v2238 = vadd.f32 0.0, %v2237
      %v2239 = vpop.f32.mrf.mxu0
      %v2240 = vadd.f32 0.0, %v2239
      %2241 = vmatmul.bf16.gmra.mxu0 %v1519
      %v2242 = vpop.f32.mrf.mxu0
      %v2243 = vadd.f32 0.0, %v2242
      %v2244 = vpop.f32.mrf.mxu0
      %v2245 = vadd.f32 0.0, %v2244
      %2246 = vmatmul.bf16.gmra.mxu0 %v2097
      %v2247 = vpop.f32.mrf.mxu0
      %v2248 = vadd.f32 0.0, %v2247
      %v2249 = vpop.f32.mrf.mxu0
      %v2250 = vadd.f32 0.0, %v2249
      %2251 = vdwg.mxu0
      %v2252 = vadd.f32 %v2055, %v2173
      %v2253 = vadd.f32 %v2056, %v2175
      %v2254 = vadd.f32 %v2057, %v2178
      %v2255 = vadd.f32 %v2058, %v2180
      %v2256 = vadd.f32 %v2059, %v2183
      %v2257 = vadd.f32 %v2060, %v2185
      %v2258 = vadd.f32 %v2061, %v2188
      %v2259 = vadd.f32 %v2062, %v2190
      %v2260 = vadd.f32 %v2063, %v2193
      %v2261 = vadd.f32 %v2064, %v2195
      %v2262 = vadd.f32 %v2065, %v2198
      %v2263 = vadd.f32 %v2066, %v2200
      %v2264 = vadd.f32 %v2067, %v2203
      %v2265 = vadd.f32 %v2068, %v2205
      %v2266 = vadd.f32 %v2069, %v2208
      %v2267 = vadd.f32 %v2070, %v2210
      %v2268 = vadd.f32 %v2071, %v2213
      %v2269 = vadd.f32 %v2072, %v2215
      %v2270 = vadd.f32 %v2073, %v2218
      %v2271 = vadd.f32 %v2074, %v2220
      %v2272 = vadd.f32 %v2075, %v2223
      %v2273 = vadd.f32 %v2076, %v2225
      %v2274 = vadd.f32 %v2077, %v2228
      %v2275 = vadd.f32 %v2078, %v2230
      %v2276 = vadd.f32 %v2079, %v2233
      %v2277 = vadd.f32 %v2080, %v2235
      %v2278 = vadd.f32 %v2081, %v2238
      %v2279 = vadd.f32 %v2082, %v2240
      %v2280 = vadd.f32 %v2083, %v2243
      %v2281 = vadd.f32 %v2084, %v2245
      %v2282 = vadd.f32 %v2085, %v2248
      %v2283 = vadd.f32 %v2086, %v2250
      %v2284 = vrot.slane %v504, 2
      %v2285 = vrot.slane %v505, 2
      %v2286 = vsel %vm1007, %v2284, %v2285
      %v2287 = vrot.slane %v506, 2
      %v2288 = vsel %vm1007, %v2285, %v2287
      %v2291 = vpack.c.bf16 %v2288, %v2286
      %s2292 = scalar_lea.vmem %s3, 512
      %v2293 = vld [vmem:[%s2292] sm:$0xf]
      %v2294 = vld [vmem:[%s2292 + $0x4] sm:$0xf]
      %v2295 = vld [vmem:[%s2292 + $0x8] sm:$0xf]
      %v2296 = vld [vmem:[%s2292 + $0xc] sm:$0xf]
      %v2297 = vld [vmem:[%s2292 + $0x10] sm:$0xf]
      %v2298 = vld [vmem:[%s2292 + $0x14] sm:$0xf]
      %v2299 = vld [vmem:[%s2292 + $0x18] sm:$0xf]
      %v2300 = vld [vmem:[%s2292 + $0x1c] sm:$0xf]
      %v2301 = vld [vmem:[%s2292 + $0x20] sm:$0xf]
      %v2302 = vld [vmem:[%s2292 + $0x24] sm:$0xf]
      %v2303 = vld [vmem:[%s2292 + $0x28] sm:$0xf]
      %v2304 = vld [vmem:[%s2292 + $0x2c] sm:$0xf]
      %v2305 = vld [vmem:[%s2292 + $0x30] sm:$0xf]
      %v2306 = vld [vmem:[%s2292 + $0x34] sm:$0xf]
      %v2307 = vld [vmem:[%s2292 + $0x38] sm:$0xf]
      %v2308 = vld [vmem:[%s2292 + $0x3c] sm:$0xf]
      %v2325 = vunpack.c.l.b16 %v2293
      %v2326 = vunpack.c.l.b16 %v2294
      %v2327 = vunpack.c.l.b16 %v2295
      %v2328 = vunpack.c.l.b16 %v2296
      %v2329 = vunpack.c.l.b16 %v2297
      %v2330 = vunpack.c.l.b16 %v2298
      %v2331 = vunpack.c.l.b16 %v2299
      %v2332 = vunpack.c.l.b16 %v2300
      %v2333 = vunpack.c.l.b16 %v2301
      %v2334 = vunpack.c.l.b16 %v2302
      %v2335 = vunpack.c.l.b16 %v2303
      %v2336 = vunpack.c.l.b16 %v2304
      %v2337 = vunpack.c.l.b16 %v2305
      %v2338 = vunpack.c.l.b16 %v2306
      %v2339 = vunpack.c.l.b16 %v2307
      %v2340 = vunpack.c.l.b16 %v2308
      %v2341 = vpack.c.b16 %v2326, %v2325
      %v2342 = vpack.c.b16 %v2328, %v2327
      %v2343 = vpack.c.b16 %v2330, %v2329
      %v2344 = vpack.c.b16 %v2332, %v2331
      %v2345 = vpack.c.b16 %v2334, %v2333
      %v2346 = vpack.c.b16 %v2336, %v2335
      %v2347 = vpack.c.b16 %v2338, %v2337
      %v2348 = vpack.c.b16 %v2340, %v2339
      %2357 = vmatpush.bf16.msra.mxu0 %v2348
      %2358 = vmatpush.bf16.msra.mxu0 %v2347
      %2359 = vmatpush.bf16.msra.mxu0 %v2346
      %2360 = vmatpush.bf16.msra.mxu0 %v2345
      %2361 = vmatpush.bf16.msra.mxu0 %v2344
      %2362 = vmatpush.bf16.msra.mxu0 %v2343
      %2363 = vmatpush.bf16.msra.mxu0 %v2342
      %2364 = vmatpush.bf16.msra.mxu0 %v2341
      %2365 = vmatmul.bf16.gmra.mxu0 %v1122
      %v2366 = vpop.f32.mrf.mxu0
      %v2367 = vadd.f32 0.0, %v2366
      %v2368 = vpop.f32.mrf.mxu0
      %v2369 = vadd.f32 0.0, %v2368
      %2370 = vmatmul.bf16.gmra.mxu0 %v1123
      %v2371 = vpop.f32.mrf.mxu0
      %v2372 = vadd.f32 0.0, %v2371
      %v2373 = vpop.f32.mrf.mxu0
      %v2374 = vadd.f32 0.0, %v2373
      %2375 = vmatmul.bf16.gmra.mxu0 %v1124
      %v2376 = vpop.f32.mrf.mxu0
      %v2377 = vadd.f32 0.0, %v2376
      %v2378 = vpop.f32.mrf.mxu0
      %v2379 = vadd.f32 0.0, %v2378
      %2380 = vmatmul.bf16.gmra.mxu0 %v1125
      %v2381 = vpop.f32.mrf.mxu0
      %v2382 = vadd.f32 0.0, %v2381
      %v2383 = vpop.f32.mrf.mxu0
      %v2384 = vadd.f32 0.0, %v2383
      %2385 = vmatmul.bf16.gmra.mxu0 %v1126
      %v2386 = vpop.f32.mrf.mxu0
      %v2387 = vadd.f32 0.0, %v2386
      %v2388 = vpop.f32.mrf.mxu0
      %v2389 = vadd.f32 0.0, %v2388
      %2390 = vmatmul.bf16.gmra.mxu0 %v1127
      %v2391 = vpop.f32.mrf.mxu0
      %v2392 = vadd.f32 0.0, %v2391
      %v2393 = vpop.f32.mrf.mxu0
      %v2394 = vadd.f32 0.0, %v2393
      %2395 = vmatmul.bf16.gmra.mxu0 %v1128
      %v2396 = vpop.f32.mrf.mxu0
      %v2397 = vadd.f32 0.0, %v2396
      %v2398 = vpop.f32.mrf.mxu0
      %v2399 = vadd.f32 0.0, %v2398
      %2400 = vmatmul.bf16.gmra.mxu0 %v1129
      %v2401 = vpop.f32.mrf.mxu0
      %v2402 = vadd.f32 0.0, %v2401
      %v2403 = vpop.f32.mrf.mxu0
      %v2404 = vadd.f32 0.0, %v2403
      %2405 = vmatmul.bf16.gmra.mxu0 %v1130
      %v2406 = vpop.f32.mrf.mxu0
      %v2407 = vadd.f32 0.0, %v2406
      %v2408 = vpop.f32.mrf.mxu0
      %v2409 = vadd.f32 0.0, %v2408
      %2410 = vmatmul.bf16.gmra.mxu0 %v1131
      %v2411 = vpop.f32.mrf.mxu0
      %v2412 = vadd.f32 0.0, %v2411
      %v2413 = vpop.f32.mrf.mxu0
      %v2414 = vadd.f32 0.0, %v2413
      %2415 = vmatmul.bf16.gmra.mxu0 %v1132
      %v2416 = vpop.f32.mrf.mxu0
      %v2417 = vadd.f32 0.0, %v2416
      %v2418 = vpop.f32.mrf.mxu0
      %v2419 = vadd.f32 0.0, %v2418
      %2420 = vmatmul.bf16.gmra.mxu0 %v1133
      %v2421 = vpop.f32.mrf.mxu0
      %v2422 = vadd.f32 0.0, %v2421
      %v2423 = vpop.f32.mrf.mxu0
      %v2424 = vadd.f32 0.0, %v2423
      %2425 = vmatmul.bf16.gmra.mxu0 %v1134
      %v2426 = vpop.f32.mrf.mxu0
      %v2427 = vadd.f32 0.0, %v2426
      %v2428 = vpop.f32.mrf.mxu0
      %v2429 = vadd.f32 0.0, %v2428
      %2430 = vmatmul.bf16.gmra.mxu0 %v1135
      %v2431 = vpop.f32.mrf.mxu0
      %v2432 = vadd.f32 0.0, %v2431
      %v2433 = vpop.f32.mrf.mxu0
      %v2434 = vadd.f32 0.0, %v2433
      %2435 = vmatmul.bf16.gmra.mxu0 %v1713
      %v2436 = vpop.f32.mrf.mxu0
      %v2437 = vadd.f32 0.0, %v2436
      %v2438 = vpop.f32.mrf.mxu0
      %v2439 = vadd.f32 0.0, %v2438
      %2440 = vmatmul.bf16.gmra.mxu0 %v2291
      %v2441 = vpop.f32.mrf.mxu0
      %v2442 = vadd.f32 0.0, %v2441
      %v2443 = vpop.f32.mrf.mxu0
      %v2444 = vadd.f32 0.0, %v2443
      %2445 = vdwg.mxu0
      %v2446 = vadd.f32 %v2252, %v2367
      %v2447 = vadd.f32 %v2253, %v2369
      %v2448 = vadd.f32 %v2254, %v2372
      %v2449 = vadd.f32 %v2255, %v2374
      %v2450 = vadd.f32 %v2256, %v2377
      %v2451 = vadd.f32 %v2257, %v2379
      %v2452 = vadd.f32 %v2258, %v2382
      %v2453 = vadd.f32 %v2259, %v2384
      %v2454 = vadd.f32 %v2260, %v2387
      %v2455 = vadd.f32 %v2261, %v2389
      %v2456 = vadd.f32 %v2262, %v2392
      %v2457 = vadd.f32 %v2263, %v2394
      %v2458 = vadd.f32 %v2264, %v2397
      %v2459 = vadd.f32 %v2265, %v2399
      %v2460 = vadd.f32 %v2266, %v2402
      %v2461 = vadd.f32 %v2267, %v2404
      %v2462 = vadd.f32 %v2268, %v2407
      %v2463 = vadd.f32 %v2269, %v2409
      %v2464 = vadd.f32 %v2270, %v2412
      %v2465 = vadd.f32 %v2271, %v2414
      %v2466 = vadd.f32 %v2272, %v2417
      %v2467 = vadd.f32 %v2273, %v2419
      %v2468 = vadd.f32 %v2274, %v2422
      %v2469 = vadd.f32 %v2275, %v2424
      %v2470 = vadd.f32 %v2276, %v2427
      %v2471 = vadd.f32 %v2277, %v2429
      %v2472 = vadd.f32 %v2278, %v2432
      %v2473 = vadd.f32 %v2279, %v2434
      %v2474 = vadd.f32 %v2280, %v2437
      %v2475 = vadd.f32 %v2281, %v2439
      %v2476 = vadd.f32 %v2282, %v2442
      %v2477 = vadd.f32 %v2283, %v2444
      %2478 = vst [vmem:[%s224] sm:$0xff] %v2446
      %2479 = vst [vmem:[%s224 + $0x8] sm:$0xff] %v2447
      %2480 = vst [vmem:[%s224 + $0x10] sm:$0xff] %v2448
      %2481 = vst [vmem:[%s224 + $0x18] sm:$0xff] %v2449
      %2482 = vst [vmem:[%s224 + $0x20] sm:$0xff] %v2450
      %2483 = vst [vmem:[%s224 + $0x28] sm:$0xff] %v2451
      %2484 = vst [vmem:[%s224 + $0x30] sm:$0xff] %v2452
      %2485 = vst [vmem:[%s224 + $0x38] sm:$0xff] %v2453
      %2486 = vst [vmem:[%s224 + $0x40] sm:$0xff] %v2454
      %2487 = vst [vmem:[%s224 + $0x48] sm:$0xff] %v2455
      %2488 = vst [vmem:[%s224 + $0x50] sm:$0xff] %v2456
      %2489 = vst [vmem:[%s224 + $0x58] sm:$0xff] %v2457
      %2490 = vst [vmem:[%s224 + $0x60] sm:$0xff] %v2458
      %2491 = vst [vmem:[%s224 + $0x68] sm:$0xff] %v2459
      %2492 = vst [vmem:[%s224 + $0x70] sm:$0xff] %v2460
      %2493 = vst [vmem:[%s224 + $0x78] sm:$0xff] %v2461
      %2494 = vst [vmem:[%s224 + $0x80] sm:$0xff] %v2462
      %2495 = vst [vmem:[%s224 + $0x88] sm:$0xff] %v2463
      %2496 = vst [vmem:[%s224 + $0x90] sm:$0xff] %v2464
      %2497 = vst [vmem:[%s224 + $0x98] sm:$0xff] %v2465
      %2498 = vst [vmem:[%s224 + $0xa0] sm:$0xff] %v2466
      %2499 = vst [vmem:[%s224 + $0xa8] sm:$0xff] %v2467
      %2500 = vst [vmem:[%s224 + $0xb0] sm:$0xff] %v2468
      %2501 = vst [vmem:[%s224 + $0xb8] sm:$0xff] %v2469
      %2502 = vst [vmem:[%s224 + $0xc0] sm:$0xff] %v2470
      %2503 = vst [vmem:[%s224 + $0xc8] sm:$0xff] %v2471
      %2504 = vst [vmem:[%s224 + $0xd0] sm:$0xff] %v2472
      %2505 = vst [vmem:[%s224 + $0xd8] sm:$0xff] %v2473
      %2506 = vst [vmem:[%s224 + $0xe0] sm:$0xff] %v2474
      %2507 = vst [vmem:[%s224 + $0xe8] sm:$0xff] %v2475
      %2508 = vst [vmem:[%s224 + $0xf0] sm:$0xff] %v2476
      %2509 = vst [vmem:[%s224 + $0xf8] sm:$0xff] %v2477
      // Predicated region
      $region41: #{basic_block_forward.4} parent=35 // pred_check
        %p2510 = pneg %p362
      $region42: #{basic_block_forward.4} parent=35 // pred_check_branch
        %2512 = sbr.rel (%p2510) target = $region44
      $region43: #{basic_block_forward.4} parent=35 // pred_region
        %2513 = vst [vmem:[%s5] sm:$0x3] 0.0
      $region44: #{basic_block_forward.4} parent=35 // pred_fallthru
        _
      %v2514 = vld [vmem:[%s5] sm:$0x3]
      %v2515 = vadd.f32 %v2446, %v2447
      %v2516 = vadd.f32 %v2515, %v2448
      %v2517 = vadd.f32 %v2516, %v2449
      %v2518 = vadd.f32 %v2517, %v2450
      %v2519 = vadd.f32 %v2518, %v2451
      %v2520 = vadd.f32 %v2519, %v2452
      %v2521 = vadd.f32 %v2520, %v2453
      %v2522 = vadd.f32 %v2521, %v2454
      %v2523 = vadd.f32 %v2522, %v2455
      %v2524 = vadd.f32 %v2523, %v2456
      %v2525 = vadd.f32 %v2524, %v2457
      %v2526 = vadd.f32 %v2525, %v2458
      %v2527 = vadd.f32 %v2526, %v2459
      %v2528 = vadd.f32 %v2527, %v2460
      %v2529 = vadd.f32 %v2528, %v2461
      %v2530 = vadd.f32 %v2529, %v2462
      %v2531 = vadd.f32 %v2530, %v2463
      %v2532 = vadd.f32 %v2531, %v2464
      %v2533 = vadd.f32 %v2532, %v2465
      %v2534 = vadd.f32 %v2533, %v2466
      %v2535 = vadd.f32 %v2534, %v2467
      %v2536 = vadd.f32 %v2535, %v2468
      %v2537 = vadd.f32 %v2536, %v2469
      %v2538 = vadd.f32 %v2537, %v2470
      %v2539 = vadd.f32 %v2538, %v2471
      %v2540 = vadd.f32 %v2539, %v2472
      %v2541 = vadd.f32 %v2540, %v2473
      %v2542 = vadd.f32 %v2541, %v2474
      %v2543 = vadd.f32 %v2542, %v2475
      %v2544 = vadd.f32 %v2543, %v2476
      %v2545 = vadd.f32 %v2544, %v2477
      %v2546 = vrot.slane %v2545, 4
      %v2547 = vadd.f32 %v2545, %v2546
      %v2548 = vrot.slane %v2547, 2
      %v2549 = vadd.f32 %v2547, %v2548
      %v2550 = vrot.slane %v2549, 1
      %v2551 = vadd.f32 %v2549, %v2550
      %v2552 = vmul.f32 %v2446, %v2446
      %v2553 = vmul.f32 %v2447, %v2447
      %v2554 = vmul.f32 %v2448, %v2448
      %v2555 = vmul.f32 %v2449, %v2449
      %v2556 = vmul.f32 %v2450, %v2450
      %v2557 = vmul.f32 %v2451, %v2451
      %v2558 = vmul.f32 %v2452, %v2452
      %v2559 = vmul.f32 %v2453, %v2453
      %v2560 = vmul.f32 %v2454, %v2454
      %v2561 = vmul.f32 %v2455, %v2455
      %v2562 = vmul.f32 %v2456, %v2456
      %v2563 = vmul.f32 %v2457, %v2457
      %v2564 = vmul.f32 %v2458, %v2458
      %v2565 = vmul.f32 %v2459, %v2459
      %v2566 = vmul.f32 %v2460, %v2460
      %v2567 = vmul.f32 %v2461, %v2461
      %v2568 = vmul.f32 %v2462, %v2462
      %v2569 = vmul.f32 %v2463, %v2463
      %v2570 = vmul.f32 %v2464, %v2464
      %v2571 = vmul.f32 %v2465, %v2465
      %v2572 = vmul.f32 %v2466, %v2466
      %v2573 = vmul.f32 %v2467, %v2467
      %v2574 = vmul.f32 %v2468, %v2468
      %v2575 = vmul.f32 %v2469, %v2469
      %v2576 = vmul.f32 %v2470, %v2470
      %v2577 = vmul.f32 %v2471, %v2471
      %v2578 = vmul.f32 %v2472, %v2472
      %v2579 = vmul.f32 %v2473, %v2473
      %v2580 = vmul.f32 %v2474, %v2474
      %v2581 = vmul.f32 %v2475, %v2475
      %v2582 = vmul.f32 %v2476, %v2476
      %v2583 = vmul.f32 %v2477, %v2477
      %v2584 = vadd.f32 %v2552, %v2553
      %v2585 = vadd.f32 %v2584, %v2554
      %v2586 = vadd.f32 %v2585, %v2555
      %v2587 = vadd.f32 %v2586, %v2556
      %v2588 = vadd.f32 %v2587, %v2557
      %v2589 = vadd.f32 %v2588, %v2558
      %v2590 = vadd.f32 %v2589, %v2559
      %v2591 = vadd.f32 %v2590, %v2560
      %v2592 = vadd.f32 %v2591, %v2561
      %v2593 = vadd.f32 %v2592, %v2562
      %v2594 = vadd.f32 %v2593, %v2563
      %v2595 = vadd.f32 %v2594, %v2564
      %v2596 = vadd.f32 %v2595, %v2565
      %v2597 = vadd.f32 %v2596, %v2566
      %v2598 = vadd.f32 %v2597, %v2567
      %v2599 = vadd.f32 %v2598, %v2568
      %v2600 = vadd.f32 %v2599, %v2569
      %v2601 = vadd.f32 %v2600, %v2570
      %v2602 = vadd.f32 %v2601, %v2571
      %v2603 = vadd.f32 %v2602, %v2572
      %v2604 = vadd.f32 %v2603, %v2573
      %v2605 = vadd.f32 %v2604, %v2574
      %v2606 = vadd.f32 %v2605, %v2575
      %v2607 = vadd.f32 %v2606, %v2576
      %v2608 = vadd.f32 %v2607, %v2577
      %v2609 = vadd.f32 %v2608, %v2578
      %v2610 = vadd.f32 %v2609, %v2579
      %v2611 = vadd.f32 %v2610, %v2580
      %v2612 = vadd.f32 %v2611, %v2581
      %v2613 = vadd.f32 %v2612, %v2582
      %v2614 = vadd.f32 %v2613, %v2583
      %v2615 = vrot.slane %v2614, 4
      %v2616 = vadd.f32 %v2614, %v2615
      %v2617 = vrot.slane %v2616, 2
      %v2618 = vadd.f32 %v2616, %v2617
      %v2619 = vrot.slane %v2618, 1
      %v2620 = vadd.f32 %v2618, %v2619
      %vm2621 = vcmask 1040384
      %v2622 = vsel %vm2621, %v2551, %v2620
      %v2623 = vadd.f32 %v2514, %v2622
      %2624 = vst [vmem:[%s5] sm:$0x3] %v2623
      %s2625 = smul.u32 32, %s17
      %p2626 = scmp.lt.s32.totalorder %s2625, 63
      %s2627 = scalar_select %p2626, %s2625, 63
      %s2628 = smul.addr %s2627, 8
      %s2629 = scalar_lea.vmem %s4, %s2628
      // Predicated region
      $region45: #{basic_block_forward.4} parent=35 // pred_check
        %p2630 = pneg %p124
      $region46: #{basic_block_forward.4} parent=35 // pred_check_branch
        %2632 = sbr.rel (%p2630) target = $region48
      $region47: #{basic_block_forward.4} parent=35 // pred_region
        %s2633 = smul.u32 32, %s17
      $region48: #{basic_block_forward.4} parent=35 // pred_fallthru
        _
      // Predicated region
      $region49: #{basic_block_forward.4} parent=35 // pred_check
        %p2634 = pneg %p145
      $region50: #{basic_block_forward.4} parent=35 // pred_check_branch
        %2636 = sbr.rel (%p2634) target = $region52
      $region51: #{basic_block_forward.4} parent=35 // pred_region
        _
      $region52: #{basic_block_forward.4} parent=35 // pred_fallthru
        _
      // Predicated region
      $region53: #{basic_block_forward.4} parent=35 // pred_check
        %p2637 = pneg %p145
      $region54: #{basic_block_forward.4} parent=35 // pred_check_branch
        %2639 = sbr.rel (%p2637) target = $region56
      $region55: #{basic_block_forward.4} parent=35 // pred_region
        _
      $region56: #{basic_block_forward.4} parent=35 // pred_fallthru
        _
    $region36: #{basic_block_forward.4} parent=5 // pred_fallthru
      _
    %p2640 = scmp.le.s32.totalorder 2, %s12
    // Predicated region
    $region57: #{basic_block_forward.4} parent=5 // pred_check
      %p2641 = pneg %p2640
    $region58: #{basic_block_forward.4} parent=5 // pred_check_branch
      %2643 = sbr.rel (%p2641) target = $region60
    $region59: #{basic_block_forward.4} parent=5 // pred_region
      %s2644 = ssub.s32 %s12, 2
      // Predicated region
      $region61: #{basic_block_forward.4} parent=59 // pred_check
        %p2645 = pneg %p130
      $region62: #{basic_block_forward.4} parent=59 // pred_check_branch
        %2647 = sbr.rel (%p2645) target = $region64
      $region63: #{basic_block_forward.4} parent=59 // pred_region
        %s2648 = smul.u32 32, %s18
        %p2649 = scmp.lt.s32.totalorder %s2648, 63
        %s2650 = scalar_select %p2649, %s2648, 63
        %s2651 = smul.addr %s2650, 8
        %s2652 = scalar_lea.vmem %s4, %s2651
      $region64: #{basic_block_forward.4} parent=59 // pred_fallthru
        _
    $region60: #{basic_block_forward.4} parent=5 // pred_fallthru
      _
  $region6: #{basic_block_forward.4} parent=0 // loop_footer
    %s16 = sadd.s32 1, %s12
  $region7: #{basic_block_forward.4} parent=0 // loop_footer_branch
    %11 = sbr.rel target = $region3
  $region8: #{basic_block_forward.4} parent=0 // loop_exit
    _

</llo_original>
